<compile_context>
chip_gen: v5e
topology: v5e:2x2
jax: 0.10.0
libtpu: 0.0.40
codegen_flags: <defaults>
</compile_context>

<pallas_src>
import functools

import jax
import jax.numpy as jnp
from jax.experimental import pallas as pl
from jax.experimental.pallas import tpu as pltpu

BN_EPS = 1e-5   # nn.BatchNorm2d default eps


# ---------------------------------------------------------------------------
# Pallas kernels
# ---------------------------------------------------------------------------
def _matmul_bn_act_kernel(x_ref, w_ref, s_ref, b_ref, o_ref, *, act):
    """1x1 conv as a dense row-tile matmul + eval-BN affine + optional SiLU.

    x_ref : (TM, Cin)   bf16 activation rows (N*H*W flattened, M-tiled)
    w_ref : (Cin, Cout) bf16 weight
    s_ref : (1, Cout)   BN scale        b_ref : (1, Cout) BN bias
    o_ref : (TM, Cout)
    """
    acc = jnp.dot(x_ref[...], w_ref[...], preferred_element_type=jnp.float32)
    y = acc * s_ref[...] + b_ref[...]
    if act:
        y = y * pl.reciprocal(1.0 + jnp.exp(-y), approx=True)    # SiLU (EUP)
    o_ref[...] = y.astype(o_ref.dtype)


def _conv3x3_bn_act_kernel(x_ref, w_ref, s_ref, b_ref, o_ref, *, act):
    """3x3 stride-1 conv (banded-matmul form, width-tiled) + BN + SiLU.

    x_ref : (1, H+2, (W+2)*Cin)      bf16 padded image (full width, shared by tiles)
    w_ref : (3, (W+2)*Cin, TW*Cout)  banded bf16 weight, width-tile slice
    s/b   : (1, TW*Cout)             BN scale / bias (width-tiled slice)
    o_ref : (1, H, TW*Cout)
    """
    H, WO = o_ref.shape[1], o_ref.shape[2]
    acc = jnp.zeros((H, WO), jnp.float32)
    for i in range(3):                         # kernel-row taps (unrolled)
        acc = acc + jnp.dot(x_ref[0, i:i + H, :], w_ref[i],
                            preferred_element_type=jnp.float32)
    y = acc * s_ref[...] + b_ref[...]
    if act:
        y = y * pl.reciprocal(1.0 + jnp.exp(-y), approx=True)
    o_ref[0] = y.astype(o_ref.dtype)


def _saconv_kernel(x_ref, sw_ref, ws_ref, wl_ref, fold_ref, bc_ref, pb_ref,
                   s_ref, b_ref, o_ref):
    """Fused SAConv2d for one image: both conv branches (d=1 / d=3) + switch
    blend + post-context (reduce-then-matmul) + BN + SiLU.

    x_ref   : (1, H+6, (W+6)*Cin)  bf16 pre-context-added image, zero-padded by 3
    sw_ref  : (1, H, W*O)          bf16 switch map, already broadcast over O
    ws_ref  : (3, (W+6)*Cin, W*O)  bf16 banded AWS weight, dilation-1 placement
    wl_ref  : (3, (W+6)*Cin, W*O)  bf16 banded (AWS weight + weight_diff), dilation-3
    fold_ref: (W*O, O)  f32  post_w.T/(H*W), tiled over W   (GAP fold)
    bc_ref  : (O, W*O)  f32  eye(O) tiled over W            (channel broadcast)
    pb_ref  : (1, W*O)  f32  post-context bias, width-tiled
    s_ref/b_ref : (1, W*O)   BN scale / bias, width-tiled
    o_ref   : (1, H, W*O) bf16
    """
    H, WO = o_ref.shape[1], o_ref.shape[2]
    acc_s = jnp.zeros((H, WO), jnp.float32)
    acc_l = jnp.zeros((H, WO), jnp.float32)
    for i in range(3):   # kernel-row taps; both branches reuse the same VMEM tile
        acc_s = acc_s + jnp.dot(x_ref[0, 2 + i:2 + i + H, :], ws_ref[i],
                                preferred_element_type=jnp.float32)
        acc_l = acc_l + jnp.dot(x_ref[0, 3 * i:3 * i + H, :], wl_ref[i],
                                preferred_element_type=jnp.float32)
    sw = sw_ref[0].astype(jnp.float32)
    out = sw * acc_s + (1.0 - sw) * acc_l
    # post-context: GAP(out) -> 1x1 conv -> broadcast add, as reduce-then-matmul.
    # (H,wo)@(wo,O) folds width + GAP scaling, (H,O)@(O,wo) re-broadcasts per
    # channel, a sublane sum gives the (1,wo) additive term.  No (wo,wo) operand.
    post_rows = jnp.dot(out, fold_ref[...], preferred_element_type=jnp.float32)
    post_bc = jnp.dot(post_rows, bc_ref[...], preferred_element_type=jnp.float32)
    post = jnp.sum(post_bc, axis=0, keepdims=True) + pb_ref[...]
    out = out + post
    # eval-mode BatchNorm + SiLU epilogue (f32 math, EUP reciprocal), bf16 store
    y = out * s_ref[...] + b_ref[...]
    y = y * pl.reciprocal(1.0 + jnp.exp(-y), approx=True)
    o_ref[0] = y.astype(o_ref.dtype)


# ---------------------------------------------------------------------------
# Hoisted (per-weight-update) preprocessing helpers
# ---------------------------------------------------------------------------
def _bn_scale_bias(bn):
    scale = bn["gamma"] / jnp.sqrt(bn["var"] + BN_EPS)
    return scale, bn["beta"] - bn["mean"] * scale


def _aws_weight(w, gamma, beta):
    """ConvAWS2d._get_weight (torch unbiased variance, eps=1e-5)."""
    mean = jnp.mean(w, axis=(1, 2, 3), keepdims=True)
    wc = w - mean
    n = w.shape[1] * w.shape[2] * w.shape[3]
    var = jnp.sum(wc.reshape(w.shape[0], -1) ** 2, axis=1) / (n - 1)
    std = jnp.sqrt(var + 1e-5).reshape(-1, 1, 1, 1)
    return gamma * (wc / std) + beta


def _band_weight(w_taps, w_out, w_pad, col_offs):
    """(KH,KW,Cin,Cout) conv taps -> (KH, Wpad*Cin, Wout*Cout) banded matrices.

    big[t, q*Cin+c, w*Cout+o] = w_taps[t, j, c, o]  iff  q == w + col_offs[j],
    so `rows @ big[t]` evaluates every width position of kernel row t at once
    with a lane-dense (Wout*Cout wide) output.
    """
    kh, kw, ci, co = w_taps.shape
    q = jnp.arange(w_pad)
    w_idx = jnp.arange(w_out)
    offs = jnp.asarray(col_offs)
    sel = (q[None, None, :] ==
           (w_idx[None, :, None] + offs[:, None, None])).astype(w_taps.dtype)
    big = jnp.einsum("jwq,tjco->tqcwo", sel, w_taps)
    return big.reshape(kh, w_pad * ci, w_out * co).astype(jnp.bfloat16)


def prepare_params(p, H, W):
    """Per-weight-update preprocessing: AWS standardization, banded weights,
    BN folding, width-tiled constants.  Depends only on params + static map
    size, NOT on activations -> run once, not per forward."""
    def prep_1x1(cp):
        w = cp["w"]
        s, b = _bn_scale_bias(cp["bn"])
        return dict(w=w.reshape(w.shape[0], w.shape[1]).T.astype(jnp.bfloat16),
                    s=s.reshape(1, -1), b=b.reshape(1, -1))

    prep = dict(cv1=prep_1x1(p["cv1"]), cv2=prep_1x1(p["cv2"]), m=[])
    for bp in p["m"]:
        # bottleneck cv1: 3x3 Conv+BN+SiLU, banded form (pad 1, dilation 1)
        w = bp["cv1"]["w"]
        co = w.shape[0]
        s, b = _bn_scale_bias(bp["cv1"]["bn"])
        c1prep = dict(
            band=_band_weight(jnp.transpose(w, (2, 3, 1, 0)), W, W + 2, (0, 1, 2)),
            s=jnp.tile(s, W).reshape(1, W * co),
            b=jnp.tile(b, W).reshape(1, W * co))
        # bottleneck cv2: SAConv2d
        sp = bp["cv2"]
        O, Ci = sp["w"].shape[0], sp["w"].shape[1]
        w_s = _aws_weight(sp["w"], sp["w_gamma"], sp["w_beta"])
        w_l = w_s + sp["w_diff"]
        Wp = W + 6               # single pad-3 image serves both dilation branches
        pw2d = sp["post_w"].reshape(O, O)
        s2, b2 = _bn_scale_bias(sp["bn"])
        saprep = dict(
            ws=_band_weight(jnp.transpose(w_s, (2, 3, 1, 0)), W, Wp, (2, 3, 4)),
            wl=_band_weight(jnp.transpose(w_l, (2, 3, 1, 0)), W, Wp, (0, 3, 6)),
            fold=(jnp.tile(pw2d.T, (W, 1)) / float(H * W)).astype(jnp.float32),
            bc=jnp.tile(jnp.eye(O, dtype=jnp.float32), (1, W)),
            pb=jnp.tile(sp["post_b"], W).reshape(1, W * O).astype(jnp.float32),
            s=jnp.tile(s2, W).reshape(1, W * O),
            b=jnp.tile(b2, W).reshape(1, W * O),
            pre_w=sp["pre_w"].reshape(Ci, Ci),
            pre_b=sp["pre_b"],
            sw_w=sp["switch_w"].reshape(Ci),
            sw_b=sp["switch_b"].reshape(()))
        prep["m"].append(dict(cv1=c1prep, cv2=saprep))
    return prep


# ---------------------------------------------------------------------------
# Pallas-call wrappers
# ---------------------------------------------------------------------------
def _conv1x1_bn_silu(x_flat, cp, *, out_dtype):
    """ultralytics Conv k=1 (conv no-bias + BN + SiLU) as a dense matmul."""
    M, Cin = x_flat.shape
    Cout = cp["w"].shape[1]
    tm = 256 if M % 256 == 0 else M          # fill the MXU M dimension
    assert M % tm == 0
    return pl.pallas_call(
        functools.partial(_matmul_bn_act_kernel, act=True),
        out_shape=jax.ShapeDtypeStruct((M, Cout), out_dtype),
        grid=(M // tm,),
        in_specs=[
            pl.BlockSpec((tm, Cin), lambda i: (i, 0)),
            pl.BlockSpec((Cin, Cout), lambda i: (0, 0)),
            pl.BlockSpec((1, Cout), lambda i: (0, 0)),
            pl.BlockSpec((1, Cout), lambda i: (0, 0)),
        ],
        out_specs=pl.BlockSpec((tm, Cout), lambda i: (i, 0)),
        compiler_params=pltpu.CompilerParams(
            dimension_semantics=("parallel",)),
    )(x_flat, cp["w"], cp["s"], cp["b"])


def _conv3x3_bn_silu(x, cp):
    """ultralytics Conv k=3 p=1 (conv + BN + SiLU), banded matmuls, width-tiled."""
    N, H, W, C = x.shape
    co = cp["band"].shape[2] // W
    Wp = W + 2
    xf = jnp.pad(x, ((0, 0), (1, 1), (1, 1), (0, 0))).reshape(N, H + 2, Wp * C)
    tw = W                       # smallest W divisor that keeps stores lane-dense
    for cand in range(1, W):
        if W % cand == 0 and cand * co >= 128:
            tw = cand
            break
    out = pl.pallas_call(
        functools.partial(_conv3x3_bn_act_kernel, act=True),
        out_shape=jax.ShapeDtypeStruct((N, H, W * co), jnp.bfloat16),
        grid=(N, W // tw),
        in_specs=[
            pl.BlockSpec((1, H + 2, Wp * C), lambda n, j: (n, 0, 0)),
            pl.BlockSpec((3, Wp * C, tw * co), lambda n, j: (0, 0, j)),
            pl.BlockSpec((1, tw * co), lambda n, j: (0, j)),
            pl.BlockSpec((1, tw * co), lambda n, j: (0, j)),
        ],
        out_specs=pl.BlockSpec((1, H, tw * co), lambda n, j: (n, 0, j)),
        compiler_params=pltpu.CompilerParams(
            dimension_semantics=("parallel", "parallel")),
    )(xf, cp["band"], cp["s"], cp["b"])
    return out.reshape(N, H, W, co)


def _avg_pool5_reflect(x):
    """F.pad(reflect, 2) + F.avg_pool2d(k=5, s=1), separable shifted adds (JAX glue)."""
    N, H, W, C = x.shape
    xp = jnp.pad(x, ((0, 0), (2, 2), (2, 2), (0, 0)), mode="reflect")
    acc_h = xp[:, 0:H, :, :]
    for i in range(1, 5):
        acc_h = acc_h + xp[:, i:i + H, :, :]
    acc = acc_h[:, :, 0:W, :]
    for j in range(1, 5):
        acc = acc + acc_h[:, :, j:j + W, :]
    return acc / 25.0


def _saconv2d(x, sp):
    """SAConv2d forward; all heavy compute is one fused Pallas call per image."""
    N, H, W, C = x.shape
    O = sp["fold"].shape[1]
    wo, wp_c = W * O, (W + 6) * C
    x32 = x.astype(jnp.float32)
    # pre-context: GAP -> 1x1 conv -> broadcast add (tiny, JAX glue)
    gap = jnp.mean(x32, axis=(1, 2))
    pre = gap @ sp["pre_w"].T + sp["pre_b"]
    x32 = x32 + pre[:, None, None, :]
    # switch: reflect-pad 5x5 avg pool -> Cin->1 1x1 conv (tiny), broadcast over O
    avg = _avg_pool5_reflect(x32)
    sw = jnp.tensordot(avg, sp["sw_w"], axes=([3], [0])) + sp["sw_b"]
    sw_map = jnp.broadcast_to(sw[..., None], (N, H, W, O)).reshape(N, H, wo)
    sw_map = sw_map.astype(jnp.bfloat16)
    # single pad-3 bf16 image serves both dilation branches
    xp = jnp.pad(x32, ((0, 0), (3, 3), (3, 3), (0, 0))).astype(jnp.bfloat16)
    xp = xp.reshape(N, H + 6, wp_c)
    flops = int(N * (2 * 2 * 3 * H * wp_c * wo + 4 * H * wo * O + 10 * H * wo))
    bytes_acc = int(2 * N * (H + 6) * wp_c + 2 * N * H * wo        # xp + switch
                    + 2 * 2 * 3 * wp_c * wo                        # two bf16 bands
                    + 4 * (2 * wo * O + 3 * wo)                    # fold/bc + vectors
                    + 2 * N * H * wo)                              # bf16 output
    out = pl.pallas_call(
        _saconv_kernel,
        out_shape=jax.ShapeDtypeStruct((N, H, wo), jnp.bfloat16),
        grid=(N,),
        in_specs=[
            pl.BlockSpec((1, H + 6, wp_c), lambda n: (n, 0, 0)),
            pl.BlockSpec((1, H, wo), lambda n: (n, 0, 0)),
            pl.BlockSpec((3, wp_c, wo), lambda n: (0, 0, 0)),
            pl.BlockSpec((3, wp_c, wo), lambda n: (0, 0, 0)),
            pl.BlockSpec((wo, O), lambda n: (0, 0)),
            pl.BlockSpec((O, wo), lambda n: (0, 0)),
            pl.BlockSpec((1, wo), lambda n: (0, 0)),
            pl.BlockSpec((1, wo), lambda n: (0, 0)),
            pl.BlockSpec((1, wo), lambda n: (0, 0)),
        ],
        out_specs=pl.BlockSpec((1, H, wo), lambda n: (n, 0, 0)),
        compiler_params=pltpu.CompilerParams(
            dimension_semantics=("parallel",)),
        cost_estimate=pl.CostEstimate(flops=flops,
                                      transcendentals=int(N * H * wo),
                                      bytes_accessed=bytes_acc),
    )(xp, sw_map, sp["ws"], sp["wl"], sp["fold"], sp["bc"], sp["pb"],
      sp["s"], sp["b"])
    return out.reshape(N, H, W, O)


# ---------------------------------------------------------------------------
# Bottleneck_SAConv / C2f_SAConv forward
# ---------------------------------------------------------------------------
def _bottleneck_saconv(x, mp):
    # shortcut=False in C2f_SAConv default -> no residual add
    y = _conv3x3_bn_silu(x, mp["cv1"])      # 3x3 Conv + BN + SiLU
    return _saconv2d(y, mp["cv2"])          # 3x3 SAConv2d


def c2f_saconv_apply(x_nchw, prep):
    x = jnp.transpose(x_nchw, (0, 2, 3, 1)).astype(jnp.bfloat16)   # NCHW -> NHWC
    N, H, W, C1 = x.shape
    y = _conv1x1_bn_silu(x.reshape(N * H * W, C1), prep["cv1"],
                         out_dtype=jnp.bfloat16)
    two_c = y.shape[-1]
    c = two_c // 2
    y = y.reshape(N, H, W, two_c)
    ys = [y[..., :c], y[..., c:]]                                  # chunk(2, channel)
    for mp in prep["m"]:
        ys.append(_bottleneck_saconv(ys[-1], mp))
    cat = jnp.concatenate(ys, axis=-1)
    out = _conv1x1_bn_silu(cat.reshape(N * H * W, cat.shape[-1]), prep["cv2"],
                           out_dtype=jnp.float32)
    out = out.reshape(N, H, W, -1)
    return jnp.transpose(out, (0, 3, 1, 2))                        # back to NCHW


# ---------------------------------------------------------------------------
# Deterministic parameter init (shapes per the PyTorch __init__)
# ---------------------------------------------------------------------------
def init_params(key, c1, c2, n=1, e=0.5):
    c = int(c2 * e)
    keys = iter(jax.random.split(key, 128))

    def w(shape, s=0.1):
        return s * jax.random.normal(next(keys), shape, jnp.float32)

    def bn(ch):
        # freshly-initialized BatchNorm2d, eval mode
        return dict(gamma=jnp.ones((ch,), jnp.float32),
                    beta=jnp.zeros((ch,), jnp.float32),
                    mean=jnp.zeros((ch,), jnp.float32),
                    var=jnp.ones((ch,), jnp.float32))

    def conv_p(ci, co, k):
        return dict(w=w((co, ci, k, k)), bn=bn(co))

    def saconv_p(ci, co):
        return dict(
            w=w((co, ci, 3, 3)),
            # module zero-fills these; small nonzero values exercise the paths
            w_diff=w((co, ci, 3, 3), 0.02),
            w_gamma=jnp.ones((co, 1, 1, 1), jnp.float32),
            w_beta=jnp.zeros((co, 1, 1, 1), jnp.float32),
            switch_w=w((1, ci, 1, 1), 0.05),
            switch_b=jnp.ones((1,), jnp.float32),
            pre_w=w((ci, ci, 1, 1), 0.05),
            pre_b=w((ci,), 0.05),
            post_w=w((co, co, 1, 1), 0.05),
            post_b=w((co,), 0.05),
            bn=bn(co),
        )

    def bottleneck_p(ci, co):
        return dict(cv1=conv_p(ci, int(co * 1.0), 3),
                    cv2=saconv_p(int(co * 1.0), co))

    return dict(
        c=c,
        cv1=conv_p(c1, 2 * c, 1),
        cv2=conv_p((2 + n) * c, c2, 1),
        m=[bottleneck_p(c, c) for _ in range(n)],
    )


if __name__ == "__main__":
    key = jax.random.PRNGKey(0)
    kp, kx = jax.random.split(key)
    # channels chosen so W*Cout (SAConv) = 256 and TW*Cout (3x3 tiles) = 128
    c1, c2, n = 32, 32, 1
    N, H, W = 2, 16, 16
    params = init_params(kp, c1, c2, n=n)
    prep = prepare_params(params, H, W)         # hoisted: once per weight update
    x = jax.random.normal(kx, (N, c1, H, W), jnp.float32)   # NCHW like PyTorch
    fwd = jax.jit(lambda a: c2f_saconv_apply(a, prep))
    out = jax.block_until_ready(fwd(x))
    assert out.shape == (N, c2, H, W), out.shape
    assert bool(jnp.all(jnp.isfinite(out)))
    print("KERNEL_OK")
</pallas_src>

<mosaic_0001>
module attributes {stable_mosaic.version = 11 : i64} {
  func.func @_matmul_bn_act_kernel(%arg0: i32, %arg1: memref<256x32xbf16, #tpu.memory_space<vmem>>, %arg2: memref<32x32xbf16, #tpu.memory_space<vmem>>, %arg3: memref<1x32xf32, #tpu.memory_space<vmem>>, %arg4: memref<1x32xf32, #tpu.memory_space<vmem>>, %arg5: memref<256x32xbf16, #tpu.memory_space<vmem>>) attributes {dimension_semantics = [#tpu.dimension_semantics<parallel>], iteration_bounds = array<i64: 2>, scalar_prefetch = 0 : i64, scratch_operands = 0 : i64, tpu.core_type = #tpu.core_type<tc>, window_params = [{transform_indices = @transform_0, window_bounds = array<i64: 256, 32>}, {pipeline_mode = #tpu.pipeline_mode<synchronous>, transform_indices = @transform_1, window_bounds = array<i64: 32, 32>}, {pipeline_mode = #tpu.pipeline_mode<synchronous>, transform_indices = @transform_2, window_bounds = array<i64: 1, 32>}, {pipeline_mode = #tpu.pipeline_mode<synchronous>, transform_indices = @transform_3, window_bounds = array<i64: 1, 32>}, {transform_indices = @transform_4, window_bounds = array<i64: 256, 32>}]} {
    %c0 = arith.constant 0 : index
    %c0_0 = arith.constant 0 : index
    %0 = vector.load %arg1[%c0, %c0_0] : memref<256x32xbf16, #tpu.memory_space<vmem>>, vector<256x32xbf16>
    %c0_1 = arith.constant 0 : index
    %c0_2 = arith.constant 0 : index
    %1 = vector.load %arg2[%c0_1, %c0_2] : memref<32x32xbf16, #tpu.memory_space<vmem>>, vector<32x32xbf16>
    %cst = arith.constant dense<0.000000e+00> : vector<256x32xf32>
    %2 = tpu.matmul %0, %1, %cst {dimension_numbers = #tpu.dot_dimension_numbers<[1], [0], [0], [1], [0, 0, 1, 1], [], []>} : vector<256x32xbf16>, vector<32x32xbf16>, vector<256x32xf32> -> vector<256x32xf32>
    %c0_3 = arith.constant 0 : index
    %c0_4 = arith.constant 0 : index
    %3 = vector.load %arg3[%c0_3, %c0_4] : memref<1x32xf32, #tpu.memory_space<vmem>>, vector<1x32xf32>
    %4 = vector.broadcast %3 : vector<1x32xf32> to vector<256x32xf32>
    %5 = arith.mulf %2, %4 : vector<256x32xf32>
    %c0_5 = arith.constant 0 : index
    %c0_6 = arith.constant 0 : index
    %6 = vector.load %arg4[%c0_5, %c0_6] : memref<1x32xf32, #tpu.memory_space<vmem>>, vector<1x32xf32>
    %7 = vector.broadcast %6 : vector<1x32xf32> to vector<256x32xf32>
    %8 = arith.addf %5, %7 : vector<256x32xf32>
    %cst_7 = arith.constant 0.000000e+00 : f32
    %9 = vector.broadcast %cst_7 : f32 to vector<256x32xf32>
    %10 = arith.subf %9, %8 : vector<256x32xf32>
    %11 = math.exp %10 : vector<256x32xf32>
    %cst_8 = arith.constant 1.000000e+00 : f32
    %12 = vector.broadcast %cst_8 : f32 to vector<256x32xf32>
    %13 = arith.addf %12, %11 : vector<256x32xf32>
    %14 = tpu.reciprocal %13 {approx = true} : vector<256x32xf32> -> vector<256x32xf32>
    %15 = arith.mulf %8, %14 : vector<256x32xf32>
    %16 = arith.truncf %15 : vector<256x32xf32> to vector<256x32xbf16>
    %c0_9 = arith.constant 0 : index
    %c0_10 = arith.constant 0 : index
    %17 = vector.load %arg5[%c0_9, %c0_10] : memref<256x32xbf16, #tpu.memory_space<vmem>>, vector<256x32xbf16>
    tpu.vector_store %arg5[%c0_9, %c0_10], %16 {strides = array<i32>} : memref<256x32xbf16, #tpu.memory_space<vmem>>, vector<256x32xbf16>,
    return
  }
  func.func @transform_0(%arg0: i32) -> (i32, i32) {
    %c0_i32 = arith.constant 0 : i32
    %c0_i32_0 = arith.constant 0 : i32
    return %arg0, %c0_i32 : i32, i32
  }
  func.func @transform_1(%arg0: i32) -> (i32, i32) {
    %c0_i32 = arith.constant 0 : i32
    %c0_i32_0 = arith.constant 0 : i32
    %c0_i32_1 = arith.constant 0 : i32
    return %c0_i32, %c0_i32_0 : i32, i32
  }
  func.func @transform_2(%arg0: i32) -> (i32, i32) {
    %c0_i32 = arith.constant 0 : i32
    %c0_i32_0 = arith.constant 0 : i32
    %c0_i32_1 = arith.constant 0 : i32
    return %c0_i32, %c0_i32_0 : i32, i32
  }
  func.func @transform_3(%arg0: i32) -> (i32, i32) {
    %c0_i32 = arith.constant 0 : i32
    %c0_i32_0 = arith.constant 0 : i32
    %c0_i32_1 = arith.constant 0 : i32
    return %c0_i32, %c0_i32_0 : i32, i32
  }
  func.func @transform_4(%arg0: i32) -> (i32, i32) {
    %c0_i32 = arith.constant 0 : i32
    %c0_i32_0 = arith.constant 0 : i32
    return %arg0, %c0_i32 : i32, i32
  }
}

module attributes {stable_mosaic.version = 11 : i64} {
  func.func @_conv3x3_bn_act_kernel(%arg0: i32, %arg1: i32, %arg2: memref<1x18x288xbf16, #tpu.memory_space<vmem>>, %arg3: memref<3x288x128xbf16, #tpu.memory_space<vmem>>, %arg4: memref<1x128xf32, #tpu.memory_space<vmem>>, %arg5: memref<1x128xf32, #tpu.memory_space<vmem>>, %arg6: memref<1x16x128xbf16, #tpu.memory_space<vmem>>) attributes {dimension_semantics = [#tpu.dimension_semantics<parallel>, #tpu.dimension_semantics<parallel>], iteration_bounds = array<i64: 2, 2>, scalar_prefetch = 0 : i64, scratch_operands = 0 : i64, tpu.core_type = #tpu.core_type<tc>, window_params = [{transform_indices = @transform_0, window_bounds = array<i64: 1, 18, 288>}, {transform_indices = @transform_1, window_bounds = array<i64: 3, 288, 128>}, {transform_indices = @transform_2, window_bounds = array<i64: 1, 128>}, {transform_indices = @transform_3, window_bounds = array<i64: 1, 128>}, {transform_indices = @transform_4, window_bounds = array<i64: 1, 16, 128>}]} {
    %cst = arith.constant 0.000000e+00 : f32
    %0 = vector.broadcast %cst : f32 to vector<16x128xf32>
    %c0 = arith.constant 0 : index
    %c0_0 = arith.constant 0 : index
    %c0_1 = arith.constant 0 : index
    %1 = vector.load %arg2[%c0, %c0_0, %c0_1] : memref<1x18x288xbf16, #tpu.memory_space<vmem>>, vector<1x16x288xbf16>
    %2 = vector.shape_cast %1 : vector<1x16x288xbf16> to vector<16x288xbf16>
    %c0_2 = arith.constant 0 : index
    %c0_3 = arith.constant 0 : index
    %c0_4 = arith.constant 0 : index
    %3 = vector.load %arg3[%c0_2, %c0_3, %c0_4] : memref<3x288x128xbf16, #tpu.memory_space<vmem>>, vector<1x288x128xbf16>
    %4 = vector.shape_cast %3 : vector<1x288x128xbf16> to vector<288x128xbf16>
    %cst_5 = arith.constant dense<0.000000e+00> : vector<16x128xf32>
    %5 = tpu.matmul %2, %4, %cst_5 {dimension_numbers = #tpu.dot_dimension_numbers<[1], [0], [0], [1], [0, 0, 1, 1], [], []>} : vector<16x288xbf16>, vector<288x128xbf16>, vector<16x128xf32> -> vector<16x128xf32>
    %6 = arith.addf %0, %5 : vector<16x128xf32>
    %c0_6 = arith.constant 0 : index
    %c1 = arith.constant 1 : index
    %c0_7 = arith.constant 0 : index
    %7 = vector.load %arg2[%c0_6, %c1, %c0_7] : memref<1x18x288xbf16, #tpu.memory_space<vmem>>, vector<1x16x288xbf16>
    %8 = vector.shape_cast %7 : vector<1x16x288xbf16> to vector<16x288xbf16>
    %c1_8 = arith.constant 1 : index
    %c0_9 = arith.constant 0 : index
    %c0_10 = arith.constant 0 : index
    %9 = vector.load %arg3[%c1_8, %c0_9, %c0_10] : memref<3x288x128xbf16, #tpu.memory_space<vmem>>, vector<1x288x128xbf16>
    %10 = vector.shape_cast %9 : vector<1x288x128xbf16> to vector<288x128xbf16>
    %cst_11 = arith.constant dense<0.000000e+00> : vector<16x128xf32>
    %11 = tpu.matmul %8, %10, %cst_11 {dimension_numbers = #tpu.dot_dimension_numbers<[1], [0], [0], [1], [0, 0, 1, 1], [], []>} : vector<16x288xbf16>, vector<288x128xbf16>, vector<16x128xf32> -> vector<16x128xf32>
    %12 = arith.addf %6, %11 : vector<16x128xf32>
    %c0_12 = arith.constant 0 : index
    %c2 = arith.constant 2 : index
    %c0_13 = arith.constant 0 : index
    %13 = vector.load %arg2[%c0_12, %c2, %c0_13] : memref<1x18x288xbf16, #tpu.memory_space<vmem>>, vector<1x16x288xbf16>
    %14 = vector.shape_cast %13 : vector<1x16x288xbf16> to vector<16x288xbf16>
    %c2_14 = arith.constant 2 : index
    %c0_15 = arith.constant 0 : index
    %c0_16 = arith.constant 0 : index
    %15 = vector.load %arg3[%c2_14, %c0_15, %c0_16] : memref<3x288x128xbf16, #tpu.memory_space<vmem>>, vector<1x288x128xbf16>
    %16 = vector.shape_cast %15 : vector<1x288x128xbf16> to vector<288x128xbf16>
    %cst_17 = arith.constant dense<0.000000e+00> : vector<16x128xf32>
    %17 = tpu.matmul %14, %16, %cst_17 {dimension_numbers = #tpu.dot_dimension_numbers<[1], [0], [0], [1], [0, 0, 1, 1], [], []>} : vector<16x288xbf16>, vector<288x128xbf16>, vector<16x128xf32> -> vector<16x128xf32>
    %18 = arith.addf %12, %17 : vector<16x128xf32>
    %c0_18 = arith.constant 0 : index
    %c0_19 = arith.constant 0 : index
    %19 = vector.load %arg4[%c0_18, %c0_19] : memref<1x128xf32, #tpu.memory_space<vmem>>, vector<1x128xf32>
    %20 = vector.broadcast %19 : vector<1x128xf32> to vector<16x128xf32>
    %21 = arith.mulf %18, %20 : vector<16x128xf32>
    %c0_20 = arith.constant 0 : index
    %c0_21 = arith.constant 0 : index
    %22 = vector.load %arg5[%c0_20, %c0_21] : memref<1x128xf32, #tpu.memory_space<vmem>>, vector<1x128xf32>
    %23 = vector.broadcast %22 : vector<1x128xf32> to vector<16x128xf32>
    %24 = arith.addf %21, %23 : vector<16x128xf32>
    %cst_22 = arith.constant 0.000000e+00 : f32
    %25 = vector.broadcast %cst_22 : f32 to vector<16x128xf32>
    %26 = arith.subf %25, %24 : vector<16x128xf32>
    %27 = math.exp %26 : vector<16x128xf32>
    %cst_23 = arith.constant 1.000000e+00 : f32
    %28 = vector.broadcast %cst_23 : f32 to vector<16x128xf32>
    %29 = arith.addf %28, %27 : vector<16x128xf32>
    %30 = tpu.reciprocal %29 {approx = true} : vector<16x128xf32> -> vector<16x128xf32>
    %31 = arith.mulf %24, %30 : vector<16x128xf32>
    %32 = arith.truncf %31 : vector<16x128xf32> to vector<16x128xbf16>
    %c0_24 = arith.constant 0 : index
    %c0_25 = arith.constant 0 : index
    %c0_26 = arith.constant 0 : index
    %33 = vector.load %arg6[%c0_24, %c0_25, %c0_26] : memref<1x16x128xbf16, #tpu.memory_space<vmem>>, vector<1x16x128xbf16>
    %34 = vector.shape_cast %33 : vector<1x16x128xbf16> to vector<16x128xbf16>
    %35 = vector.shape_cast %32 : vector<16x128xbf16> to vector<1x16x128xbf16>
    tpu.vector_store %arg6[%c0_24, %c0_25, %c0_26], %35 {strides = array<i32>} : memref<1x16x128xbf16, #tpu.memory_space<vmem>>, vector<1x16x128xbf16>,
    return
  }
  func.func @transform_0(%arg0: i32, %arg1: i32) -> (i32, i32, i32) {
    %c0_i32 = arith.constant 0 : i32
    %c0_i32_0 = arith.constant 0 : i32
    %c0_i32_1 = arith.constant 0 : i32
    return %arg0, %c0_i32, %c0_i32_0 : i32, i32, i32
  }
  func.func @transform_1(%arg0: i32, %arg1: i32) -> (i32, i32, i32) {
    %c0_i32 = arith.constant 0 : i32
    %c0_i32_0 = arith.constant 0 : i32
    %c0_i32_1 = arith.constant 0 : i32
    return %c0_i32, %c0_i32_0, %arg1 : i32, i32, i32
  }
  func.func @transform_2(%arg0: i32, %arg1: i32) -> (i32, i32) {
    %c0_i32 = arith.constant 0 : i32
    %c0_i32_0 = arith.constant 0 : i32
    return %c0_i32, %arg1 : i32, i32
  }
  func.func @transform_3(%arg0: i32, %arg1: i32) -> (i32, i32) {
    %c0_i32 = arith.constant 0 : i32
    %c0_i32_0 = arith.constant 0 : i32
    return %c0_i32, %arg1 : i32, i32
  }
  func.func @transform_4(%arg0: i32, %arg1: i32) -> (i32, i32, i32) {
    %c0_i32 = arith.constant 0 : i32
    %c0_i32_0 = arith.constant 0 : i32
    return %arg0, %c0_i32, %arg1 : i32, i32, i32
  }
}

module attributes {stable_mosaic.version = 11 : i64} {
  func.func @_saconv_kernel(%arg0: i32, %arg1: memref<1x22x352xbf16, #tpu.memory_space<vmem>>, %arg2: memref<1x16x256xbf16, #tpu.memory_space<vmem>>, %arg3: memref<3x352x256xbf16, #tpu.memory_space<vmem>>, %arg4: memref<3x352x256xbf16, #tpu.memory_space<vmem>>, %arg5: memref<256x16xf32, #tpu.memory_space<vmem>>, %arg6: memref<16x256xf32, #tpu.memory_space<vmem>>, %arg7: memref<1x256xf32, #tpu.memory_space<vmem>>, %arg8: memref<1x256xf32, #tpu.memory_space<vmem>>, %arg9: memref<1x256xf32, #tpu.memory_space<vmem>>, %arg10: memref<1x16x256xbf16, #tpu.memory_space<vmem>>) attributes {dimension_semantics = [#tpu.dimension_semantics<parallel>], iteration_bounds = array<i64: 2>, scalar_prefetch = 0 : i64, scratch_operands = 0 : i64, tpu.core_type = #tpu.core_type<tc>, window_params = [{transform_indices = @transform_0, window_bounds = array<i64: 1, 22, 352>}, {transform_indices = @transform_1, window_bounds = array<i64: 1, 16, 256>}, {pipeline_mode = #tpu.pipeline_mode<synchronous>, transform_indices = @transform_2, window_bounds = array<i64: 3, 352, 256>}, {pipeline_mode = #tpu.pipeline_mode<synchronous>, transform_indices = @transform_3, window_bounds = array<i64: 3, 352, 256>}, {pipeline_mode = #tpu.pipeline_mode<synchronous>, transform_indices = @transform_4, window_bounds = array<i64: 256, 16>}, {pipeline_mode = #tpu.pipeline_mode<synchronous>, transform_indices = @transform_5, window_bounds = array<i64: 16, 256>}, {pipeline_mode = #tpu.pipeline_mode<synchronous>, transform_indices = @transform_6, window_bounds = array<i64: 1, 256>}, {pipeline_mode = #tpu.pipeline_mode<synchronous>, transform_indices = @transform_7, window_bounds = array<i64: 1, 256>}, {pipeline_mode = #tpu.pipeline_mode<synchronous>, transform_indices = @transform_8, window_bounds = array<i64: 1, 256>}, {transform_indices = @transform_9, window_bounds = array<i64: 1, 16, 256>}]} {
    %cst = arith.constant 0.000000e+00 : f32
    %0 = vector.broadcast %cst : f32 to vector<16x256xf32>
    %cst_0 = arith.constant 0.000000e+00 : f32
    %1 = vector.broadcast %cst_0 : f32 to vector<16x256xf32>
    %c0 = arith.constant 0 : index
    %c2 = arith.constant 2 : index
    %c0_1 = arith.constant 0 : index
    %2 = vector.load %arg1[%c0, %c2, %c0_1] : memref<1x22x352xbf16, #tpu.memory_space<vmem>>, vector<1x16x352xbf16>
    %3 = vector.shape_cast %2 : vector<1x16x352xbf16> to vector<16x352xbf16>
    %c0_2 = arith.constant 0 : index
    %c0_3 = arith.constant 0 : index
    %c0_4 = arith.constant 0 : index
    %4 = vector.load %arg3[%c0_2, %c0_3, %c0_4] : memref<3x352x256xbf16, #tpu.memory_space<vmem>>, vector<1x352x256xbf16>
    %5 = vector.shape_cast %4 : vector<1x352x256xbf16> to vector<352x256xbf16>
    %cst_5 = arith.constant dense<0.000000e+00> : vector<16x256xf32>
    %6 = tpu.matmul %3, %5, %cst_5 {dimension_numbers = #tpu.dot_dimension_numbers<[1], [0], [0], [1], [0, 0, 1, 1], [], []>} : vector<16x352xbf16>, vector<352x256xbf16>, vector<16x256xf32> -> vector<16x256xf32>
    %7 = arith.addf %0, %6 : vector<16x256xf32>
    %c0_6 = arith.constant 0 : index
    %c0_7 = arith.constant 0 : index
    %c0_8 = arith.constant 0 : index
    %8 = vector.load %arg1[%c0_6, %c0_7, %c0_8] : memref<1x22x352xbf16, #tpu.memory_space<vmem>>, vector<1x16x352xbf16>
    %9 = vector.shape_cast %8 : vector<1x16x352xbf16> to vector<16x352xbf16>
    %c0_9 = arith.constant 0 : index
    %c0_10 = arith.constant 0 : index
    %c0_11 = arith.constant 0 : index
    %10 = vector.load %arg4[%c0_9, %c0_10, %c0_11] : memref<3x352x256xbf16, #tpu.memory_space<vmem>>, vector<1x352x256xbf16>
    %11 = vector.shape_cast %10 : vector<1x352x256xbf16> to vector<352x256xbf16>
    %cst_12 = arith.constant dense<0.000000e+00> : vector<16x256xf32>
    %12 = tpu.matmul %9, %11, %cst_12 {dimension_numbers = #tpu.dot_dimension_numbers<[1], [0], [0], [1], [0, 0, 1, 1], [], []>} : vector<16x352xbf16>, vector<352x256xbf16>, vector<16x256xf32> -> vector<16x256xf32>
    %13 = arith.addf %1, %12 : vector<16x256xf32>
    %c0_13 = arith.constant 0 : index
    %c3 = arith.constant 3 : index
    %c0_14 = arith.constant 0 : index
    %14 = vector.load %arg1[%c0_13, %c3, %c0_14] : memref<1x22x352xbf16, #tpu.memory_space<vmem>>, vector<1x16x352xbf16>
    %15 = vector.shape_cast %14 : vector<1x16x352xbf16> to vector<16x352xbf16>
    %c1 = arith.constant 1 : index
    %c0_15 = arith.constant 0 : index
    %c0_16 = arith.constant 0 : index
    %16 = vector.load %arg3[%c1, %c0_15, %c0_16] : memref<3x352x256xbf16, #tpu.memory_space<vmem>>, vector<1x352x256xbf16>
    %17 = vector.shape_cast %16 : vector<1x352x256xbf16> to vector<352x256xbf16>
    %cst_17 = arith.constant dense<0.000000e+00> : vector<16x256xf32>
    %18 = tpu.matmul %15, %17, %cst_17 {dimension_numbers = #tpu.dot_dimension_numbers<[1], [0], [0], [1], [0, 0, 1, 1], [], []>} : vector<16x352xbf16>, vector<352x256xbf16>, vector<16x256xf32> -> vector<16x256xf32>
    %19 = arith.addf %7, %18 : vector<16x256xf32>
    %c0_18 = arith.constant 0 : index
    %c3_19 = arith.constant 3 : index
    %c0_20 = arith.constant 0 : index
    %20 = vector.load %arg1[%c0_18, %c3_19, %c0_20] : memref<1x22x352xbf16, #tpu.memory_space<vmem>>, vector<1x16x352xbf16>
    %21 = vector.shape_cast %20 : vector<1x16x352xbf16> to vector<16x352xbf16>
    %c1_21 = arith.constant 1 : index
    %c0_22 = arith.constant 0 : index
    %c0_23 = arith.constant 0 : index
    %22 = vector.load %arg4[%c1_21, %c0_22, %c0_23] : memref<3x352x256xbf16, #tpu.memory_space<vmem>>, vector<1x352x256xbf16>
    %23 = vector.shape_cast %22 : vector<1x352x256xbf16> to vector<352x256xbf16>
    %cst_24 = arith.constant dense<0.000000e+00> : vector<16x256xf32>
    %24 = tpu.matmul %21, %23, %cst_24 {dimension_numbers = #tpu.dot_dimension_numbers<[1], [0], [0], [1], [0, 0, 1, 1], [], []>} : vector<16x352xbf16>, vector<352x256xbf16>, vector<16x256xf32> -> vector<16x256xf32>
    %25 = arith.addf %13, %24 : vector<16x256xf32>
    %c0_25 = arith.constant 0 : index
    %c4 = arith.constant 4 : index
    %c0_26 = arith.constant 0 : index
    %26 = vector.load %arg1[%c0_25, %c4, %c0_26] : memref<1x22x352xbf16, #tpu.memory_space<vmem>>, vector<1x16x352xbf16>
    %27 = vector.shape_cast %26 : vector<1x16x352xbf16> to vector<16x352xbf16>
    %c2_27 = arith.constant 2 : index
    %c0_28 = arith.constant 0 : index
    %c0_29 = arith.constant 0 : index
    %28 = vector.load %arg3[%c2_27, %c0_28, %c0_29] : memref<3x352x256xbf16, #tpu.memory_space<vmem>>, vector<1x352x256xbf16>
    %29 = vector.shape_cast %28 : vector<1x352x256xbf16> to vector<352x256xbf16>
    %cst_30 = arith.constant dense<0.000000e+00> : vector<16x256xf32>
    %30 = tpu.matmul %27, %29, %cst_30 {dimension_numbers = #tpu.dot_dimension_numbers<[1], [0], [0], [1], [0, 0, 1, 1], [], []>} : vector<16x352xbf16>, vector<352x256xbf16>, vector<16x256xf32> -> vector<16x256xf32>
    %31 = arith.addf %19, %30 : vector<16x256xf32>
    %c0_31 = arith.constant 0 : index
    %c6 = arith.constant 6 : index
    %c0_32 = arith.constant 0 : index
    %32 = vector.load %arg1[%c0_31, %c6, %c0_32] : memref<1x22x352xbf16, #tpu.memory_space<vmem>>, vector<1x16x352xbf16>
    %33 = vector.shape_cast %32 : vector<1x16x352xbf16> to vector<16x352xbf16>
    %c2_33 = arith.constant 2 : index
    %c0_34 = arith.constant 0 : index
    %c0_35 = arith.constant 0 : index
    %34 = vector.load %arg4[%c2_33, %c0_34, %c0_35] : memref<3x352x256xbf16, #tpu.memory_space<vmem>>, vector<1x352x256xbf16>
    %35 = vector.shape_cast %34 : vector<1x352x256xbf16> to vector<352x256xbf16>
    %cst_36 = arith.constant dense<0.000000e+00> : vector<16x256xf32>
    %36 = tpu.matmul %33, %35, %cst_36 {dimension_numbers = #tpu.dot_dimension_numbers<[1], [0], [0], [1], [0, 0, 1, 1], [], []>} : vector<16x352xbf16>, vector<352x256xbf16>, vector<16x256xf32> -> vector<16x256xf32>
    %37 = arith.addf %25, %36 : vector<16x256xf32>
    %c0_37 = arith.constant 0 : index
    %c0_38 = arith.constant 0 : index
    %c0_39 = arith.constant 0 : index
    %38 = vector.load %arg2[%c0_37, %c0_38, %c0_39] : memref<1x16x256xbf16, #tpu.memory_space<vmem>>, vector<1x16x256xbf16>
    %39 = vector.shape_cast %38 : vector<1x16x256xbf16> to vector<16x256xbf16>
    %40 = arith.extf %39 : vector<16x256xbf16> to vector<16x256xf32>
    %41 = arith.mulf %40, %31 : vector<16x256xf32>
    %cst_40 = arith.constant 1.000000e+00 : f32
    %42 = vector.broadcast %cst_40 : f32 to vector<16x256xf32>
    %43 = arith.subf %42, %40 : vector<16x256xf32>
    %44 = arith.mulf %43, %37 : vector<16x256xf32>
    %45 = arith.addf %41, %44 : vector<16x256xf32>
    %c0_41 = arith.constant 0 : index
    %c0_42 = arith.constant 0 : index
    %46 = vector.load %arg5[%c0_41, %c0_42] : memref<256x16xf32, #tpu.memory_space<vmem>>, vector<256x16xf32>
    %cst_43 = arith.constant dense<0.000000e+00> : vector<16x16xf32>
    %47 = tpu.matmul %45, %46, %cst_43 {dimension_numbers = #tpu.dot_dimension_numbers<[1], [0], [0], [1], [0, 0, 1, 1], [], []>} : vector<16x256xf32>, vector<256x16xf32>, vector<16x16xf32> -> vector<16x16xf32>
    %c0_44 = arith.constant 0 : index
    %c0_45 = arith.constant 0 : index
    %48 = vector.load %arg6[%c0_44, %c0_45] : memref<16x256xf32, #tpu.memory_space<vmem>>, vector<16x256xf32>
    %cst_46 = arith.constant dense<0.000000e+00> : vector<16x256xf32>
    %49 = tpu.matmul %47, %48, %cst_46 {dimension_numbers = #tpu.dot_dimension_numbers<[1], [0], [0], [1], [0, 0, 1, 1], [], []>} : vector<16x16xf32>, vector<16x256xf32>, vector<16x256xf32> -> vector<16x256xf32>
    %cst_47 = arith.constant dense<0.000000e+00> : vector<256xf32>
    %50 = vector.multi_reduction <add>, %49, %cst_47 [0] : vector<16x256xf32> to vector<256xf32>
    %51 = vector.shape_cast %50 : vector<256xf32> to vector<1x256xf32>
    %c0_48 = arith.constant 0 : index
    %c0_49 = arith.constant 0 : index
    %52 = vector.load %arg7[%c0_48, %c0_49] : memref<1x256xf32, #tpu.memory_space<vmem>>, vector<1x256xf32>
    %53 = arith.addf %51, %52 : vector<1x256xf32>
    %54 = vector.broadcast %53 : vector<1x256xf32> to vector<16x256xf32>
    %55 = arith.addf %45, %54 : vector<16x256xf32>
    %c0_50 = arith.constant 0 : index
    %c0_51 = arith.constant 0 : index
    %56 = vector.load %arg8[%c0_50, %c0_51] : memref<1x256xf32, #tpu.memory_space<vmem>>, vector<1x256xf32>
    %57 = vector.broadcast %56 : vector<1x256xf32> to vector<16x256xf32>
    %58 = arith.mulf %55, %57 : vector<16x256xf32>
    %c0_52 = arith.constant 0 : index
    %c0_53 = arith.constant 0 : index
    %59 = vector.load %arg9[%c0_52, %c0_53] : memref<1x256xf32, #tpu.memory_space<vmem>>, vector<1x256xf32>
    %60 = vector.broadcast %59 : vector<1x256xf32> to vector<16x256xf32>
    %61 = arith.addf %58, %60 : vector<16x256xf32>
    %cst_54 = arith.constant 0.000000e+00 : f32
    %62 = vector.broadcast %cst_54 : f32 to vector<16x256xf32>
    %63 = arith.subf %62, %61 : vector<16x256xf32>
    %64 = math.exp %63 : vector<16x256xf32>
    %cst_55 = arith.constant 1.000000e+00 : f32
    %65 = vector.broadcast %cst_55 : f32 to vector<16x256xf32>
    %66 = arith.addf %65, %64 : vector<16x256xf32>
    %67 = tpu.reciprocal %66 {approx = true} : vector<16x256xf32> -> vector<16x256xf32>
    %68 = arith.mulf %61, %67 : vector<16x256xf32>
    %69 = arith.truncf %68 : vector<16x256xf32> to vector<16x256xbf16>
    %c0_56 = arith.constant 0 : index
    %c0_57 = arith.constant 0 : index
    %c0_58 = arith.constant 0 : index
    %70 = vector.load %arg10[%c0_56, %c0_57, %c0_58] : memref<1x16x256xbf16, #tpu.memory_space<vmem>>, vector<1x16x256xbf16>
    %71 = vector.shape_cast %70 : vector<1x16x256xbf16> to vector<16x256xbf16>
    %72 = vector.shape_cast %69 : vector<16x256xbf16> to vector<1x16x256xbf16>
    tpu.vector_store %arg10[%c0_56, %c0_57, %c0_58], %72 {strides = array<i32>} : memref<1x16x256xbf16, #tpu.memory_space<vmem>>, vector<1x16x256xbf16>,
    return
  }
  func.func @transform_0(%arg0: i32) -> (i32, i32, i32) {
    %c0_i32 = arith.constant 0 : i32
    %c0_i32_0 = arith.constant 0 : i32
    %c0_i32_1 = arith.constant 0 : i32
    return %arg0, %c0_i32, %c0_i32_0 : i32, i32, i32
  }
  func.func @transform_1(%arg0: i32) -> (i32, i32, i32) {
    %c0_i32 = arith.constant 0 : i32
    %c0_i32_0 = arith.constant 0 : i32
    %c0_i32_1 = arith.constant 0 : i32
    return %arg0, %c0_i32, %c0_i32_0 : i32, i32, i32
  }
  func.func @transform_2(%arg0: i32) -> (i32, i32, i32) {
    %c0_i32 = arith.constant 0 : i32
    %c0_i32_0 = arith.constant 0 : i32
    %c0_i32_1 = arith.constant 0 : i32
    %c0_i32_2 = arith.constant 0 : i32
    return %c0_i32, %c0_i32_0, %c0_i32_1 : i32, i32, i32
  }
  func.func @transform_3(%arg0: i32) -> (i32, i32, i32) {
    %c0_i32 = arith.constant 0 : i32
    %c0_i32_0 = arith.constant 0 : i32
    %c0_i32_1 = arith.constant 0 : i32
    %c0_i32_2 = arith.constant 0 : i32
    return %c0_i32, %c0_i32_0, %c0_i32_1 : i32, i32, i32
  }
  func.func @transform_4(%arg0: i32) -> (i32, i32) {
    %c0_i32 = arith.constant 0 : i32
    %c0_i32_0 = arith.constant 0 : i32
    %c0_i32_1 = arith.constant 0 : i32
    return %c0_i32, %c0_i32_0 : i32, i32
  }
  func.func @transform_5(%arg0: i32) -> (i32, i32) {
    %c0_i32 = arith.constant 0 : i32
    %c0_i32_0 = arith.constant 0 : i32
    %c0_i32_1 = arith.constant 0 : i32
    return %c0_i32, %c0_i32_0 : i32, i32
  }
  func.func @transform_6(%arg0: i32) -> (i32, i32) {
    %c0_i32 = arith.constant 0 : i32
    %c0_i32_0 = arith.constant 0 : i32
    %c0_i32_1 = arith.constant 0 : i32
    return %c0_i32, %c0_i32_0 : i32, i32
  }
  func.func @transform_7(%arg0: i32) -> (i32, i32) {
    %c0_i32 = arith.constant 0 : i32
    %c0_i32_0 = arith.constant 0 : i32
    %c0_i32_1 = arith.constant 0 : i32
    return %c0_i32, %c0_i32_0 : i32, i32
  }
  func.func @transform_8(%arg0: i32) -> (i32, i32) {
    %c0_i32 = arith.constant 0 : i32
    %c0_i32_0 = arith.constant 0 : i32
    %c0_i32_1 = arith.constant 0 : i32
    return %c0_i32, %c0_i32_0 : i32, i32
  }
  func.func @transform_9(%arg0: i32) -> (i32, i32, i32) {
    %c0_i32 = arith.constant 0 : i32
    %c0_i32_0 = arith.constant 0 : i32
    %c0_i32_1 = arith.constant 0 : i32
    return %arg0, %c0_i32, %c0_i32_0 : i32, i32, i32
  }
}

module attributes {stable_mosaic.version = 11 : i64} {
  func.func @_matmul_bn_act_kernel(%arg0: i32, %arg1: memref<256x48xbf16, #tpu.memory_space<vmem>>, %arg2: memref<48x32xbf16, #tpu.memory_space<vmem>>, %arg3: memref<1x32xf32, #tpu.memory_space<vmem>>, %arg4: memref<1x32xf32, #tpu.memory_space<vmem>>, %arg5: memref<256x32xf32, #tpu.memory_space<vmem>>) attributes {dimension_semantics = [#tpu.dimension_semantics<parallel>], iteration_bounds = array<i64: 2>, scalar_prefetch = 0 : i64, scratch_operands = 0 : i64, tpu.core_type = #tpu.core_type<tc>, window_params = [{transform_indices = @transform_0, window_bounds = array<i64: 256, 48>}, {pipeline_mode = #tpu.pipeline_mode<synchronous>, transform_indices = @transform_1, window_bounds = array<i64: 48, 32>}, {pipeline_mode = #tpu.pipeline_mode<synchronous>, transform_indices = @transform_2, window_bounds = array<i64: 1, 32>}, {pipeline_mode = #tpu.pipeline_mode<synchronous>, transform_indices = @transform_3, window_bounds = array<i64: 1, 32>}, {transform_indices = @transform_4, window_bounds = array<i64: 256, 32>}]} {
    %c0 = arith.constant 0 : index
    %c0_0 = arith.constant 0 : index
    %0 = vector.load %arg1[%c0, %c0_0] : memref<256x48xbf16, #tpu.memory_space<vmem>>, vector<256x48xbf16>
    %c0_1 = arith.constant 0 : index
    %c0_2 = arith.constant 0 : index
    %1 = vector.load %arg2[%c0_1, %c0_2] : memref<48x32xbf16, #tpu.memory_space<vmem>>, vector<48x32xbf16>
    %cst = arith.constant dense<0.000000e+00> : vector<256x32xf32>
    %2 = tpu.matmul %0, %1, %cst {dimension_numbers = #tpu.dot_dimension_numbers<[1], [0], [0], [1], [0, 0, 1, 1], [], []>} : vector<256x48xbf16>, vector<48x32xbf16>, vector<256x32xf32> -> vector<256x32xf32>
    %c0_3 = arith.constant 0 : index
    %c0_4 = arith.constant 0 : index
    %3 = vector.load %arg3[%c0_3, %c0_4] : memref<1x32xf32, #tpu.memory_space<vmem>>, vector<1x32xf32>
    %4 = vector.broadcast %3 : vector<1x32xf32> to vector<256x32xf32>
    %5 = arith.mulf %2, %4 : vector<256x32xf32>
    %c0_5 = arith.constant 0 : index
    %c0_6 = arith.constant 0 : index
    %6 = vector.load %arg4[%c0_5, %c0_6] : memref<1x32xf32, #tpu.memory_space<vmem>>, vector<1x32xf32>
    %7 = vector.broadcast %6 : vector<1x32xf32> to vector<256x32xf32>
    %8 = arith.addf %5, %7 : vector<256x32xf32>
    %cst_7 = arith.constant 0.000000e+00 : f32
    %9 = vector.broadcast %cst_7 : f32 to vector<256x32xf32>
    %10 = arith.subf %9, %8 : vector<256x32xf32>
    %11 = math.exp %10 : vector<256x32xf32>
    %cst_8 = arith.constant 1.000000e+00 : f32
    %12 = vector.broadcast %cst_8 : f32 to vector<256x32xf32>
    %13 = arith.addf %12, %11 : vector<256x32xf32>
    %14 = tpu.reciprocal %13 {approx = true} : vector<256x32xf32> -> vector<256x32xf32>
    %15 = arith.mulf %8, %14 : vector<256x32xf32>
    %c0_9 = arith.constant 0 : index
    %c0_10 = arith.constant 0 : index
    %16 = vector.load %arg5[%c0_9, %c0_10] : memref<256x32xf32, #tpu.memory_space<vmem>>, vector<256x32xf32>
    tpu.vector_store %arg5[%c0_9, %c0_10], %15 {strides = array<i32>} : memref<256x32xf32, #tpu.memory_space<vmem>>, vector<256x32xf32>,
    return
  }
  func.func @transform_0(%arg0: i32) -> (i32, i32) {
    %c0_i32 = arith.constant 0 : i32
    %c0_i32_0 = arith.constant 0 : i32
    return %arg0, %c0_i32 : i32, i32
  }
  func.func @transform_1(%arg0: i32) -> (i32, i32) {
    %c0_i32 = arith.constant 0 : i32
    %c0_i32_0 = arith.constant 0 : i32
    %c0_i32_1 = arith.constant 0 : i32
    return %c0_i32, %c0_i32_0 : i32, i32
  }
  func.func @transform_2(%arg0: i32) -> (i32, i32) {
    %c0_i32 = arith.constant 0 : i32
    %c0_i32_0 = arith.constant 0 : i32
    %c0_i32_1 = arith.constant 0 : i32
    return %c0_i32, %c0_i32_0 : i32, i32
  }
  func.func @transform_3(%arg0: i32) -> (i32, i32) {
    %c0_i32 = arith.constant 0 : i32
    %c0_i32_0 = arith.constant 0 : i32
    %c0_i32_1 = arith.constant 0 : i32
    return %c0_i32, %c0_i32_0 : i32, i32
  }
  func.func @transform_4(%arg0: i32) -> (i32, i32) {
    %c0_i32 = arith.constant 0 : i32
    %c0_i32_0 = arith.constant 0 : i32
    return %arg0, %c0_i32 : i32, i32
  }
}

</mosaic_0001>

<llo_original>
// kernel: _lambda_.4
$region0: #{_lambda_.4}
  #allocation0 [shape = 'u32[]', space=smem, size = 0x4, offset = 0x4, fixed_abs, tag = 'smem constant byte address 0x4 - core index']
  #allocation1 [shape = 'u32[72,128]{1,0:T(1,128)}', space=vmem, size = 0x9000, scoped, tag = 'internal scratch']
  %s0 = inlined_call_operand.vmem [shape: bf16[512,32], index: 0, kind: input, shape index: {}]
  %s1 = inlined_call_operand.vmem [shape: bf16[32,32], index: 1, kind: input, shape index: {}]
  %s2 = inlined_call_operand.vmem [shape: f32[1,32], index: 2, kind: input, shape index: {}]
  %s3 = inlined_call_operand.vmem [shape: f32[1,32], index: 3, kind: input, shape index: {}]
  %s4 = inlined_call_operand.vmem [shape: bf16[512,32], index: 4, kind: output, shape index: {}]
  %s5 = sld [smem:[#allocation0]]
  $region49: #{_lambda_.4} parent=0
    _
  %s7 = ssub.s32 1, %s5
  %s8 = scalar_select 0, %s7, %s5
  loop: start=0, step=1, limit=4
  $region2: #{_lambda_.4} parent=0 // loop_pre_header
    _
  $region3: #{_lambda_.4} parent=0 // loop_header
    %s10 = sphi 0, %s14
    %p11 = scmp.ge.s32.totalorder %s10, 4
    %s20 = sphi 0, %s22
    %s23 = sphi 0, %s20
    %s24 = sphi 0, %s23
    %s40 = sphi 0, %s24
    %s44 = sphi 0, %s44
    %s46 = sphi 0, %s44
    %s47 = sphi 0, %s46
    %s61 = sphi 0, %s47
    %s65 = sphi 0, %s65
    %s67 = sphi 0, %s65
    %s68 = sphi 0, %s67
    %s82 = sphi 0, %s68
    %s86 = sphi 0, %s86
    %s88 = sphi 0, %s86
    %s89 = sphi 0, %s88
    %s103 = sphi 0, %s89
    %s109 = sphi 0, %s111
    %s112 = sphi 0, %s109
    %s113 = sphi 0, %s112
    %s129 = sphi 0, %s113
  $region4: #{_lambda_.4} parent=0 // loop_header_branch
    %13 = sbr.rel (%p11) target = $region8
  $region5: #{_lambda_.4} parent=0 // loop_body
    %s15 = ssub.s32 %s10, 1
    %s16 = ssub.s32 %s10, 2
    %s17 = sadd.s32 %s10, 1
    %s18 = ssub.s32 %s10, %s17
    %p19 = scmp.eq.s32.totalorder %s18, 0
    %s21 = sadd.s32 %s20, 1
    %s22 = scalar_select %p19, %s20, %s21
    %p25 = pneg %p19
    %p26 = scmp.eq.s32.totalorder %s10, 1
    %p27 = por %p25, %p26
    %p28 = scmp.ne.s32.totalorder %s20, %s23
    %p29 = scmp.eq.s32.totalorder %s10, 0
    %p30 = por %p28, %p29
    %p31 = scmp.ne.s32.totalorder %s20, %s23
    %p32 = scmp.eq.s32.totalorder %s15, 1
    %p33 = por %p31, %p32
    %p34 = scmp.ne.s32.totalorder %s23, %s24
    %p35 = scmp.eq.s32.totalorder %s15, 0
    %p36 = por %p34, %p35
    %p37 = scmp.ne.s32.totalorder %s23, %s24
    %p38 = scmp.eq.s32.totalorder %s16, 1
    %p39 = por %p37, %p38
    %p41 = scmp.ne.s32.totalorder %s24, %s40
    %p42 = scmp.eq.s32.totalorder %s16, 0
    %p43 = por %p41, %p42
    %s45 = sadd.s32 %s44, 1
    %p48 = scmp.eq.s32.totalorder %s10, 1
    %p49 = scmp.ne.s32.totalorder %s44, %s46
    %p50 = scmp.eq.s32.totalorder %s10, 0
    %p51 = por %p49, %p50
    %p52 = scmp.ne.s32.totalorder %s44, %s46
    %p53 = scmp.eq.s32.totalorder %s15, 1
    %p54 = por %p52, %p53
    %p55 = scmp.ne.s32.totalorder %s46, %s47
    %p56 = scmp.eq.s32.totalorder %s15, 0
    %p57 = por %p55, %p56
    %p58 = scmp.ne.s32.totalorder %s46, %s47
    %p59 = scmp.eq.s32.totalorder %s16, 1
    %p60 = por %p58, %p59
    %p62 = scmp.ne.s32.totalorder %s47, %s61
    %p63 = scmp.eq.s32.totalorder %s16, 0
    %p64 = por %p62, %p63
    %s66 = sadd.s32 %s65, 1
    %p69 = scmp.eq.s32.totalorder %s10, 1
    %p70 = scmp.ne.s32.totalorder %s65, %s67
    %p71 = scmp.eq.s32.totalorder %s10, 0
    %p72 = por %p70, %p71
    %p73 = scmp.ne.s32.totalorder %s65, %s67
    %p74 = scmp.eq.s32.totalorder %s15, 1
    %p75 = por %p73, %p74
    %p76 = scmp.ne.s32.totalorder %s67, %s68
    %p77 = scmp.eq.s32.totalorder %s15, 0
    %p78 = por %p76, %p77
    %p79 = scmp.ne.s32.totalorder %s67, %s68
    %p80 = scmp.eq.s32.totalorder %s16, 1
    %p81 = por %p79, %p80
    %p83 = scmp.ne.s32.totalorder %s68, %s82
    %p84 = scmp.eq.s32.totalorder %s16, 0
    %p85 = por %p83, %p84
    %s87 = sadd.s32 %s86, 1
    %p90 = scmp.eq.s32.totalorder %s10, 1
    %p91 = scmp.ne.s32.totalorder %s86, %s88
    %p92 = scmp.eq.s32.totalorder %s10, 0
    %p93 = por %p91, %p92
    %p94 = scmp.ne.s32.totalorder %s86, %s88
    %p95 = scmp.eq.s32.totalorder %s15, 1
    %p96 = por %p94, %p95
    %p97 = scmp.ne.s32.totalorder %s88, %s89
    %p98 = scmp.eq.s32.totalorder %s15, 0
    %p99 = por %p97, %p98
    %p100 = scmp.ne.s32.totalorder %s88, %s89
    %p101 = scmp.eq.s32.totalorder %s16, 1
    %p102 = por %p100, %p101
    %p104 = scmp.ne.s32.totalorder %s89, %s103
    %p105 = scmp.eq.s32.totalorder %s16, 0
    %p106 = por %p104, %p105
    %s107 = ssub.s32 %s10, %s17
    %p108 = scmp.eq.s32.totalorder %s107, 0
    %s110 = sadd.s32 %s109, 1
    %s111 = scalar_select %p108, %s109, %s110
    %p114 = pneg %p108
    %p115 = scmp.eq.s32.totalorder %s10, 1
    %p116 = por %p114, %p115
    %p117 = scmp.ne.s32.totalorder %s109, %s112
    %p118 = scmp.eq.s32.totalorder %s10, 0
    %p119 = por %p117, %p118
    %p120 = scmp.ne.s32.totalorder %s109, %s112
    %p121 = scmp.eq.s32.totalorder %s15, 1
    %p122 = por %p120, %p121
    %p123 = scmp.ne.s32.totalorder %s112, %s113
    %p124 = scmp.eq.s32.totalorder %s15, 0
    %p125 = por %p123, %p124
    %p126 = scmp.ne.s32.totalorder %s112, %s113
    %p127 = scmp.eq.s32.totalorder %s16, 1
    %p128 = por %p126, %p127
    %p130 = scmp.ne.s32.totalorder %s113, %s129
    %p131 = scmp.eq.s32.totalorder %s16, 0
    %p132 = por %p130, %p131
    %p133 = scmp.le.s32.totalorder 1, %s10
    %p134 = scmp.lt.s32.totalorder %s10, 3
    %p135 = pnand %p133, %p134
    %p136 = pneg %p135
    // Predicated region
    $region9: #{_lambda_.4} parent=5 // pred_check
      _
    $region10: #{_lambda_.4} parent=5 // pred_check_branch
      %138 = sbr.rel (%p135) target = $region12
    $region11: #{_lambda_.4} parent=5 // pred_region
      %s139 = ssub.s32 %s10, 1
      // Predicated region
      $region13: #{_lambda_.4} parent=11 // pred_check
        %p140 = pneg %p57
      $region14: #{_lambda_.4} parent=11 // pred_check_branch
        %142 = sbr.rel (%p140) target = $region16
      $region15: #{_lambda_.4} parent=11 // pred_region
        _
      $region16: #{_lambda_.4} parent=11 // pred_fallthru
        _
      // Predicated region
      $region17: #{_lambda_.4} parent=11 // pred_check
        %p143 = pneg %p78
      $region18: #{_lambda_.4} parent=11 // pred_check_branch
        %145 = sbr.rel (%p143) target = $region20
      $region19: #{_lambda_.4} parent=11 // pred_region
        _
      $region20: #{_lambda_.4} parent=11 // pred_fallthru
        _
      // Predicated region
      $region21: #{_lambda_.4} parent=11 // pred_check
        %p146 = pneg %p99
      $region22: #{_lambda_.4} parent=11 // pred_check_branch
        %148 = sbr.rel (%p146) target = $region24
      $region23: #{_lambda_.4} parent=11 // pred_region
        _
      $region24: #{_lambda_.4} parent=11 // pred_fallthru
        _
    $region12: #{_lambda_.4} parent=5 // pred_fallthru
      _
    %p149 = scmp.lt.s32.totalorder %s10, 2
    // Predicated region
    $region25: #{_lambda_.4} parent=5 // pred_check
      %p150 = pneg %p149
    $region26: #{_lambda_.4} parent=5 // pred_check_branch
      %152 = sbr.rel (%p150) target = $region28
    $region27: #{_lambda_.4} parent=5 // pred_region
      // Predicated region
      $region29: #{_lambda_.4} parent=27 // pred_check
        %p153 = pneg %p30
      $region30: #{_lambda_.4} parent=27 // pred_check_branch
        %155 = sbr.rel (%p153) target = $region32
      $region31: #{_lambda_.4} parent=27 // pred_region
        %s156 = smul.u32 32, %s10
        %p157 = scmp.lt.s32.totalorder %s156, 63
        %s158 = scalar_select %p157, %s156, 63
        %s159 = smul.addr %s158, 4
        %s160 = scalar_lea.vmem %s0, %s159
        %s161 = smul.u32 32, %s10
      $region32: #{_lambda_.4} parent=27 // pred_fallthru
        _
    $region28: #{_lambda_.4} parent=5 // pred_fallthru
      _
    %p162 = scmp.le.s32.totalorder 1, %s10
    %p163 = scmp.lt.s32.totalorder %s10, 3
    %p164 = pnand %p162, %p163
    %p165 = pneg %p164
    // Predicated region
    $region33: #{_lambda_.4} parent=5 // pred_check
      _
    $region34: #{_lambda_.4} parent=5 // pred_check_branch
      %167 = sbr.rel (%p164) target = $region36
    $region35: #{_lambda_.4} parent=5 // pred_region
      %s168 = ssub.s32 %s10, 1
      %s169 = smul.u32 32, %s15
      %p170 = scmp.lt.s32.totalorder %s169, 63
      %s171 = scalar_select %p170, %s169, 63
      %s172 = smul.addr %s171, 4
      %s173 = scalar_lea.vmem %s0, %s172
      %p174 = pneg %p36
      %p175 = pneg %p33
      %p176 = pneg %p57
      %p177 = pneg %p54
      %p178 = pneg %p78
      %p179 = pneg %p75
      %p180 = pneg %p99
      %p181 = pneg %p96
      %p182 = pneg %p125
      %p183 = pneg %p122
      %s184 = smul.u32 32, %s15
      %p185 = scmp.lt.s32.totalorder %s184, 63
      %s186 = scalar_select %p185, %s184, 63
      %s187 = smul.addr %s186, 4
      %s188 = scalar_lea.vmem %s4, %s187
      %s189 = smul.u32 32, %s15
      %p190 = scmp.lt.s32.totalorder %s189, 63
      %s191 = scalar_select %p190, %s189, 63
      %s192 = smul.addr %s191, 4
      %s193 = scalar_lea.vmem %s0, %s192
      %s194 = smul.u32 32, %s15
      %s195 = smul.u32 32, %s15
      %p196 = scmp.lt.s32.totalorder %s195, 63
      %s197 = scalar_select %p196, %s195, 63
      %s198 = smul.addr %s197, 4
      %s199 = scalar_lea.vmem %s4, %s198
      %s200 = smul.u32 32, %s15
      %v202 = vld [vmem:[%s193] sm:$0xf]
      %v203 = vld [vmem:[%s193 + $0x4] sm:$0xf]
      %v204 = vld [vmem:[%s193 + $0x8] sm:$0xf]
      %v205 = vld [vmem:[%s193 + $0xc] sm:$0xf]
      %v206 = vld [vmem:[%s193 + $0x10] sm:$0xf]
      %v207 = vld [vmem:[%s193 + $0x14] sm:$0xf]
      %v208 = vld [vmem:[%s193 + $0x18] sm:$0xf]
      %v209 = vld [vmem:[%s193 + $0x1c] sm:$0xf]
      %v210 = vld [vmem:[%s193 + $0x20] sm:$0xf]
      %v211 = vld [vmem:[%s193 + $0x24] sm:$0xf]
      %v212 = vld [vmem:[%s193 + $0x28] sm:$0xf]
      %v213 = vld [vmem:[%s193 + $0x2c] sm:$0xf]
      %v214 = vld [vmem:[%s193 + $0x30] sm:$0xf]
      %v215 = vld [vmem:[%s193 + $0x34] sm:$0xf]
      %v216 = vld [vmem:[%s193 + $0x38] sm:$0xf]
      %v217 = vld [vmem:[%s193 + $0x3c] sm:$0xf]
      %v218 = vld [vmem:[%s193 + $0x40] sm:$0xf]
      %v219 = vld [vmem:[%s193 + $0x44] sm:$0xf]
      %v220 = vld [vmem:[%s193 + $0x48] sm:$0xf]
      %v221 = vld [vmem:[%s193 + $0x4c] sm:$0xf]
      %v222 = vld [vmem:[%s193 + $0x50] sm:$0xf]
      %v223 = vld [vmem:[%s193 + $0x54] sm:$0xf]
      %v224 = vld [vmem:[%s193 + $0x58] sm:$0xf]
      %v225 = vld [vmem:[%s193 + $0x5c] sm:$0xf]
      %v226 = vld [vmem:[%s193 + $0x60] sm:$0xf]
      %v227 = vld [vmem:[%s193 + $0x64] sm:$0xf]
      %v228 = vld [vmem:[%s193 + $0x68] sm:$0xf]
      %v229 = vld [vmem:[%s193 + $0x6c] sm:$0xf]
      %v230 = vld [vmem:[%s193 + $0x70] sm:$0xf]
      %v231 = vld [vmem:[%s193 + $0x74] sm:$0xf]
      %v232 = vld [vmem:[%s193 + $0x78] sm:$0xf]
      %v233 = vld [vmem:[%s193 + $0x7c] sm:$0xf]
      %v234 = vld [vmem:[%s1] sm:$0xf]
      %v235 = vld [vmem:[%s1 + $0x4] sm:$0xf]
      %v236 = vld [vmem:[%s1 + $0x8] sm:$0xf]
      %v237 = vld [vmem:[%s1 + $0xc] sm:$0xf]
      %v270 = vunpack.c.l.b16 %v202
      %v271 = vunpack.c.l.b16 %v203
      %v272 = vunpack.c.l.b16 %v204
      %v273 = vunpack.c.l.b16 %v205
      %v274 = vunpack.c.l.b16 %v206
      %v275 = vunpack.c.l.b16 %v207
      %v276 = vunpack.c.l.b16 %v208
      %v277 = vunpack.c.l.b16 %v209
      %v278 = vunpack.c.l.b16 %v210
      %v279 = vunpack.c.l.b16 %v211
      %v280 = vunpack.c.l.b16 %v212
      %v281 = vunpack.c.l.b16 %v213
      %v282 = vunpack.c.l.b16 %v214
      %v283 = vunpack.c.l.b16 %v215
      %v284 = vunpack.c.l.b16 %v216
      %v285 = vunpack.c.l.b16 %v217
      %v286 = vunpack.c.l.b16 %v218
      %v287 = vunpack.c.l.b16 %v219
      %v288 = vunpack.c.l.b16 %v220
      %v289 = vunpack.c.l.b16 %v221
      %v290 = vunpack.c.l.b16 %v222
      %v291 = vunpack.c.l.b16 %v223
      %v292 = vunpack.c.l.b16 %v224
      %v293 = vunpack.c.l.b16 %v225
      %v294 = vunpack.c.l.b16 %v226
      %v295 = vunpack.c.l.b16 %v227
      %v296 = vunpack.c.l.b16 %v228
      %v297 = vunpack.c.l.b16 %v229
      %v298 = vunpack.c.l.b16 %v230
      %v299 = vunpack.c.l.b16 %v231
      %v300 = vunpack.c.l.b16 %v232
      %v301 = vunpack.c.l.b16 %v233
      %v302 = vpack.c.b16 %v271, %v270
      %v303 = vpack.c.b16 %v273, %v272
      %v304 = vpack.c.b16 %v275, %v274
      %v305 = vpack.c.b16 %v277, %v276
      %v306 = vpack.c.b16 %v279, %v278
      %v307 = vpack.c.b16 %v281, %v280
      %v308 = vpack.c.b16 %v283, %v282
      %v309 = vpack.c.b16 %v285, %v284
      %v310 = vpack.c.b16 %v287, %v286
      %v311 = vpack.c.b16 %v289, %v288
      %v312 = vpack.c.b16 %v291, %v290
      %v313 = vpack.c.b16 %v293, %v292
      %v314 = vpack.c.b16 %v295, %v294
      %v315 = vpack.c.b16 %v297, %v296
      %v316 = vpack.c.b16 %v299, %v298
      %v317 = vpack.c.b16 %v301, %v300
      %v322 = vunpack.c.l.b16 %v234
      %v323 = vunpack.c.l.b16 %v235
      %v324 = vunpack.c.l.b16 %v236
      %v325 = vunpack.c.l.b16 %v237
      %v326 = vpack.c.b16 %v323, %v322
      %v327 = vpack.c.b16 %v325, %v324
      %vm330 = vcmask 261120
      %v332 = vsel %vm330, %v302, 0
      %v335 = vsel %vm330, %v303, 0
      %v338 = vsel %vm330, %v304, 0
      %v341 = vsel %vm330, %v305, 0
      %v344 = vsel %vm330, %v306, 0
      %v347 = vsel %vm330, %v307, 0
      %v350 = vsel %vm330, %v308, 0
      %v353 = vsel %vm330, %v309, 0
      %v356 = vsel %vm330, %v310, 0
      %v359 = vsel %vm330, %v311, 0
      %v362 = vsel %vm330, %v312, 0
      %v365 = vsel %vm330, %v313, 0
      %v368 = vsel %vm330, %v314, 0
      %v371 = vsel %vm330, %v315, 0
      %v374 = vsel %vm330, %v316, 0
      %v377 = vsel %vm330, %v317, 0
      %379 = vmatpush.bf16.msra.mxu0 0
      %380 = vmatpush.bf16.msra.mxu0 0
      %381 = vmatpush.bf16.msra.mxu0 0
      %382 = vmatpush.bf16.msra.mxu0 0
      %383 = vmatpush.bf16.msra.mxu0 0
      %384 = vmatpush.bf16.msra.mxu0 0
      %385 = vmatpush.bf16.msra.mxu0 %v327
      %386 = vmatpush.bf16.msra.mxu0 %v326
      %387 = vmatmul.bf16.gmra.mxu0 %v332
      %v388 = vpop.f32.mrf.mxu0
      %v389 = vadd.f32 0.0, %v388
      %v390 = vpop.f32.mrf.mxu0
      %v391 = vadd.f32 0.0, %v390
      %392 = vmatmul.bf16.gmra.mxu0 %v335
      %v393 = vpop.f32.mrf.mxu0
      %v394 = vadd.f32 0.0, %v393
      %v395 = vpop.f32.mrf.mxu0
      %v396 = vadd.f32 0.0, %v395
      %397 = vmatmul.bf16.gmra.mxu0 %v338
      %v398 = vpop.f32.mrf.mxu0
      %v399 = vadd.f32 0.0, %v398
      %v400 = vpop.f32.mrf.mxu0
      %v401 = vadd.f32 0.0, %v400
      %402 = vmatmul.bf16.gmra.mxu0 %v341
      %v403 = vpop.f32.mrf.mxu0
      %v404 = vadd.f32 0.0, %v403
      %v405 = vpop.f32.mrf.mxu0
      %v406 = vadd.f32 0.0, %v405
      %407 = vmatmul.bf16.gmra.mxu0 %v344
      %v408 = vpop.f32.mrf.mxu0
      %v409 = vadd.f32 0.0, %v408
      %v410 = vpop.f32.mrf.mxu0
      %v411 = vadd.f32 0.0, %v410
      %412 = vmatmul.bf16.gmra.mxu0 %v347
      %v413 = vpop.f32.mrf.mxu0
      %v414 = vadd.f32 0.0, %v413
      %v415 = vpop.f32.mrf.mxu0
      %v416 = vadd.f32 0.0, %v415
      %417 = vmatmul.bf16.gmra.mxu0 %v350
      %v418 = vpop.f32.mrf.mxu0
      %v419 = vadd.f32 0.0, %v418
      %v420 = vpop.f32.mrf.mxu0
      %v421 = vadd.f32 0.0, %v420
      %422 = vmatmul.bf16.gmra.mxu0 %v353
      %v423 = vpop.f32.mrf.mxu0
      %v424 = vadd.f32 0.0, %v423
      %v425 = vpop.f32.mrf.mxu0
      %v426 = vadd.f32 0.0, %v425
      %427 = vmatmul.bf16.gmra.mxu0 %v356
      %v428 = vpop.f32.mrf.mxu0
      %v429 = vadd.f32 0.0, %v428
      %v430 = vpop.f32.mrf.mxu0
      %v431 = vadd.f32 0.0, %v430
      %432 = vmatmul.bf16.gmra.mxu0 %v359
      %v433 = vpop.f32.mrf.mxu0
      %v434 = vadd.f32 0.0, %v433
      %v435 = vpop.f32.mrf.mxu0
      %v436 = vadd.f32 0.0, %v435
      %437 = vmatmul.bf16.gmra.mxu0 %v362
      %v438 = vpop.f32.mrf.mxu0
      %v439 = vadd.f32 0.0, %v438
      %v440 = vpop.f32.mrf.mxu0
      %v441 = vadd.f32 0.0, %v440
      %442 = vmatmul.bf16.gmra.mxu0 %v365
      %v443 = vpop.f32.mrf.mxu0
      %v444 = vadd.f32 0.0, %v443
      %v445 = vpop.f32.mrf.mxu0
      %v446 = vadd.f32 0.0, %v445
      %447 = vmatmul.bf16.gmra.mxu0 %v368
      %v448 = vpop.f32.mrf.mxu0
      %v449 = vadd.f32 0.0, %v448
      %v450 = vpop.f32.mrf.mxu0
      %v451 = vadd.f32 0.0, %v450
      %452 = vmatmul.bf16.gmra.mxu0 %v371
      %v453 = vpop.f32.mrf.mxu0
      %v454 = vadd.f32 0.0, %v453
      %v455 = vpop.f32.mrf.mxu0
      %v456 = vadd.f32 0.0, %v455
      %457 = vmatmul.bf16.gmra.mxu0 %v374
      %v458 = vpop.f32.mrf.mxu0
      %v459 = vadd.f32 0.0, %v458
      %v460 = vpop.f32.mrf.mxu0
      %v461 = vadd.f32 0.0, %v460
      %462 = vmatmul.bf16.gmra.mxu0 %v377
      %v463 = vpop.f32.mrf.mxu0
      %v464 = vadd.f32 0.0, %v463
      %v465 = vpop.f32.mrf.mxu0
      %v466 = vadd.f32 0.0, %v465
      %467 = vdwg.mxu0
      %v468 = vld [vmem:[%s2] sm:$0x1]
      %v470 = vperm.slane %v468, 0
      %v472 = vmul.f32 %v389, %v470
      %v473 = vmul.f32 %v391, %v470
      %v474 = vmul.f32 %v394, %v470
      %v475 = vmul.f32 %v396, %v470
      %v476 = vmul.f32 %v399, %v470
      %v477 = vmul.f32 %v401, %v470
      %v478 = vmul.f32 %v404, %v470
      %v479 = vmul.f32 %v406, %v470
      %v480 = vmul.f32 %v409, %v470
      %v481 = vmul.f32 %v411, %v470
      %v482 = vmul.f32 %v414, %v470
      %v483 = vmul.f32 %v416, %v470
      %v484 = vmul.f32 %v419, %v470
      %v485 = vmul.f32 %v421, %v470
      %v486 = vmul.f32 %v424, %v470
      %v487 = vmul.f32 %v426, %v470
      %v488 = vmul.f32 %v429, %v470
      %v489 = vmul.f32 %v431, %v470
      %v490 = vmul.f32 %v434, %v470
      %v491 = vmul.f32 %v436, %v470
      %v492 = vmul.f32 %v439, %v470
      %v493 = vmul.f32 %v441, %v470
      %v494 = vmul.f32 %v444, %v470
      %v495 = vmul.f32 %v446, %v470
      %v496 = vmul.f32 %v449, %v470
      %v497 = vmul.f32 %v451, %v470
      %v498 = vmul.f32 %v454, %v470
      %v499 = vmul.f32 %v456, %v470
      %v500 = vmul.f32 %v459, %v470
      %v501 = vmul.f32 %v461, %v470
      %v502 = vmul.f32 %v464, %v470
      %v503 = vmul.f32 %v466, %v470
      %v504 = vld [vmem:[%s3] sm:$0x1]
      %v506 = vperm.slane %v504, 0
      %v508 = vadd.f32 %v472, %v506
      %v509 = vadd.f32 %v473, %v506
      %v510 = vadd.f32 %v474, %v506
      %v511 = vadd.f32 %v475, %v506
      %v512 = vadd.f32 %v476, %v506
      %v513 = vadd.f32 %v477, %v506
      %v514 = vadd.f32 %v478, %v506
      %v515 = vadd.f32 %v479, %v506
      %v516 = vadd.f32 %v480, %v506
      %v517 = vadd.f32 %v481, %v506
      %v518 = vadd.f32 %v482, %v506
      %v519 = vadd.f32 %v483, %v506
      %v520 = vadd.f32 %v484, %v506
      %v521 = vadd.f32 %v485, %v506
      %v522 = vadd.f32 %v486, %v506
      %v523 = vadd.f32 %v487, %v506
      %v524 = vadd.f32 %v488, %v506
      %v525 = vadd.f32 %v489, %v506
      %v526 = vadd.f32 %v490, %v506
      %v527 = vadd.f32 %v491, %v506
      %v528 = vadd.f32 %v492, %v506
      %v529 = vadd.f32 %v493, %v506
      %v530 = vadd.f32 %v494, %v506
      %v531 = vadd.f32 %v495, %v506
      %v532 = vadd.f32 %v496, %v506
      %v533 = vadd.f32 %v497, %v506
      %v534 = vadd.f32 %v498, %v506
      %v535 = vadd.f32 %v499, %v506
      %v536 = vadd.f32 %v500, %v506
      %v537 = vadd.f32 %v501, %v506
      %v538 = vadd.f32 %v502, %v506
      %v539 = vadd.f32 %v503, %v506
      %v540 = vsub.f32 0.0, %v508
      %v541 = vsub.f32 0.0, %v509
      %v542 = vsub.f32 0.0, %v510
      %v543 = vsub.f32 0.0, %v511
      %v544 = vsub.f32 0.0, %v512
      %v545 = vsub.f32 0.0, %v513
      %v546 = vsub.f32 0.0, %v514
      %v547 = vsub.f32 0.0, %v515
      %v548 = vsub.f32 0.0, %v516
      %v549 = vsub.f32 0.0, %v517
      %v550 = vsub.f32 0.0, %v518
      %v551 = vsub.f32 0.0, %v519
      %v552 = vsub.f32 0.0, %v520
      %v553 = vsub.f32 0.0, %v521
      %v554 = vsub.f32 0.0, %v522
      %v555 = vsub.f32 0.0, %v523
      %v556 = vsub.f32 0.0, %v524
      %v557 = vsub.f32 0.0, %v525
      %v558 = vsub.f32 0.0, %v526
      %v559 = vsub.f32 0.0, %v527
      %v560 = vsub.f32 0.0, %v528
      %v561 = vsub.f32 0.0, %v529
      %v562 = vsub.f32 0.0, %v530
      %v563 = vsub.f32 0.0, %v531
      %v564 = vsub.f32 0.0, %v532
      %v565 = vsub.f32 0.0, %v533
      %v566 = vsub.f32 0.0, %v534
      %v567 = vsub.f32 0.0, %v535
      %v568 = vsub.f32 0.0, %v536
      %v569 = vsub.f32 0.0, %v537
      %v570 = vsub.f32 0.0, %v538
      %v571 = vsub.f32 0.0, %v539
      %v572 = vmul.f32 %v540, 1.442695
      %v573 = vpow.pop %v572
      %v574 = vmul.f32 %v541, 1.442695
      %v575 = vpow.pop %v574
      %v576 = vmul.f32 %v542, 1.442695
      %v577 = vpow.pop %v576
      %v578 = vmul.f32 %v543, 1.442695
      %v579 = vpow.pop %v578
      %v580 = vmul.f32 %v544, 1.442695
      %v581 = vpow.pop %v580
      %v582 = vmul.f32 %v545, 1.442695
      %v583 = vpow.pop %v582
      %v584 = vmul.f32 %v546, 1.442695
      %v585 = vpow.pop %v584
      %v586 = vmul.f32 %v547, 1.442695
      %v587 = vpow.pop %v586
      %v588 = vmul.f32 %v548, 1.442695
      %v589 = vpow.pop %v588
      %v590 = vmul.f32 %v549, 1.442695
      %v591 = vpow.pop %v590
      %v592 = vmul.f32 %v550, 1.442695
      %v593 = vpow.pop %v592
      %v594 = vmul.f32 %v551, 1.442695
      %v595 = vpow.pop %v594
      %v596 = vmul.f32 %v552, 1.442695
      %v597 = vpow.pop %v596
      %v598 = vmul.f32 %v553, 1.442695
      %v599 = vpow.pop %v598
      %v600 = vmul.f32 %v554, 1.442695
      %v601 = vpow.pop %v600
      %v602 = vmul.f32 %v555, 1.442695
      %v603 = vpow.pop %v602
      %v604 = vmul.f32 %v556, 1.442695
      %v605 = vpow.pop %v604
      %v606 = vmul.f32 %v557, 1.442695
      %v607 = vpow.pop %v606
      %v608 = vmul.f32 %v558, 1.442695
      %v609 = vpow.pop %v608
      %v610 = vmul.f32 %v559, 1.442695
      %v611 = vpow.pop %v610
      %v612 = vmul.f32 %v560, 1.442695
      %v613 = vpow.pop %v612
      %v614 = vmul.f32 %v561, 1.442695
      %v615 = vpow.pop %v614
      %v616 = vmul.f32 %v562, 1.442695
      %v617 = vpow.pop %v616
      %v618 = vmul.f32 %v563, 1.442695
      %v619 = vpow.pop %v618
      %v620 = vmul.f32 %v564, 1.442695
      %v621 = vpow.pop %v620
      %v622 = vmul.f32 %v565, 1.442695
      %v623 = vpow.pop %v622
      %v624 = vmul.f32 %v566, 1.442695
      %v625 = vpow.pop %v624
      %v626 = vmul.f32 %v567, 1.442695
      %v627 = vpow.pop %v626
      %v628 = vmul.f32 %v568, 1.442695
      %v629 = vpow.pop %v628
      %v630 = vmul.f32 %v569, 1.442695
      %v631 = vpow.pop %v630
      %v632 = vmul.f32 %v570, 1.442695
      %v633 = vpow.pop %v632
      %v634 = vmul.f32 %v571, 1.442695
      %v635 = vpow.pop %v634
      %v636 = vadd.f32 %v573, 1.0
      %v637 = vadd.f32 %v575, 1.0
      %v638 = vadd.f32 %v577, 1.0
      %v639 = vadd.f32 %v579, 1.0
      %v640 = vadd.f32 %v581, 1.0
      %v641 = vadd.f32 %v583, 1.0
      %v642 = vadd.f32 %v585, 1.0
      %v643 = vadd.f32 %v587, 1.0
      %v644 = vadd.f32 %v589, 1.0
      %v645 = vadd.f32 %v591, 1.0
      %v646 = vadd.f32 %v593, 1.0
      %v647 = vadd.f32 %v595, 1.0
      %v648 = vadd.f32 %v597, 1.0
      %v649 = vadd.f32 %v599, 1.0
      %v650 = vadd.f32 %v601, 1.0
      %v651 = vadd.f32 %v603, 1.0
      %v652 = vadd.f32 %v605, 1.0
      %v653 = vadd.f32 %v607, 1.0
      %v654 = vadd.f32 %v609, 1.0
      %v655 = vadd.f32 %v611, 1.0
      %v656 = vadd.f32 %v613, 1.0
      %v657 = vadd.f32 %v615, 1.0
      %v658 = vadd.f32 %v617, 1.0
      %v659 = vadd.f32 %v619, 1.0
      %v660 = vadd.f32 %v621, 1.0
      %v661 = vadd.f32 %v623, 1.0
      %v662 = vadd.f32 %v625, 1.0
      %v663 = vadd.f32 %v627, 1.0
      %v664 = vadd.f32 %v629, 1.0
      %v665 = vadd.f32 %v631, 1.0
      %v666 = vadd.f32 %v633, 1.0
      %v667 = vadd.f32 %v635, 1.0
      %v668 = vrcp.pop %v636
      %v669 = vrcp.pop %v637
      %v670 = vrcp.pop %v638
      %v671 = vrcp.pop %v639
      %v672 = vrcp.pop %v640
      %v673 = vrcp.pop %v641
      %v674 = vrcp.pop %v642
      %v675 = vrcp.pop %v643
      %v676 = vrcp.pop %v644
      %v677 = vrcp.pop %v645
      %v678 = vrcp.pop %v646
      %v679 = vrcp.pop %v647
      %v680 = vrcp.pop %v648
      %v681 = vrcp.pop %v649
      %v682 = vrcp.pop %v650
      %v683 = vrcp.pop %v651
      %v684 = vrcp.pop %v652
      %v685 = vrcp.pop %v653
      %v686 = vrcp.pop %v654
      %v687 = vrcp.pop %v655
      %v688 = vrcp.pop %v656
      %v689 = vrcp.pop %v657
      %v690 = vrcp.pop %v658
      %v691 = vrcp.pop %v659
      %v692 = vrcp.pop %v660
      %v693 = vrcp.pop %v661
      %v694 = vrcp.pop %v662
      %v695 = vrcp.pop %v663
      %v696 = vrcp.pop %v664
      %v697 = vrcp.pop %v665
      %v698 = vrcp.pop %v666
      %v699 = vrcp.pop %v667
      %v700 = vmul.f32 %v508, %v668
      %v701 = vmul.f32 %v509, %v669
      %v702 = vmul.f32 %v510, %v670
      %v703 = vmul.f32 %v511, %v671
      %v704 = vmul.f32 %v512, %v672
      %v705 = vmul.f32 %v513, %v673
      %v706 = vmul.f32 %v514, %v674
      %v707 = vmul.f32 %v515, %v675
      %v708 = vmul.f32 %v516, %v676
      %v709 = vmul.f32 %v517, %v677
      %v710 = vmul.f32 %v518, %v678
      %v711 = vmul.f32 %v519, %v679
      %v712 = vmul.f32 %v520, %v680
      %v713 = vmul.f32 %v521, %v681
      %v714 = vmul.f32 %v522, %v682
      %v715 = vmul.f32 %v523, %v683
      %v716 = vmul.f32 %v524, %v684
      %v717 = vmul.f32 %v525, %v685
      %v718 = vmul.f32 %v526, %v686
      %v719 = vmul.f32 %v527, %v687
      %v720 = vmul.f32 %v528, %v688
      %v721 = vmul.f32 %v529, %v689
      %v722 = vmul.f32 %v530, %v690
      %v723 = vmul.f32 %v531, %v691
      %v724 = vmul.f32 %v532, %v692
      %v725 = vmul.f32 %v533, %v693
      %v726 = vmul.f32 %v534, %v694
      %v727 = vmul.f32 %v535, %v695
      %v728 = vmul.f32 %v536, %v696
      %v729 = vmul.f32 %v537, %v697
      %v730 = vmul.f32 %v538, %v698
      %v731 = vmul.f32 %v539, %v699
      %v732 = vpack.c.bf16 %v700, %v700
      %v733 = vpack.c.bf16 %v701, %v701
      %v734 = vpack.c.bf16 %v702, %v702
      %v735 = vpack.c.bf16 %v703, %v703
      %v736 = vpack.c.bf16 %v704, %v704
      %v737 = vpack.c.bf16 %v705, %v705
      %v738 = vpack.c.bf16 %v706, %v706
      %v739 = vpack.c.bf16 %v707, %v707
      %v740 = vpack.c.bf16 %v708, %v708
      %v741 = vpack.c.bf16 %v709, %v709
      %v742 = vpack.c.bf16 %v710, %v710
      %v743 = vpack.c.bf16 %v711, %v711
      %v744 = vpack.c.bf16 %v712, %v712
      %v745 = vpack.c.bf16 %v713, %v713
      %v746 = vpack.c.bf16 %v714, %v714
      %v747 = vpack.c.bf16 %v715, %v715
      %v748 = vpack.c.bf16 %v716, %v716
      %v749 = vpack.c.bf16 %v717, %v717
      %v750 = vpack.c.bf16 %v718, %v718
      %v751 = vpack.c.bf16 %v719, %v719
      %v752 = vpack.c.bf16 %v720, %v720
      %v753 = vpack.c.bf16 %v721, %v721
      %v754 = vpack.c.bf16 %v722, %v722
      %v755 = vpack.c.bf16 %v723, %v723
      %v756 = vpack.c.bf16 %v724, %v724
      %v757 = vpack.c.bf16 %v725, %v725
      %v758 = vpack.c.bf16 %v726, %v726
      %v759 = vpack.c.bf16 %v727, %v727
      %v760 = vpack.c.bf16 %v728, %v728
      %v761 = vpack.c.bf16 %v729, %v729
      %v762 = vpack.c.bf16 %v730, %v730
      %v763 = vpack.c.bf16 %v731, %v731
      %vm764 = vcmask 257024
      %765 = vst.msk [vmem:[%s199] sm:$0xf] %vm764, %v732
      %766 = vst.msk [vmem:[%s199 + $0x4] sm:$0xf] %vm764, %v733
      %767 = vst.msk [vmem:[%s199 + $0x8] sm:$0xf] %vm764, %v734
      %768 = vst.msk [vmem:[%s199 + $0xc] sm:$0xf] %vm764, %v735
      %769 = vst.msk [vmem:[%s199 + $0x10] sm:$0xf] %vm764, %v736
      %770 = vst.msk [vmem:[%s199 + $0x14] sm:$0xf] %vm764, %v737
      %771 = vst.msk [vmem:[%s199 + $0x18] sm:$0xf] %vm764, %v738
      %772 = vst.msk [vmem:[%s199 + $0x1c] sm:$0xf] %vm764, %v739
      %773 = vst.msk [vmem:[%s199 + $0x20] sm:$0xf] %vm764, %v740
      %774 = vst.msk [vmem:[%s199 + $0x24] sm:$0xf] %vm764, %v741
      %775 = vst.msk [vmem:[%s199 + $0x28] sm:$0xf] %vm764, %v742
      %776 = vst.msk [vmem:[%s199 + $0x2c] sm:$0xf] %vm764, %v743
      %777 = vst.msk [vmem:[%s199 + $0x30] sm:$0xf] %vm764, %v744
      %778 = vst.msk [vmem:[%s199 + $0x34] sm:$0xf] %vm764, %v745
      %779 = vst.msk [vmem:[%s199 + $0x38] sm:$0xf] %vm764, %v746
      %780 = vst.msk [vmem:[%s199 + $0x3c] sm:$0xf] %vm764, %v747
      %781 = vst.msk [vmem:[%s199 + $0x40] sm:$0xf] %vm764, %v748
      %782 = vst.msk [vmem:[%s199 + $0x44] sm:$0xf] %vm764, %v749
      %783 = vst.msk [vmem:[%s199 + $0x48] sm:$0xf] %vm764, %v750
      %784 = vst.msk [vmem:[%s199 + $0x4c] sm:$0xf] %vm764, %v751
      %785 = vst.msk [vmem:[%s199 + $0x50] sm:$0xf] %vm764, %v752
      %786 = vst.msk [vmem:[%s199 + $0x54] sm:$0xf] %vm764, %v753
      %787 = vst.msk [vmem:[%s199 + $0x58] sm:$0xf] %vm764, %v754
      %788 = vst.msk [vmem:[%s199 + $0x5c] sm:$0xf] %vm764, %v755
      %789 = vst.msk [vmem:[%s199 + $0x60] sm:$0xf] %vm764, %v756
      %790 = vst.msk [vmem:[%s199 + $0x64] sm:$0xf] %vm764, %v757
      %791 = vst.msk [vmem:[%s199 + $0x68] sm:$0xf] %vm764, %v758
      %792 = vst.msk [vmem:[%s199 + $0x6c] sm:$0xf] %vm764, %v759
      %793 = vst.msk [vmem:[%s199 + $0x70] sm:$0xf] %vm764, %v760
      %794 = vst.msk [vmem:[%s199 + $0x74] sm:$0xf] %vm764, %v761
      %795 = vst.msk [vmem:[%s199 + $0x78] sm:$0xf] %vm764, %v762
      %796 = vst.msk [vmem:[%s199 + $0x7c] sm:$0xf] %vm764, %v763
      %s797 = smul.u32 32, %s15
      %p798 = scmp.lt.s32.totalorder %s797, 63
      %s799 = scalar_select %p798, %s797, 63
      %s800 = smul.addr %s799, 4
      %s801 = scalar_lea.vmem %s4, %s800
      // Predicated region
      $region37: #{_lambda_.4} parent=35 // pred_check
        %p802 = pneg %p122
      $region38: #{_lambda_.4} parent=35 // pred_check_branch
        %804 = sbr.rel (%p802) target = $region40
      $region39: #{_lambda_.4} parent=35 // pred_region
        %s805 = smul.u32 32, %s15
      $region40: #{_lambda_.4} parent=35 // pred_fallthru
        _
    $region36: #{_lambda_.4} parent=5 // pred_fallthru
      _
    %p806 = scmp.le.s32.totalorder 2, %s10
    // Predicated region
    $region41: #{_lambda_.4} parent=5 // pred_check
      %p807 = pneg %p806
    $region42: #{_lambda_.4} parent=5 // pred_check_branch
      %809 = sbr.rel (%p807) target = $region44
    $region43: #{_lambda_.4} parent=5 // pred_region
      %s810 = ssub.s32 %s10, 2
      // Predicated region
      $region45: #{_lambda_.4} parent=43 // pred_check
        %p811 = pneg %p128
      $region46: #{_lambda_.4} parent=43 // pred_check_branch
        %813 = sbr.rel (%p811) target = $region48
      $region47: #{_lambda_.4} parent=43 // pred_region
        %s814 = smul.u32 32, %s16
        %p815 = scmp.lt.s32.totalorder %s814, 63
        %s816 = scalar_select %p815, %s814, 63
        %s817 = smul.addr %s816, 4
        %s818 = scalar_lea.vmem %s4, %s817
      $region48: #{_lambda_.4} parent=43 // pred_fallthru
        _
    $region44: #{_lambda_.4} parent=5 // pred_fallthru
      _
  $region6: #{_lambda_.4} parent=0 // loop_footer
    %s14 = sadd.s32 1, %s10
  $region7: #{_lambda_.4} parent=0 // loop_footer_branch
    %9 = sbr.rel target = $region3
  $region8: #{_lambda_.4} parent=0 // loop_exit
    _

// kernel: _lambda_.5
$region0: #{_lambda_.5}
  #allocation0 [shape = 'u32[]', space=smem, size = 0x4, offset = 0x4, fixed_abs, tag = 'smem constant byte address 0x4 - core index']
  #allocation1 [shape = 'u32[72,128]{1,0:T(1,128)}', space=vmem, size = 0x9000, scoped, tag = 'internal scratch']
  %s0 = inlined_call_operand.vmem [shape: bf16[2,18,288], index: 0, kind: input, shape index: {}]
  %s1 = inlined_call_operand.vmem [shape: bf16[3,288,256], index: 1, kind: input, shape index: {}]
  %s2 = inlined_call_operand.vmem [shape: f32[1,256], index: 2, kind: input, shape index: {}]
  %s3 = inlined_call_operand.vmem [shape: f32[1,256], index: 3, kind: input, shape index: {}]
  %s4 = inlined_call_operand.vmem [shape: bf16[2,16,256], index: 4, kind: output, shape index: {}]
  %s5 = sld [smem:[#allocation0]]
  $region127: #{_lambda_.5} parent=0
    _
  %s7 = ssub.s32 1, %s5
  %s8 = scalar_select 0, %s7, %s5
  $region1: #{_lambda_.5} parent=0
    #allocation2 [shape = 'u8[442368]{0}', space=vmem, size = 0x6c000, scoped, tag = 'input window, operand 1']
    #allocation3 [shape = 'u8[8192]{0}', space=vmem, size = 0x2000, scoped, tag = 'output window, operand 0']
    loop: start=0, step=1, limit=6
    $region2: #{_lambda_.5} parent=1 // loop_pre_header
      _
    $region3: #{_lambda_.5} parent=1 // loop_header
      %s10 = sphi 0, %s14
      %p11 = scmp.ge.s32.totalorder %s10, 6
      %s17 = sphi 0, %s29
      %s18 = sphi 0, %s25
      %s19 = sphi 0, %s17
      %s20 = sphi 0, %s18
      %s21 = sphi 0, %s19
      %s22 = sphi 0, %s20
      %s32 = sphi 0, %s34
      %s35 = sphi 0, %s32
      %s36 = sphi 0, %s35
      %s52 = sphi 0, %s36
      %s58 = sphi 0, %s60
      %s61 = sphi 0, %s58
      %s62 = sphi 0, %s61
      %s78 = sphi 0, %s62
      %s84 = sphi 0, %s86
      %s87 = sphi 0, %s84
      %s88 = sphi 0, %s87
      %s104 = sphi 0, %s88
      %s110 = sphi 0, %s112
      %s113 = sphi 0, %s110
      %s114 = sphi 0, %s113
      %s130 = sphi 0, %s114
      %s138 = sphi 0, %s140
      %s141 = sphi 0, %s138
      %s142 = sphi 0, %s141
      %s158 = sphi 0, %s142
    $region4: #{_lambda_.5} parent=1 // loop_header_branch
      %13 = sbr.rel (%p11) target = $region8
    $region5: #{_lambda_.5} parent=1 // loop_body
      %s15 = ssub.s32 %s10, 1
      %s16 = ssub.s32 %s10, 2
      %s23 = sadd.s32 1, %s18
      %p24 = scmp.ge.s32.totalorder %s23, 2
      %s25 = scalar_select %p24, 0, %s23
      %s26 = sadd.s32 1, %s17
      %s27 = scalar_select %p24, %s26, %s17
      %p28 = scmp.ge.s32.totalorder %s27, 2
      %s29 = scalar_select %p28, 0, %s27
      %s30 = ssub.s32 %s17, %s29
      %p31 = scmp.eq.s32.totalorder %s30, 0
      %s33 = sadd.s32 %s32, 1
      %s34 = scalar_select %p31, %s32, %s33
      %p37 = pneg %p31
      %p38 = scmp.eq.s32.totalorder %s10, 3
      %p39 = por %p37, %p38
      %p40 = scmp.ne.s32.totalorder %s32, %s35
      %p41 = scmp.eq.s32.totalorder %s10, 0
      %p42 = por %p40, %p41
      %p43 = scmp.ne.s32.totalorder %s32, %s35
      %p44 = scmp.eq.s32.totalorder %s15, 3
      %p45 = por %p43, %p44
      %p46 = scmp.ne.s32.totalorder %s35, %s36
      %p47 = scmp.eq.s32.totalorder %s15, 0
      %p48 = por %p46, %p47
      %p49 = scmp.ne.s32.totalorder %s35, %s36
      %p50 = scmp.eq.s32.totalorder %s16, 3
      %p51 = por %p49, %p50
      %p53 = scmp.ne.s32.totalorder %s36, %s52
      %p54 = scmp.eq.s32.totalorder %s16, 0
      %p55 = por %p53, %p54
      %s56 = ssub.s32 %s18, %s25
      %p57 = scmp.eq.s32.totalorder %s56, 0
      %s59 = sadd.s32 %s58, 1
      %s60 = scalar_select %p57, %s58, %s59
      %p63 = pneg %p57
      %p64 = scmp.eq.s32.totalorder %s10, 3
      %p65 = por %p63, %p64
      %p66 = scmp.ne.s32.totalorder %s58, %s61
      %p67 = scmp.eq.s32.totalorder %s10, 0
      %p68 = por %p66, %p67
      %p69 = scmp.ne.s32.totalorder %s58, %s61
      %p70 = scmp.eq.s32.totalorder %s15, 3
      %p71 = por %p69, %p70
      %p72 = scmp.ne.s32.totalorder %s61, %s62
      %p73 = scmp.eq.s32.totalorder %s15, 0
      %p74 = por %p72, %p73
      %p75 = scmp.ne.s32.totalorder %s61, %s62
      %p76 = scmp.eq.s32.totalorder %s16, 3
      %p77 = por %p75, %p76
      %p79 = scmp.ne.s32.totalorder %s62, %s78
      %p80 = scmp.eq.s32.totalorder %s16, 0
      %p81 = por %p79, %p80
      %s82 = ssub.s32 %s18, %s25
      %p83 = scmp.eq.s32.totalorder %s82, 0
      %s85 = sadd.s32 %s84, 1
      %s86 = scalar_select %p83, %s84, %s85
      %p89 = pneg %p83
      %p90 = scmp.eq.s32.totalorder %s10, 3
      %p91 = por %p89, %p90
      %p92 = scmp.ne.s32.totalorder %s84, %s87
      %p93 = scmp.eq.s32.totalorder %s10, 0
      %p94 = por %p92, %p93
      %p95 = scmp.ne.s32.totalorder %s84, %s87
      %p96 = scmp.eq.s32.totalorder %s15, 3
      %p97 = por %p95, %p96
      %p98 = scmp.ne.s32.totalorder %s87, %s88
      %p99 = scmp.eq.s32.totalorder %s15, 0
      %p100 = por %p98, %p99
      %p101 = scmp.ne.s32.totalorder %s87, %s88
      %p102 = scmp.eq.s32.totalorder %s16, 3
      %p103 = por %p101, %p102
      %p105 = scmp.ne.s32.totalorder %s88, %s104
      %p106 = scmp.eq.s32.totalorder %s16, 0
      %p107 = por %p105, %p106
      %s108 = ssub.s32 %s18, %s25
      %p109 = scmp.eq.s32.totalorder %s108, 0
      %s111 = sadd.s32 %s110, 1
      %s112 = scalar_select %p109, %s110, %s111
      %p115 = pneg %p109
      %p116 = scmp.eq.s32.totalorder %s10, 3
      %p117 = por %p115, %p116
      %p118 = scmp.ne.s32.totalorder %s110, %s113
      %p119 = scmp.eq.s32.totalorder %s10, 0
      %p120 = por %p118, %p119
      %p121 = scmp.ne.s32.totalorder %s110, %s113
      %p122 = scmp.eq.s32.totalorder %s15, 3
      %p123 = por %p121, %p122
      %p124 = scmp.ne.s32.totalorder %s113, %s114
      %p125 = scmp.eq.s32.totalorder %s15, 0
      %p126 = por %p124, %p125
      %p127 = scmp.ne.s32.totalorder %s113, %s114
      %p128 = scmp.eq.s32.totalorder %s16, 3
      %p129 = por %p127, %p128
      %p131 = scmp.ne.s32.totalorder %s114, %s130
      %p132 = scmp.eq.s32.totalorder %s16, 0
      %p133 = por %p131, %p132
      %s134 = ssub.s32 %s17, %s29
      %s135 = ssub.s32 %s18, %s25
      %s136 = sor.u32 %s134, %s135
      %p137 = scmp.eq.s32.totalorder %s136, 0
      %s139 = sadd.s32 %s138, 1
      %s140 = scalar_select %p137, %s138, %s139
      %p143 = pneg %p137
      %p144 = scmp.eq.s32.totalorder %s10, 3
      %p145 = por %p143, %p144
      %p146 = scmp.ne.s32.totalorder %s138, %s141
      %p147 = scmp.eq.s32.totalorder %s10, 0
      %p148 = por %p146, %p147
      %p149 = scmp.ne.s32.totalorder %s138, %s141
      %p150 = scmp.eq.s32.totalorder %s15, 3
      %p151 = por %p149, %p150
      %p152 = scmp.ne.s32.totalorder %s141, %s142
      %p153 = scmp.eq.s32.totalorder %s15, 0
      %p154 = por %p152, %p153
      %p155 = scmp.ne.s32.totalorder %s141, %s142
      %p156 = scmp.eq.s32.totalorder %s16, 3
      %p157 = por %p155, %p156
      %p159 = scmp.ne.s32.totalorder %s142, %s158
      %p160 = scmp.eq.s32.totalorder %s16, 0
      %p161 = por %p159, %p160
      %p162 = scmp.le.s32.totalorder 1, %s10
      %p163 = scmp.lt.s32.totalorder %s10, 5
      %p164 = pnand %p162, %p163
      %p165 = pneg %p164
      // Predicated region
      $region9: #{_lambda_.5} parent=5 // pred_check
        _
      $region10: #{_lambda_.5} parent=5 // pred_check_branch
        %167 = sbr.rel (%p164) target = $region12
      $region11: #{_lambda_.5} parent=5 // pred_region
        %s168 = ssub.s32 %s10, 1
      $region12: #{_lambda_.5} parent=5 // pred_fallthru
        _
      %p169 = scmp.lt.s32.totalorder %s10, 4
      // Predicated region
      $region13: #{_lambda_.5} parent=5 // pred_check
        %p170 = pneg %p169
      $region14: #{_lambda_.5} parent=5 // pred_check_branch
        %172 = sbr.rel (%p170) target = $region16
      $region15: #{_lambda_.5} parent=5 // pred_region
        // Predicated region
        $region17: #{_lambda_.5} parent=15 // pred_check
          %p173 = pneg %p42
        $region18: #{_lambda_.5} parent=15 // pred_check_branch
          %175 = sbr.rel (%p173) target = $region20
        $region19: #{_lambda_.5} parent=15 // pred_region
          %p176 = scmp.lt.s32.totalorder %s17, 1
          %s177 = scalar_select %p176, %s17, 1
          %s178 = smul.addr %s177, 9
          %s179 = smul.addr %s178, 4
          %s180 = scalar_lea.vmem %s0, %s179
        $region20: #{_lambda_.5} parent=15 // pred_fallthru
          _
        // Predicated region
        $region21: #{_lambda_.5} parent=15 // pred_check
          %p181 = pneg %p68
        $region22: #{_lambda_.5} parent=15 // pred_check_branch
          %183 = sbr.rel (%p181) target = $region24
        $region23: #{_lambda_.5} parent=15 // pred_region
          %s184 = sand.u32 %s58, 1
          %s185 = sand.u32 %s58, 1
          %s186 = smul.addr %s185, 432
          %s187 = scalar_lea.vmem [#allocation2], %s186
          %s188 = smul.addr %s18, 4
          %s189 = scalar_lea.vmem %s1, %s188
          // Predicated region
          $region25: #{_lambda_.5} parent=23 // pred_check
            _
          $region26: #{_lambda_.5} parent=23 // pred_check_branch
            %191 = sbr.rel (0) target = $region28
          $region27: #{_lambda_.5} parent=23 // pred_region
            // Predicated region
            $region29: #{_lambda_.5} parent=27 // pred_check
              _
            $region30: #{_lambda_.5} parent=27 // pred_check_branch
              %193 = sbr.rel target = $region32
            $region31: #{_lambda_.5} parent=27 // pred_region
              // Predicated region
              $region44: #{_lambda_.5} parent=31 // pred_check
                _
              $region45: #{_lambda_.5} parent=31 // pred_check_branch
                %423 = sbr.rel (0) target = $region47
              $region46: #{_lambda_.5} parent=31 // pred_region
                loop: start=0, step=1, limit=1
                $region48: #{_lambda_.5} parent=46 // loop_pre_header
                  _
                $region49: #{_lambda_.5} parent=46 // loop_header
                  %s425 = sphi 0, %s429
                  %p426 = scmp.ge.s32.totalorder %s425, 1
                  %s430 = sphi %s189, %s189
                  %s431 = sphi %s187, %s187
                $region50: #{_lambda_.5} parent=46 // loop_header_branch
                  %428 = sbr.rel (%p426) target = $region54
                $region51: #{_lambda_.5} parent=46 // loop_body
                  _
                $region52: #{_lambda_.5} parent=46 // loop_footer
                  %s429 = sadd.s32 1, %s425
                $region53: #{_lambda_.5} parent=46 // loop_footer_branch
                  %424 = sbr.rel target = $region49
                $region54: #{_lambda_.5} parent=46 // loop_exit
                  _
                %s433 = ssub.s32 16, 1
                loop: start=0, step=1, limit=1
                $region55: #{_lambda_.5} parent=46 // loop_pre_header
                  _
                $region56: #{_lambda_.5} parent=46 // loop_header
                  %s435 = sphi 0, %s439
                  %p436 = scmp.ge.s32.totalorder %s435, 1
                  %s440 = sphi %s189, %s189
                  %s441 = sphi %s187, %s187
                $region57: #{_lambda_.5} parent=46 // loop_header_branch
                  %438 = sbr.rel (%p436) target = $region61
                $region58: #{_lambda_.5} parent=46 // loop_body
                  %v442 = vld [vmem:[%s440] sm:%s433]
                  %443 = vst [vmem:[%s441] sm:%s433] %v442
                  %v444 = vld [vmem:[%s440 + $0x8] sm:%s433]
                  %445 = vst [vmem:[%s441 + $0x4] sm:%s433] %v444
                  %v446 = vld [vmem:[%s440 + $0x10] sm:%s433]
                  %447 = vst [vmem:[%s441 + $0x8] sm:%s433] %v446
                  %v448 = vld [vmem:[%s440 + $0x18] sm:%s433]
                  %449 = vst [vmem:[%s441 + $0xc] sm:%s433] %v448
                  %v450 = vld [vmem:[%s440 + $0x20] sm:%s433]
                  %451 = vst [vmem:[%s441 + $0x10] sm:%s433] %v450
                  %v452 = vld [vmem:[%s440 + $0x28] sm:%s433]
                  %453 = vst [vmem:[%s441 + $0x14] sm:%s433] %v452
                  %v454 = vld [vmem:[%s440 + $0x30] sm:%s433]
                  %455 = vst [vmem:[%s441 + $0x18] sm:%s433] %v454
                  %v456 = vld [vmem:[%s440 + $0x38] sm:%s433]
                  %457 = vst [vmem:[%s441 + $0x1c] sm:%s433] %v456
                  %v458 = vld [vmem:[%s440 + $0x40] sm:%s433]
                  %459 = vst [vmem:[%s441 + $0x20] sm:%s433] %v458
                  %v460 = vld [vmem:[%s440 + $0x48] sm:%s433]
                  %461 = vst [vmem:[%s441 + $0x24] sm:%s433] %v460
                  %v462 = vld [vmem:[%s440 + $0x50] sm:%s433]
                  %463 = vst [vmem:[%s441 + $0x28] sm:%s433] %v462
                  %v464 = vld [vmem:[%s440 + $0x58] sm:%s433]
                  %465 = vst [vmem:[%s441 + $0x2c] sm:%s433] %v464
                  %v466 = vld [vmem:[%s440 + $0x60] sm:%s433]
                  %467 = vst [vmem:[%s441 + $0x30] sm:%s433] %v466
                  %v468 = vld [vmem:[%s440 + $0x68] sm:%s433]
                  %469 = vst [vmem:[%s441 + $0x34] sm:%s433] %v468
                  %v470 = vld [vmem:[%s440 + $0x70] sm:%s433]
                  %471 = vst [vmem:[%s441 + $0x38] sm:%s433] %v470
                  %v472 = vld [vmem:[%s440 + $0x78] sm:%s433]
                  %473 = vst [vmem:[%s441 + $0x3c] sm:%s433] %v472
                  %v474 = vld [vmem:[%s440 + $0x80] sm:%s433]
                  %475 = vst [vmem:[%s441 + $0x40] sm:%s433] %v474
                  %v476 = vld [vmem:[%s440 + $0x88] sm:%s433]
                  %477 = vst [vmem:[%s441 + $0x44] sm:%s433] %v476
                  %v478 = vld [vmem:[%s440 + $0x90] sm:%s433]
                  %479 = vst [vmem:[%s441 + $0x48] sm:%s433] %v478
                  %v480 = vld [vmem:[%s440 + $0x98] sm:%s433]
                  %481 = vst [vmem:[%s441 + $0x4c] sm:%s433] %v480
                  %v482 = vld [vmem:[%s440 + $0xa0] sm:%s433]
                  %483 = vst [vmem:[%s441 + $0x50] sm:%s433] %v482
                  %v484 = vld [vmem:[%s440 + $0xa8] sm:%s433]
                  %485 = vst [vmem:[%s441 + $0x54] sm:%s433] %v484
                  %v486 = vld [vmem:[%s440 + $0xb0] sm:%s433]
                  %487 = vst [vmem:[%s441 + $0x58] sm:%s433] %v486
                  %v488 = vld [vmem:[%s440 + $0xb8] sm:%s433]
                  %489 = vst [vmem:[%s441 + $0x5c] sm:%s433] %v488
                  %v490 = vld [vmem:[%s440 + $0xc0] sm:%s433]
                  %491 = vst [vmem:[%s441 + $0x60] sm:%s433] %v490
                  %v492 = vld [vmem:[%s440 + $0xc8] sm:%s433]
                  %493 = vst [vmem:[%s441 + $0x64] sm:%s433] %v492
                  %v494 = vld [vmem:[%s440 + $0xd0] sm:%s433]
                  %495 = vst [vmem:[%s441 + $0x68] sm:%s433] %v494
                  %v496 = vld [vmem:[%s440 + $0xd8] sm:%s433]
                  %497 = vst [vmem:[%s441 + $0x6c] sm:%s433] %v496
                  %v498 = vld [vmem:[%s440 + $0xe0] sm:%s433]
                  %499 = vst [vmem:[%s441 + $0x70] sm:%s433] %v498
                  %v500 = vld [vmem:[%s440 + $0xe8] sm:%s433]
                  %501 = vst [vmem:[%s441 + $0x74] sm:%s433] %v500
                  %v502 = vld [vmem:[%s440 + $0xf0] sm:%s433]
                  %503 = vst [vmem:[%s441 + $0x78] sm:%s433] %v502
                  %v504 = vld [vmem:[%s440 + $0xf8] sm:%s433]
                  %505 = vst [vmem:[%s441 + $0x7c] sm:%s433] %v504
                  %v506 = vld [vmem:[%s440 + $0x100] sm:%s433]
                  %507 = vst [vmem:[%s441 + $0x80] sm:%s433] %v506
                  %v508 = vld [vmem:[%s440 + $0x108] sm:%s433]
                  %509 = vst [vmem:[%s441 + $0x84] sm:%s433] %v508
                  %v510 = vld [vmem:[%s440 + $0x110] sm:%s433]
                  %511 = vst [vmem:[%s441 + $0x88] sm:%s433] %v510
                  %v512 = vld [vmem:[%s440 + $0x118] sm:%s433]
                  %513 = vst [vmem:[%s441 + $0x8c] sm:%s433] %v512
                  %v514 = vld [vmem:[%s440 + $0x120] sm:%s433]
                  %515 = vst [vmem:[%s441 + $0x90] sm:%s433] %v514
                  %v516 = vld [vmem:[%s440 + $0x128] sm:%s433]
                  %517 = vst [vmem:[%s441 + $0x94] sm:%s433] %v516
                  %v518 = vld [vmem:[%s440 + $0x130] sm:%s433]
                  %519 = vst [vmem:[%s441 + $0x98] sm:%s433] %v518
                  %v520 = vld [vmem:[%s440 + $0x138] sm:%s433]
                  %521 = vst [vmem:[%s441 + $0x9c] sm:%s433] %v520
                  %v522 = vld [vmem:[%s440 + $0x140] sm:%s433]
                  %523 = vst [vmem:[%s441 + $0xa0] sm:%s433] %v522
                  %v524 = vld [vmem:[%s440 + $0x148] sm:%s433]
                  %525 = vst [vmem:[%s441 + $0xa4] sm:%s433] %v524
                  %v526 = vld [vmem:[%s440 + $0x150] sm:%s433]
                  %527 = vst [vmem:[%s441 + $0xa8] sm:%s433] %v526
                  %v528 = vld [vmem:[%s440 + $0x158] sm:%s433]
                  %529 = vst [vmem:[%s441 + $0xac] sm:%s433] %v528
                  %v530 = vld [vmem:[%s440 + $0x160] sm:%s433]
                  %531 = vst [vmem:[%s441 + $0xb0] sm:%s433] %v530
                  %v532 = vld [vmem:[%s440 + $0x168] sm:%s433]
                  %533 = vst [vmem:[%s441 + $0xb4] sm:%s433] %v532
                  %v534 = vld [vmem:[%s440 + $0x170] sm:%s433]
                  %535 = vst [vmem:[%s441 + $0xb8] sm:%s433] %v534
                  %v536 = vld [vmem:[%s440 + $0x178] sm:%s433]
                  %537 = vst [vmem:[%s441 + $0xbc] sm:%s433] %v536
                  %v538 = vld [vmem:[%s440 + $0x180] sm:%s433]
                  %539 = vst [vmem:[%s441 + $0xc0] sm:%s433] %v538
                  %v540 = vld [vmem:[%s440 + $0x188] sm:%s433]
                  %541 = vst [vmem:[%s441 + $0xc4] sm:%s433] %v540
                  %v542 = vld [vmem:[%s440 + $0x190] sm:%s433]
                  %543 = vst [vmem:[%s441 + $0xc8] sm:%s433] %v542
                  %v544 = vld [vmem:[%s440 + $0x198] sm:%s433]
                  %545 = vst [vmem:[%s441 + $0xcc] sm:%s433] %v544
                  %v546 = vld [vmem:[%s440 + $0x1a0] sm:%s433]
                  %547 = vst [vmem:[%s441 + $0xd0] sm:%s433] %v546
                  %v548 = vld [vmem:[%s440 + $0x1a8] sm:%s433]
                  %549 = vst [vmem:[%s441 + $0xd4] sm:%s433] %v548
                  %v550 = vld [vmem:[%s440 + $0x1b0] sm:%s433]
                  %551 = vst [vmem:[%s441 + $0xd8] sm:%s433] %v550
                  %v552 = vld [vmem:[%s440 + $0x1b8] sm:%s433]
                  %553 = vst [vmem:[%s441 + $0xdc] sm:%s433] %v552
                  %v554 = vld [vmem:[%s440 + $0x1c0] sm:%s433]
                  %555 = vst [vmem:[%s441 + $0xe0] sm:%s433] %v554
                  %v556 = vld [vmem:[%s440 + $0x1c8] sm:%s433]
                  %557 = vst [vmem:[%s441 + $0xe4] sm:%s433] %v556
                  %v558 = vld [vmem:[%s440 + $0x1d0] sm:%s433]
                  %559 = vst [vmem:[%s441 + $0xe8] sm:%s433] %v558
                  %v560 = vld [vmem:[%s440 + $0x1d8] sm:%s433]
                  %561 = vst [vmem:[%s441 + $0xec] sm:%s433] %v560
                  %v562 = vld [vmem:[%s440 + $0x1e0] sm:%s433]
                  %563 = vst [vmem:[%s441 + $0xf0] sm:%s433] %v562
                  %v564 = vld [vmem:[%s440 + $0x1e8] sm:%s433]
                  %565 = vst [vmem:[%s441 + $0xf4] sm:%s433] %v564
                  %v566 = vld [vmem:[%s440 + $0x1f0] sm:%s433]
                  %567 = vst [vmem:[%s441 + $0xf8] sm:%s433] %v566
                  %v568 = vld [vmem:[%s440 + $0x1f8] sm:%s433]
                  %569 = vst [vmem:[%s441 + $0xfc] sm:%s433] %v568
                  %v570 = vld [vmem:[%s440 + $0x200] sm:%s433]
                  %571 = vst [vmem:[%s441 + $0x100] sm:%s433] %v570
                  %v572 = vld [vmem:[%s440 + $0x208] sm:%s433]
                  %573 = vst [vmem:[%s441 + $0x104] sm:%s433] %v572
                  %v574 = vld [vmem:[%s440 + $0x210] sm:%s433]
                  %575 = vst [vmem:[%s441 + $0x108] sm:%s433] %v574
                  %v576 = vld [vmem:[%s440 + $0x218] sm:%s433]
                  %577 = vst [vmem:[%s441 + $0x10c] sm:%s433] %v576
                  %v578 = vld [vmem:[%s440 + $0x220] sm:%s433]
                  %579 = vst [vmem:[%s441 + $0x110] sm:%s433] %v578
                  %v580 = vld [vmem:[%s440 + $0x228] sm:%s433]
                  %581 = vst [vmem:[%s441 + $0x114] sm:%s433] %v580
                  %v582 = vld [vmem:[%s440 + $0x230] sm:%s433]
                  %583 = vst [vmem:[%s441 + $0x118] sm:%s433] %v582
                  %v584 = vld [vmem:[%s440 + $0x238] sm:%s433]
                  %585 = vst [vmem:[%s441 + $0x11c] sm:%s433] %v584
                  %v586 = vld [vmem:[%s440 + $0x240] sm:%s433]
                  %587 = vst [vmem:[%s441 + $0x120] sm:%s433] %v586
                  %v588 = vld [vmem:[%s440 + $0x248] sm:%s433]
                  %589 = vst [vmem:[%s441 + $0x124] sm:%s433] %v588
                  %v590 = vld [vmem:[%s440 + $0x250] sm:%s433]
                  %591 = vst [vmem:[%s441 + $0x128] sm:%s433] %v590
                  %v592 = vld [vmem:[%s440 + $0x258] sm:%s433]
                  %593 = vst [vmem:[%s441 + $0x12c] sm:%s433] %v592
                  %v594 = vld [vmem:[%s440 + $0x260] sm:%s433]
                  %595 = vst [vmem:[%s441 + $0x130] sm:%s433] %v594
                  %v596 = vld [vmem:[%s440 + $0x268] sm:%s433]
                  %597 = vst [vmem:[%s441 + $0x134] sm:%s433] %v596
                  %v598 = vld [vmem:[%s440 + $0x270] sm:%s433]
                  %599 = vst [vmem:[%s441 + $0x138] sm:%s433] %v598
                  %v600 = vld [vmem:[%s440 + $0x278] sm:%s433]
                  %601 = vst [vmem:[%s441 + $0x13c] sm:%s433] %v600
                  %v602 = vld [vmem:[%s440 + $0x280] sm:%s433]
                  %603 = vst [vmem:[%s441 + $0x140] sm:%s433] %v602
                  %v604 = vld [vmem:[%s440 + $0x288] sm:%s433]
                  %605 = vst [vmem:[%s441 + $0x144] sm:%s433] %v604
                  %v606 = vld [vmem:[%s440 + $0x290] sm:%s433]
                  %607 = vst [vmem:[%s441 + $0x148] sm:%s433] %v606
                  %v608 = vld [vmem:[%s440 + $0x298] sm:%s433]
                  %609 = vst [vmem:[%s441 + $0x14c] sm:%s433] %v608
                  %v610 = vld [vmem:[%s440 + $0x2a0] sm:%s433]
                  %611 = vst [vmem:[%s441 + $0x150] sm:%s433] %v610
                  %v612 = vld [vmem:[%s440 + $0x2a8] sm:%s433]
                  %613 = vst [vmem:[%s441 + $0x154] sm:%s433] %v612
                  %v614 = vld [vmem:[%s440 + $0x2b0] sm:%s433]
                  %615 = vst [vmem:[%s441 + $0x158] sm:%s433] %v614
                  %v616 = vld [vmem:[%s440 + $0x2b8] sm:%s433]
                  %617 = vst [vmem:[%s441 + $0x15c] sm:%s433] %v616
                  %v618 = vld [vmem:[%s440 + $0x2c0] sm:%s433]
                  %619 = vst [vmem:[%s441 + $0x160] sm:%s433] %v618
                  %v620 = vld [vmem:[%s440 + $0x2c8] sm:%s433]
                  %621 = vst [vmem:[%s441 + $0x164] sm:%s433] %v620
                  %v622 = vld [vmem:[%s440 + $0x2d0] sm:%s433]
                  %623 = vst [vmem:[%s441 + $0x168] sm:%s433] %v622
                  %v624 = vld [vmem:[%s440 + $0x2d8] sm:%s433]
                  %625 = vst [vmem:[%s441 + $0x16c] sm:%s433] %v624
                  %v626 = vld [vmem:[%s440 + $0x2e0] sm:%s433]
                  %627 = vst [vmem:[%s441 + $0x170] sm:%s433] %v626
                  %v628 = vld [vmem:[%s440 + $0x2e8] sm:%s433]
                  %629 = vst [vmem:[%s441 + $0x174] sm:%s433] %v628
                  %v630 = vld [vmem:[%s440 + $0x2f0] sm:%s433]
                  %631 = vst [vmem:[%s441 + $0x178] sm:%s433] %v630
                  %v632 = vld [vmem:[%s440 + $0x2f8] sm:%s433]
                  %633 = vst [vmem:[%s441 + $0x17c] sm:%s433] %v632
                  %v634 = vld [vmem:[%s440 + $0x300] sm:%s433]
                  %635 = vst [vmem:[%s441 + $0x180] sm:%s433] %v634
                  %v636 = vld [vmem:[%s440 + $0x308] sm:%s433]
                  %637 = vst [vmem:[%s441 + $0x184] sm:%s433] %v636
                  %v638 = vld [vmem:[%s440 + $0x310] sm:%s433]
                  %639 = vst [vmem:[%s441 + $0x188] sm:%s433] %v638
                  %v640 = vld [vmem:[%s440 + $0x318] sm:%s433]
                  %641 = vst [vmem:[%s441 + $0x18c] sm:%s433] %v640
                  %v642 = vld [vmem:[%s440 + $0x320] sm:%s433]
                  %643 = vst [vmem:[%s441 + $0x190] sm:%s433] %v642
                  %v644 = vld [vmem:[%s440 + $0x328] sm:%s433]
                  %645 = vst [vmem:[%s441 + $0x194] sm:%s433] %v644
                  %v646 = vld [vmem:[%s440 + $0x330] sm:%s433]
                  %647 = vst [vmem:[%s441 + $0x198] sm:%s433] %v646
                  %v648 = vld [vmem:[%s440 + $0x338] sm:%s433]
                  %649 = vst [vmem:[%s441 + $0x19c] sm:%s433] %v648
                  %v650 = vld [vmem:[%s440 + $0x340] sm:%s433]
                  %651 = vst [vmem:[%s441 + $0x1a0] sm:%s433] %v650
                  %v652 = vld [vmem:[%s440 + $0x348] sm:%s433]
                  %653 = vst [vmem:[%s441 + $0x1a4] sm:%s433] %v652
                  %v654 = vld [vmem:[%s440 + $0x350] sm:%s433]
                  %655 = vst [vmem:[%s441 + $0x1a8] sm:%s433] %v654
                  %v656 = vld [vmem:[%s440 + $0x358] sm:%s433]
                  %657 = vst [vmem:[%s441 + $0x1ac] sm:%s433] %v656
                $region59: #{_lambda_.5} parent=46 // loop_footer
                  %s439 = sadd.s32 1, %s435
                $region60: #{_lambda_.5} parent=46 // loop_footer_branch
                  %434 = sbr.rel target = $region56
                $region61: #{_lambda_.5} parent=46 // loop_exit
                  _
              $region47: #{_lambda_.5} parent=31 // pred_fallthru
                _
            $region32: #{_lambda_.5} parent=27 // pred_fallthru
              _
            // Predicated region
            $region33: #{_lambda_.5} parent=27 // pred_check
              _
            $region34: #{_lambda_.5} parent=27 // pred_check_branch
              %195 = sbr.rel (0) target = $region36
            $region35: #{_lambda_.5} parent=27 // pred_region
              %s197 = ssub.s32 16, 1
              loop: start=0, step=1, limit=1
              $region37: #{_lambda_.5} parent=35 // loop_pre_header
                _
              $region38: #{_lambda_.5} parent=35 // loop_header
                %s199 = sphi 0, %s203
                %p200 = scmp.ge.s32.totalorder %s199, 1
                %s204 = sphi %s189, %s189
                %s205 = sphi %s187, %s187
              $region39: #{_lambda_.5} parent=35 // loop_header_branch
                %202 = sbr.rel (%p200) target = $region43
              $region40: #{_lambda_.5} parent=35 // loop_body
                %v206 = vld [vmem:[%s204] sm:%s197]
                %207 = vst [vmem:[%s205] sm:%s197] %v206
                %v208 = vld [vmem:[%s204 + $0x8] sm:%s197]
                %209 = vst [vmem:[%s205 + $0x4] sm:%s197] %v208
                %v210 = vld [vmem:[%s204 + $0x10] sm:%s197]
                %211 = vst [vmem:[%s205 + $0x8] sm:%s197] %v210
                %v212 = vld [vmem:[%s204 + $0x18] sm:%s197]
                %213 = vst [vmem:[%s205 + $0xc] sm:%s197] %v212
                %v214 = vld [vmem:[%s204 + $0x20] sm:%s197]
                %215 = vst [vmem:[%s205 + $0x10] sm:%s197] %v214
                %v216 = vld [vmem:[%s204 + $0x28] sm:%s197]
                %217 = vst [vmem:[%s205 + $0x14] sm:%s197] %v216
                %v218 = vld [vmem:[%s204 + $0x30] sm:%s197]
                %219 = vst [vmem:[%s205 + $0x18] sm:%s197] %v218
                %v220 = vld [vmem:[%s204 + $0x38] sm:%s197]
                %221 = vst [vmem:[%s205 + $0x1c] sm:%s197] %v220
                %v222 = vld [vmem:[%s204 + $0x40] sm:%s197]
                %223 = vst [vmem:[%s205 + $0x20] sm:%s197] %v222
                %v224 = vld [vmem:[%s204 + $0x48] sm:%s197]
                %225 = vst [vmem:[%s205 + $0x24] sm:%s197] %v224
                %v226 = vld [vmem:[%s204 + $0x50] sm:%s197]
                %227 = vst [vmem:[%s205 + $0x28] sm:%s197] %v226
                %v228 = vld [vmem:[%s204 + $0x58] sm:%s197]
                %229 = vst [vmem:[%s205 + $0x2c] sm:%s197] %v228
                %v230 = vld [vmem:[%s204 + $0x60] sm:%s197]
                %231 = vst [vmem:[%s205 + $0x30] sm:%s197] %v230
                %v232 = vld [vmem:[%s204 + $0x68] sm:%s197]
                %233 = vst [vmem:[%s205 + $0x34] sm:%s197] %v232
                %v234 = vld [vmem:[%s204 + $0x70] sm:%s197]
                %235 = vst [vmem:[%s205 + $0x38] sm:%s197] %v234
                %v236 = vld [vmem:[%s204 + $0x78] sm:%s197]
                %237 = vst [vmem:[%s205 + $0x3c] sm:%s197] %v236
                %v238 = vld [vmem:[%s204 + $0x80] sm:%s197]
                %239 = vst [vmem:[%s205 + $0x40] sm:%s197] %v238
                %v240 = vld [vmem:[%s204 + $0x88] sm:%s197]
                %241 = vst [vmem:[%s205 + $0x44] sm:%s197] %v240
                %v242 = vld [vmem:[%s204 + $0x90] sm:%s197]
                %243 = vst [vmem:[%s205 + $0x48] sm:%s197] %v242
                %v244 = vld [vmem:[%s204 + $0x98] sm:%s197]
                %245 = vst [vmem:[%s205 + $0x4c] sm:%s197] %v244
                %v246 = vld [vmem:[%s204 + $0xa0] sm:%s197]
                %247 = vst [vmem:[%s205 + $0x50] sm:%s197] %v246
                %v248 = vld [vmem:[%s204 + $0xa8] sm:%s197]
                %249 = vst [vmem:[%s205 + $0x54] sm:%s197] %v248
                %v250 = vld [vmem:[%s204 + $0xb0] sm:%s197]
                %251 = vst [vmem:[%s205 + $0x58] sm:%s197] %v250
                %v252 = vld [vmem:[%s204 + $0xb8] sm:%s197]
                %253 = vst [vmem:[%s205 + $0x5c] sm:%s197] %v252
                %v254 = vld [vmem:[%s204 + $0xc0] sm:%s197]
                %255 = vst [vmem:[%s205 + $0x60] sm:%s197] %v254
                %v256 = vld [vmem:[%s204 + $0xc8] sm:%s197]
                %257 = vst [vmem:[%s205 + $0x64] sm:%s197] %v256
                %v258 = vld [vmem:[%s204 + $0xd0] sm:%s197]
                %259 = vst [vmem:[%s205 + $0x68] sm:%s197] %v258
                %v260 = vld [vmem:[%s204 + $0xd8] sm:%s197]
                %261 = vst [vmem:[%s205 + $0x6c] sm:%s197] %v260
                %v262 = vld [vmem:[%s204 + $0xe0] sm:%s197]
                %263 = vst [vmem:[%s205 + $0x70] sm:%s197] %v262
                %v264 = vld [vmem:[%s204 + $0xe8] sm:%s197]
                %265 = vst [vmem:[%s205 + $0x74] sm:%s197] %v264
                %v266 = vld [vmem:[%s204 + $0xf0] sm:%s197]
                %267 = vst [vmem:[%s205 + $0x78] sm:%s197] %v266
                %v268 = vld [vmem:[%s204 + $0xf8] sm:%s197]
                %269 = vst [vmem:[%s205 + $0x7c] sm:%s197] %v268
                %v270 = vld [vmem:[%s204 + $0x100] sm:%s197]
                %271 = vst [vmem:[%s205 + $0x80] sm:%s197] %v270
                %v272 = vld [vmem:[%s204 + $0x108] sm:%s197]
                %273 = vst [vmem:[%s205 + $0x84] sm:%s197] %v272
                %v274 = vld [vmem:[%s204 + $0x110] sm:%s197]
                %275 = vst [vmem:[%s205 + $0x88] sm:%s197] %v274
                %v276 = vld [vmem:[%s204 + $0x118] sm:%s197]
                %277 = vst [vmem:[%s205 + $0x8c] sm:%s197] %v276
                %v278 = vld [vmem:[%s204 + $0x120] sm:%s197]
                %279 = vst [vmem:[%s205 + $0x90] sm:%s197] %v278
                %v280 = vld [vmem:[%s204 + $0x128] sm:%s197]
                %281 = vst [vmem:[%s205 + $0x94] sm:%s197] %v280
                %v282 = vld [vmem:[%s204 + $0x130] sm:%s197]
                %283 = vst [vmem:[%s205 + $0x98] sm:%s197] %v282
                %v284 = vld [vmem:[%s204 + $0x138] sm:%s197]
                %285 = vst [vmem:[%s205 + $0x9c] sm:%s197] %v284
                %v286 = vld [vmem:[%s204 + $0x140] sm:%s197]
                %287 = vst [vmem:[%s205 + $0xa0] sm:%s197] %v286
                %v288 = vld [vmem:[%s204 + $0x148] sm:%s197]
                %289 = vst [vmem:[%s205 + $0xa4] sm:%s197] %v288
                %v290 = vld [vmem:[%s204 + $0x150] sm:%s197]
                %291 = vst [vmem:[%s205 + $0xa8] sm:%s197] %v290
                %v292 = vld [vmem:[%s204 + $0x158] sm:%s197]
                %293 = vst [vmem:[%s205 + $0xac] sm:%s197] %v292
                %v294 = vld [vmem:[%s204 + $0x160] sm:%s197]
                %295 = vst [vmem:[%s205 + $0xb0] sm:%s197] %v294
                %v296 = vld [vmem:[%s204 + $0x168] sm:%s197]
                %297 = vst [vmem:[%s205 + $0xb4] sm:%s197] %v296
                %v298 = vld [vmem:[%s204 + $0x170] sm:%s197]
                %299 = vst [vmem:[%s205 + $0xb8] sm:%s197] %v298
                %v300 = vld [vmem:[%s204 + $0x178] sm:%s197]
                %301 = vst [vmem:[%s205 + $0xbc] sm:%s197] %v300
                %v302 = vld [vmem:[%s204 + $0x180] sm:%s197]
                %303 = vst [vmem:[%s205 + $0xc0] sm:%s197] %v302
                %v304 = vld [vmem:[%s204 + $0x188] sm:%s197]
                %305 = vst [vmem:[%s205 + $0xc4] sm:%s197] %v304
                %v306 = vld [vmem:[%s204 + $0x190] sm:%s197]
                %307 = vst [vmem:[%s205 + $0xc8] sm:%s197] %v306
                %v308 = vld [vmem:[%s204 + $0x198] sm:%s197]
                %309 = vst [vmem:[%s205 + $0xcc] sm:%s197] %v308
                %v310 = vld [vmem:[%s204 + $0x1a0] sm:%s197]
                %311 = vst [vmem:[%s205 + $0xd0] sm:%s197] %v310
                %v312 = vld [vmem:[%s204 + $0x1a8] sm:%s197]
                %313 = vst [vmem:[%s205 + $0xd4] sm:%s197] %v312
                %v314 = vld [vmem:[%s204 + $0x1b0] sm:%s197]
                %315 = vst [vmem:[%s205 + $0xd8] sm:%s197] %v314
                %v316 = vld [vmem:[%s204 + $0x1b8] sm:%s197]
                %317 = vst [vmem:[%s205 + $0xdc] sm:%s197] %v316
                %v318 = vld [vmem:[%s204 + $0x1c0] sm:%s197]
                %319 = vst [vmem:[%s205 + $0xe0] sm:%s197] %v318
                %v320 = vld [vmem:[%s204 + $0x1c8] sm:%s197]
                %321 = vst [vmem:[%s205 + $0xe4] sm:%s197] %v320
                %v322 = vld [vmem:[%s204 + $0x1d0] sm:%s197]
                %323 = vst [vmem:[%s205 + $0xe8] sm:%s197] %v322
                %v324 = vld [vmem:[%s204 + $0x1d8] sm:%s197]
                %325 = vst [vmem:[%s205 + $0xec] sm:%s197] %v324
                %v326 = vld [vmem:[%s204 + $0x1e0] sm:%s197]
                %327 = vst [vmem:[%s205 + $0xf0] sm:%s197] %v326
                %v328 = vld [vmem:[%s204 + $0x1e8] sm:%s197]
                %329 = vst [vmem:[%s205 + $0xf4] sm:%s197] %v328
                %v330 = vld [vmem:[%s204 + $0x1f0] sm:%s197]
                %331 = vst [vmem:[%s205 + $0xf8] sm:%s197] %v330
                %v332 = vld [vmem:[%s204 + $0x1f8] sm:%s197]
                %333 = vst [vmem:[%s205 + $0xfc] sm:%s197] %v332
                %v334 = vld [vmem:[%s204 + $0x200] sm:%s197]
                %335 = vst [vmem:[%s205 + $0x100] sm:%s197] %v334
                %v336 = vld [vmem:[%s204 + $0x208] sm:%s197]
                %337 = vst [vmem:[%s205 + $0x104] sm:%s197] %v336
                %v338 = vld [vmem:[%s204 + $0x210] sm:%s197]
                %339 = vst [vmem:[%s205 + $0x108] sm:%s197] %v338
                %v340 = vld [vmem:[%s204 + $0x218] sm:%s197]
                %341 = vst [vmem:[%s205 + $0x10c] sm:%s197] %v340
                %v342 = vld [vmem:[%s204 + $0x220] sm:%s197]
                %343 = vst [vmem:[%s205 + $0x110] sm:%s197] %v342
                %v344 = vld [vmem:[%s204 + $0x228] sm:%s197]
                %345 = vst [vmem:[%s205 + $0x114] sm:%s197] %v344
                %v346 = vld [vmem:[%s204 + $0x230] sm:%s197]
                %347 = vst [vmem:[%s205 + $0x118] sm:%s197] %v346
                %v348 = vld [vmem:[%s204 + $0x238] sm:%s197]
                %349 = vst [vmem:[%s205 + $0x11c] sm:%s197] %v348
                %v350 = vld [vmem:[%s204 + $0x240] sm:%s197]
                %351 = vst [vmem:[%s205 + $0x120] sm:%s197] %v350
                %v352 = vld [vmem:[%s204 + $0x248] sm:%s197]
                %353 = vst [vmem:[%s205 + $0x124] sm:%s197] %v352
                %v354 = vld [vmem:[%s204 + $0x250] sm:%s197]
                %355 = vst [vmem:[%s205 + $0x128] sm:%s197] %v354
                %v356 = vld [vmem:[%s204 + $0x258] sm:%s197]
                %357 = vst [vmem:[%s205 + $0x12c] sm:%s197] %v356
                %v358 = vld [vmem:[%s204 + $0x260] sm:%s197]
                %359 = vst [vmem:[%s205 + $0x130] sm:%s197] %v358
                %v360 = vld [vmem:[%s204 + $0x268] sm:%s197]
                %361 = vst [vmem:[%s205 + $0x134] sm:%s197] %v360
                %v362 = vld [vmem:[%s204 + $0x270] sm:%s197]
                %363 = vst [vmem:[%s205 + $0x138] sm:%s197] %v362
                %v364 = vld [vmem:[%s204 + $0x278] sm:%s197]
                %365 = vst [vmem:[%s205 + $0x13c] sm:%s197] %v364
                %v366 = vld [vmem:[%s204 + $0x280] sm:%s197]
                %367 = vst [vmem:[%s205 + $0x140] sm:%s197] %v366
                %v368 = vld [vmem:[%s204 + $0x288] sm:%s197]
                %369 = vst [vmem:[%s205 + $0x144] sm:%s197] %v368
                %v370 = vld [vmem:[%s204 + $0x290] sm:%s197]
                %371 = vst [vmem:[%s205 + $0x148] sm:%s197] %v370
                %v372 = vld [vmem:[%s204 + $0x298] sm:%s197]
                %373 = vst [vmem:[%s205 + $0x14c] sm:%s197] %v372
                %v374 = vld [vmem:[%s204 + $0x2a0] sm:%s197]
                %375 = vst [vmem:[%s205 + $0x150] sm:%s197] %v374
                %v376 = vld [vmem:[%s204 + $0x2a8] sm:%s197]
                %377 = vst [vmem:[%s205 + $0x154] sm:%s197] %v376
                %v378 = vld [vmem:[%s204 + $0x2b0] sm:%s197]
                %379 = vst [vmem:[%s205 + $0x158] sm:%s197] %v378
                %v380 = vld [vmem:[%s204 + $0x2b8] sm:%s197]
                %381 = vst [vmem:[%s205 + $0x15c] sm:%s197] %v380
                %v382 = vld [vmem:[%s204 + $0x2c0] sm:%s197]
                %383 = vst [vmem:[%s205 + $0x160] sm:%s197] %v382
                %v384 = vld [vmem:[%s204 + $0x2c8] sm:%s197]
                %385 = vst [vmem:[%s205 + $0x164] sm:%s197] %v384
                %v386 = vld [vmem:[%s204 + $0x2d0] sm:%s197]
                %387 = vst [vmem:[%s205 + $0x168] sm:%s197] %v386
                %v388 = vld [vmem:[%s204 + $0x2d8] sm:%s197]
                %389 = vst [vmem:[%s205 + $0x16c] sm:%s197] %v388
                %v390 = vld [vmem:[%s204 + $0x2e0] sm:%s197]
                %391 = vst [vmem:[%s205 + $0x170] sm:%s197] %v390
                %v392 = vld [vmem:[%s204 + $0x2e8] sm:%s197]
                %393 = vst [vmem:[%s205 + $0x174] sm:%s197] %v392
                %v394 = vld [vmem:[%s204 + $0x2f0] sm:%s197]
                %395 = vst [vmem:[%s205 + $0x178] sm:%s197] %v394
                %v396 = vld [vmem:[%s204 + $0x2f8] sm:%s197]
                %397 = vst [vmem:[%s205 + $0x17c] sm:%s197] %v396
                %v398 = vld [vmem:[%s204 + $0x300] sm:%s197]
                %399 = vst [vmem:[%s205 + $0x180] sm:%s197] %v398
                %v400 = vld [vmem:[%s204 + $0x308] sm:%s197]
                %401 = vst [vmem:[%s205 + $0x184] sm:%s197] %v400
                %v402 = vld [vmem:[%s204 + $0x310] sm:%s197]
                %403 = vst [vmem:[%s205 + $0x188] sm:%s197] %v402
                %v404 = vld [vmem:[%s204 + $0x318] sm:%s197]
                %405 = vst [vmem:[%s205 + $0x18c] sm:%s197] %v404
                %v406 = vld [vmem:[%s204 + $0x320] sm:%s197]
                %407 = vst [vmem:[%s205 + $0x190] sm:%s197] %v406
                %v408 = vld [vmem:[%s204 + $0x328] sm:%s197]
                %409 = vst [vmem:[%s205 + $0x194] sm:%s197] %v408
                %v410 = vld [vmem:[%s204 + $0x330] sm:%s197]
                %411 = vst [vmem:[%s205 + $0x198] sm:%s197] %v410
                %v412 = vld [vmem:[%s204 + $0x338] sm:%s197]
                %413 = vst [vmem:[%s205 + $0x19c] sm:%s197] %v412
                %v414 = vld [vmem:[%s204 + $0x340] sm:%s197]
                %415 = vst [vmem:[%s205 + $0x1a0] sm:%s197] %v414
                %v416 = vld [vmem:[%s204 + $0x348] sm:%s197]
                %417 = vst [vmem:[%s205 + $0x1a4] sm:%s197] %v416
                %v418 = vld [vmem:[%s204 + $0x350] sm:%s197]
                %419 = vst [vmem:[%s205 + $0x1a8] sm:%s197] %v418
                %v420 = vld [vmem:[%s204 + $0x358] sm:%s197]
                %421 = vst [vmem:[%s205 + $0x1ac] sm:%s197] %v420
              $region41: #{_lambda_.5} parent=35 // loop_footer
                %s203 = sadd.s32 1, %s199
              $region42: #{_lambda_.5} parent=35 // loop_footer_branch
                %198 = sbr.rel target = $region38
              $region43: #{_lambda_.5} parent=35 // loop_exit
                _
            $region36: #{_lambda_.5} parent=27 // pred_fallthru
              _
          $region28: #{_lambda_.5} parent=23 // pred_fallthru
            _
          %658 = vnop
        $region24: #{_lambda_.5} parent=15 // pred_fallthru
          _
        // Predicated region
        $region62: #{_lambda_.5} parent=15 // pred_check
          %p659 = pneg %p94
        $region63: #{_lambda_.5} parent=15 // pred_check_branch
          %661 = sbr.rel (%p659) target = $region65
        $region64: #{_lambda_.5} parent=15 // pred_region
          %p662 = scmp.lt.s32.totalorder %s18, 1
          %s663 = scalar_select %p662, %s18, 1
          %s664 = scalar_lea.vmem %s2, %s663
        $region65: #{_lambda_.5} parent=15 // pred_fallthru
          _
        // Predicated region
        $region66: #{_lambda_.5} parent=15 // pred_check
          %p665 = pneg %p120
        $region67: #{_lambda_.5} parent=15 // pred_check_branch
          %667 = sbr.rel (%p665) target = $region69
        $region68: #{_lambda_.5} parent=15 // pred_region
          %p668 = scmp.lt.s32.totalorder %s18, 1
          %s669 = scalar_select %p668, %s18, 1
          %s670 = scalar_lea.vmem %s3, %s669
        $region69: #{_lambda_.5} parent=15 // pred_fallthru
          _
      $region16: #{_lambda_.5} parent=5 // pred_fallthru
        _
      %p671 = scmp.le.s32.totalorder 1, %s10
      %p672 = scmp.lt.s32.totalorder %s10, 5
      %p673 = pnand %p671, %p672
      %p674 = pneg %p673
      // Predicated region
      $region70: #{_lambda_.5} parent=5 // pred_check
        _
      $region71: #{_lambda_.5} parent=5 // pred_check_branch
        %676 = sbr.rel (%p673) target = $region73
      $region72: #{_lambda_.5} parent=5 // pred_region
        %s677 = ssub.s32 %s10, 1
        %s678 = sand.u32 %s61, 1
        %s679 = sand.u32 %s61, 1
        %s680 = smul.addr %s679, 432
        %s681 = scalar_lea.vmem [#allocation2], %s680
        // Predicated region
        $region74: #{_lambda_.5} parent=72 // pred_check
          %p682 = pneg %p74
        $region75: #{_lambda_.5} parent=72 // pred_check_branch
          %684 = sbr.rel (%p682) target = $region77
        $region76: #{_lambda_.5} parent=72 // pred_region
          _
        $region77: #{_lambda_.5} parent=72 // pred_fallthru
          _
        %p685 = scmp.lt.s32.totalorder %s19, 1
        %s686 = scalar_select %p685, %s19, 1
        %s687 = smul.addr %s686, 9
        %s688 = smul.addr %s687, 4
        %s689 = scalar_lea.vmem %s0, %s688
        %p690 = pneg %p48
        %p691 = pneg %p45
        %s692 = sand.u32 %s61, 1
        %s693 = sand.u32 %s61, 1
        %s694 = smul.addr %s693, 432
        %s695 = scalar_lea.vmem [#allocation2], %s694
        %p696 = pneg %p74
        %p697 = pneg %p71
        %p698 = scmp.lt.s32.totalorder %s20, 1
        %s699 = scalar_select %p698, %s20, 1
        %s700 = scalar_lea.vmem %s2, %s699
        %p701 = pneg %p100
        %p702 = pneg %p97
        %p703 = scmp.lt.s32.totalorder %s20, 1
        %s704 = scalar_select %p703, %s20, 1
        %s705 = scalar_lea.vmem %s3, %s704
        %p706 = pneg %p126
        %p707 = pneg %p123
        %p708 = pneg %p154
        %p709 = pneg %p151
        %s710 = sand.u32 %s141, 1
        %s711 = sand.u32 %s141, 1
        %s712 = smul.addr %s711, 8
        %s713 = scalar_lea.vmem [#allocation3], %s712
        %p714 = scmp.lt.s32.totalorder %s19, 1
        %s715 = scalar_select %p714, %s19, 1
        %s716 = smul.addr %s715, 9
        %s717 = smul.addr %s716, 4
        %s718 = scalar_lea.vmem %s0, %s717
        %p719 = scmp.lt.s32.totalorder %s20, 1
        %s720 = scalar_select %p719, %s20, 1
        %s721 = scalar_lea.vmem %s2, %s720
        %p722 = scmp.lt.s32.totalorder %s20, 1
        %s723 = scalar_select %p722, %s20, 1
        %s724 = scalar_lea.vmem %s3, %s723
        %v726 = vld [vmem:[%s718] sm:$0xff]
        %v727 = vld [vmem:[%s718 + $0x8] sm:$0xf]
        %v728 = vld [vmem:[%s718 + $0xc] sm:$0xff]
        %v729 = vld [vmem:[%s718 + $0x14] sm:$0xf]
        %v730 = vld [vmem:[%s681] sm:$0xf]
        %v731 = vld [vmem:[%s681 + $0x4] sm:$0xf]
        %v732 = vld [vmem:[%s681 + $0x8] sm:$0xf]
        %v733 = vld [vmem:[%s681 + $0xc] sm:$0xf]
        %v734 = vld [vmem:[%s681 + $0x10] sm:$0xf]
        %v735 = vld [vmem:[%s681 + $0x14] sm:$0xf]
        %v736 = vld [vmem:[%s681 + $0x18] sm:$0xf]
        %v737 = vld [vmem:[%s681 + $0x1c] sm:$0xf]
        %v738 = vld [vmem:[%s681 + $0x20] sm:$0xf]
        %v739 = vld [vmem:[%s681 + $0x24] sm:$0xf]
        %v740 = vld [vmem:[%s681 + $0x28] sm:$0xf]
        %v741 = vld [vmem:[%s681 + $0x2c] sm:$0xf]
        %v742 = vld [vmem:[%s681 + $0x30] sm:$0xf]
        %v743 = vld [vmem:[%s681 + $0x34] sm:$0xf]
        %v744 = vld [vmem:[%s681 + $0x38] sm:$0xf]
        %v745 = vld [vmem:[%s681 + $0x3c] sm:$0xf]
        %v746 = vld [vmem:[%s681 + $0x40] sm:$0xf]
        %v747 = vld [vmem:[%s681 + $0x44] sm:$0xf]
        %v748 = vld [vmem:[%s681 + $0x48] sm:$0xf]
        %v749 = vld [vmem:[%s681 + $0x4c] sm:$0xf]
        %v750 = vld [vmem:[%s681 + $0x50] sm:$0xf]
        %v751 = vld [vmem:[%s681 + $0x54] sm:$0xf]
        %v752 = vld [vmem:[%s681 + $0x58] sm:$0xf]
        %v753 = vld [vmem:[%s681 + $0x5c] sm:$0xf]
        %v754 = vld [vmem:[%s681 + $0x60] sm:$0xf]
        %v755 = vld [vmem:[%s681 + $0x64] sm:$0xf]
        %v756 = vld [vmem:[%s681 + $0x68] sm:$0xf]
        %v757 = vld [vmem:[%s681 + $0x6c] sm:$0xf]
        %v758 = vld [vmem:[%s681 + $0x70] sm:$0xf]
        %v759 = vld [vmem:[%s681 + $0x74] sm:$0xf]
        %v760 = vld [vmem:[%s681 + $0x78] sm:$0xf]
        %v761 = vld [vmem:[%s681 + $0x7c] sm:$0xf]
        %v762 = vld [vmem:[%s681 + $0x80] sm:$0xf]
        %v763 = vld [vmem:[%s681 + $0x84] sm:$0xf]
        %v764 = vld [vmem:[%s681 + $0x88] sm:$0xf]
        %v765 = vld [vmem:[%s681 + $0x8c] sm:$0xf]
        %v766 = vld [vmem:[%s718 + $0x18] sm:$0x11]
        %v767 = vld [vmem:[%s718 + $0x20] sm:$0x1]
        %s768 = scalar_lea.vmem %s681, 144 [#allocation2]
        %v769 = vld [vmem:[%s768] sm:$0xf]
        %v770 = vld [vmem:[%s768 + $0x4] sm:$0xf]
        %v771 = vld [vmem:[%s768 + $0x8] sm:$0xf]
        %v772 = vld [vmem:[%s768 + $0xc] sm:$0xf]
        %v773 = vld [vmem:[%s768 + $0x10] sm:$0xf]
        %v774 = vld [vmem:[%s768 + $0x14] sm:$0xf]
        %v775 = vld [vmem:[%s768 + $0x18] sm:$0xf]
        %v776 = vld [vmem:[%s768 + $0x1c] sm:$0xf]
        %v777 = vld [vmem:[%s768 + $0x20] sm:$0xf]
        %v778 = vld [vmem:[%s768 + $0x24] sm:$0xf]
        %v779 = vld [vmem:[%s768 + $0x28] sm:$0xf]
        %v780 = vld [vmem:[%s768 + $0x2c] sm:$0xf]
        %v781 = vld [vmem:[%s768 + $0x30] sm:$0xf]
        %v782 = vld [vmem:[%s768 + $0x34] sm:$0xf]
        %v783 = vld [vmem:[%s768 + $0x38] sm:$0xf]
        %v784 = vld [vmem:[%s768 + $0x3c] sm:$0xf]
        %v785 = vld [vmem:[%s768 + $0x40] sm:$0xf]
        %v786 = vld [vmem:[%s768 + $0x44] sm:$0xf]
        %v787 = vld [vmem:[%s768 + $0x48] sm:$0xf]
        %v788 = vld [vmem:[%s768 + $0x4c] sm:$0xf]
        %v789 = vld [vmem:[%s768 + $0x50] sm:$0xf]
        %v790 = vld [vmem:[%s768 + $0x54] sm:$0xf]
        %v791 = vld [vmem:[%s768 + $0x58] sm:$0xf]
        %v792 = vld [vmem:[%s768 + $0x5c] sm:$0xf]
        %v793 = vld [vmem:[%s768 + $0x60] sm:$0xf]
        %v794 = vld [vmem:[%s768 + $0x64] sm:$0xf]
        %v795 = vld [vmem:[%s768 + $0x68] sm:$0xf]
        %v796 = vld [vmem:[%s768 + $0x6c] sm:$0xf]
        %v797 = vld [vmem:[%s768 + $0x70] sm:$0xf]
        %v798 = vld [vmem:[%s768 + $0x74] sm:$0xf]
        %v799 = vld [vmem:[%s768 + $0x78] sm:$0xf]
        %v800 = vld [vmem:[%s768 + $0x7c] sm:$0xf]
        %v801 = vld [vmem:[%s768 + $0x80] sm:$0xf]
        %v802 = vld [vmem:[%s768 + $0x84] sm:$0xf]
        %v803 = vld [vmem:[%s768 + $0x88] sm:$0xf]
        %v804 = vld [vmem:[%s768 + $0x8c] sm:$0xf]
        %v811 = vunpack.c.l.b16 %v726
        %v812 = vunpack.c.h.b16 %v726
        %v813 = vunpack.c.l.b16 %v727
        %v814 = vunpack.c.l.b16 %v728
        %v815 = vunpack.c.h.b16 %v728
        %v816 = vunpack.c.l.b16 %v729
        %v817 = vunpack.c.l.b16 %v766
        %v818 = vunpack.c.h.b16 %v766
        %v819 = vunpack.c.l.b16 %v767
        %v820 = vpack.c.b16 %v814, %v811
        %v821 = vpack.c.b16 %v815, %v812
        %v822 = vpack.c.b16 %v816, %v813
        %v823 = vpack.c.b16 %v817, %v817
        %v824 = vpack.c.b16 %v818, %v818
        %v825 = vpack.c.b16 %v819, %v819
        %vm826 = vsmask.f32 7424
        %v828 = vshrl.u32 %v820, 16
        %v830 = vshll.u32 %v820, 16
        %v832 = vrot.slane %v830, 1
        %v833 = vor.u32 %v828, %v832
        %v835 = vshll.u32 %v823, 16
        %v837 = vrot.slane %v835, 1
        %v838 = vsel %vm826, %v833, %v837
        %v840 = vshrl.u32 %v821, 16
        %v842 = vshll.u32 %v821, 16
        %v844 = vrot.slane %v842, 1
        %v845 = vor.u32 %v840, %v844
        %v847 = vshll.u32 %v824, 16
        %v849 = vrot.slane %v847, 1
        %v850 = vsel %vm826, %v845, %v849
        %v852 = vshrl.u32 %v822, 16
        %v854 = vshll.u32 %v822, 16
        %v856 = vrot.slane %v854, 1
        %v857 = vor.u32 %v852, %v856
        %v859 = vshll.u32 %v825, 16
        %v861 = vrot.slane %v859, 1
        %v862 = vsel %vm826, %v857, %v861
        %v901 = vunpack.c.l.b16 %v769
        %v902 = vunpack.c.l.b16 %v770
        %v903 = vunpack.c.l.b16 %v771
        %v904 = vunpack.c.l.b16 %v772
        %v905 = vunpack.c.l.b16 %v773
        %v906 = vunpack.c.l.b16 %v774
        %v907 = vunpack.c.l.b16 %v775
        %v908 = vunpack.c.l.b16 %v776
        %v909 = vunpack.c.l.b16 %v777
        %v910 = vunpack.c.l.b16 %v778
        %v911 = vunpack.c.l.b16 %v779
        %v912 = vunpack.c.l.b16 %v780
        %v913 = vunpack.c.l.b16 %v781
        %v914 = vunpack.c.l.b16 %v782
        %v915 = vunpack.c.l.b16 %v783
        %v916 = vunpack.c.l.b16 %v784
        %v917 = vunpack.c.l.b16 %v785
        %v918 = vunpack.c.l.b16 %v786
        %v919 = vunpack.c.l.b16 %v787
        %v920 = vunpack.c.l.b16 %v788
        %v921 = vunpack.c.l.b16 %v789
        %v922 = vunpack.c.l.b16 %v790
        %v923 = vunpack.c.l.b16 %v791
        %v924 = vunpack.c.l.b16 %v792
        %v925 = vunpack.c.l.b16 %v793
        %v926 = vunpack.c.l.b16 %v794
        %v927 = vunpack.c.l.b16 %v795
        %v928 = vunpack.c.l.b16 %v796
        %v929 = vunpack.c.l.b16 %v797
        %v930 = vunpack.c.l.b16 %v798
        %v931 = vunpack.c.l.b16 %v799
        %v932 = vunpack.c.l.b16 %v800
        %v933 = vunpack.c.l.b16 %v801
        %v934 = vunpack.c.l.b16 %v802
        %v935 = vunpack.c.l.b16 %v803
        %v936 = vunpack.c.l.b16 %v804
        %v937 = vpack.c.b16 %v902, %v901
        %v938 = vpack.c.b16 %v904, %v903
        %v939 = vpack.c.b16 %v906, %v905
        %v940 = vpack.c.b16 %v908, %v907
        %v941 = vpack.c.b16 %v910, %v909
        %v942 = vpack.c.b16 %v912, %v911
        %v943 = vpack.c.b16 %v914, %v913
        %v944 = vpack.c.b16 %v916, %v915
        %v945 = vpack.c.b16 %v918, %v917
        %v946 = vpack.c.b16 %v920, %v919
        %v947 = vpack.c.b16 %v922, %v921
        %v948 = vpack.c.b16 %v924, %v923
        %v949 = vpack.c.b16 %v926, %v925
        %v950 = vpack.c.b16 %v928, %v927
        %v951 = vpack.c.b16 %v930, %v929
        %v952 = vpack.c.b16 %v932, %v931
        %v953 = vpack.c.b16 %v934, %v933
        %v954 = vpack.c.b16 %v936, %v935
        %vm973 = vcmask 261120
        %v975 = vsel %vm973, %v862, 0
        %977 = vmatpush.bf16.msra.mxu0 %v944
        %978 = vmatpush.bf16.msra.mxu0 %v943
        %979 = vmatpush.bf16.msra.mxu0 %v942
        %980 = vmatpush.bf16.msra.mxu0 %v941
        %981 = vmatpush.bf16.msra.mxu0 %v940
        %982 = vmatpush.bf16.msra.mxu0 %v939
        %983 = vmatpush.bf16.msra.mxu0 %v938
        %984 = vmatpush.bf16.msra.mxu0 %v937
        %985 = vmatmul.bf16.gmra.mxu0 %v838
        %v986 = vpop.f32.mrf.mxu0
        %v987 = vadd.f32 0.0, %v986
        %v988 = vpop.f32.mrf.mxu0
        %v989 = vadd.f32 0.0, %v988
        %990 = vdwg.mxu0
        %991 = vmatpush.bf16.msra.mxu0 %v952
        %992 = vmatpush.bf16.msra.mxu0 %v951
        %993 = vmatpush.bf16.msra.mxu0 %v950
        %994 = vmatpush.bf16.msra.mxu0 %v949
        %995 = vmatpush.bf16.msra.mxu0 %v948
        %996 = vmatpush.bf16.msra.mxu0 %v947
        %997 = vmatpush.bf16.msra.mxu0 %v946
        %998 = vmatpush.bf16.msra.mxu0 %v945
        %999 = vmatmul.bf16.gmra.mxu0 %v850
        %v1000 = vpop.f32.mrf.mxu0
        %v1001 = vadd.f32 %v987, %v1000
        %v1002 = vpop.f32.mrf.mxu0
        %v1003 = vadd.f32 %v989, %v1002
        %1004 = vdwg.mxu0
        %1005 = vmatpush.bf16.msra.mxu0 0
        %1006 = vmatpush.bf16.msra.mxu0 0
        %1007 = vmatpush.bf16.msra.mxu0 0
        %1008 = vmatpush.bf16.msra.mxu0 0
        %1009 = vmatpush.bf16.msra.mxu0 0
        %1010 = vmatpush.bf16.msra.mxu0 0
        %1011 = vmatpush.bf16.msra.mxu0 %v954
        %1012 = vmatpush.bf16.msra.mxu0 %v953
        %1013 = vmatmul.bf16.gmra.mxu0 %v975
        %v1014 = vpop.f32.mrf.mxu0
        %v1015 = vadd.f32 %v1001, %v1014
        %v1016 = vpop.f32.mrf.mxu0
        %v1017 = vadd.f32 %v1003, %v1016
        %1018 = vdwg.mxu0
        %v1057 = vunpack.c.l.b16 %v730
        %v1058 = vunpack.c.l.b16 %v731
        %v1059 = vunpack.c.l.b16 %v732
        %v1060 = vunpack.c.l.b16 %v733
        %v1061 = vunpack.c.l.b16 %v734
        %v1062 = vunpack.c.l.b16 %v735
        %v1063 = vunpack.c.l.b16 %v736
        %v1064 = vunpack.c.l.b16 %v737
        %v1065 = vunpack.c.l.b16 %v738
        %v1066 = vunpack.c.l.b16 %v739
        %v1067 = vunpack.c.l.b16 %v740
        %v1068 = vunpack.c.l.b16 %v741
        %v1069 = vunpack.c.l.b16 %v742
        %v1070 = vunpack.c.l.b16 %v743
        %v1071 = vunpack.c.l.b16 %v744
        %v1072 = vunpack.c.l.b16 %v745
        %v1073 = vunpack.c.l.b16 %v746
        %v1074 = vunpack.c.l.b16 %v747
        %v1075 = vunpack.c.l.b16 %v748
        %v1076 = vunpack.c.l.b16 %v749
        %v1077 = vunpack.c.l.b16 %v750
        %v1078 = vunpack.c.l.b16 %v751
        %v1079 = vunpack.c.l.b16 %v752
        %v1080 = vunpack.c.l.b16 %v753
        %v1081 = vunpack.c.l.b16 %v754
        %v1082 = vunpack.c.l.b16 %v755
        %v1083 = vunpack.c.l.b16 %v756
        %v1084 = vunpack.c.l.b16 %v757
        %v1085 = vunpack.c.l.b16 %v758
        %v1086 = vunpack.c.l.b16 %v759
        %v1087 = vunpack.c.l.b16 %v760
        %v1088 = vunpack.c.l.b16 %v761
        %v1089 = vunpack.c.l.b16 %v762
        %v1090 = vunpack.c.l.b16 %v763
        %v1091 = vunpack.c.l.b16 %v764
        %v1092 = vunpack.c.l.b16 %v765
        %v1093 = vpack.c.b16 %v1058, %v1057
        %v1094 = vpack.c.b16 %v1060, %v1059
        %v1095 = vpack.c.b16 %v1062, %v1061
        %v1096 = vpack.c.b16 %v1064, %v1063
        %v1097 = vpack.c.b16 %v1066, %v1065
        %v1098 = vpack.c.b16 %v1068, %v1067
        %v1099 = vpack.c.b16 %v1070, %v1069
        %v1100 = vpack.c.b16 %v1072, %v1071
        %v1101 = vpack.c.b16 %v1074, %v1073
        %v1102 = vpack.c.b16 %v1076, %v1075
        %v1103 = vpack.c.b16 %v1078, %v1077
        %v1104 = vpack.c.b16 %v1080, %v1079
        %v1105 = vpack.c.b16 %v1082, %v1081
        %v1106 = vpack.c.b16 %v1084, %v1083
        %v1107 = vpack.c.b16 %v1086, %v1085
        %v1108 = vpack.c.b16 %v1088, %v1087
        %v1109 = vpack.c.b16 %v1090, %v1089
        %v1110 = vpack.c.b16 %v1092, %v1091
        %v1129 = vsel %vm973, %v822, 0
        %1131 = vmatpush.bf16.msra.mxu0 %v1100
        %1132 = vmatpush.bf16.msra.mxu0 %v1099
        %1133 = vmatpush.bf16.msra.mxu0 %v1098
        %1134 = vmatpush.bf16.msra.mxu0 %v1097
        %1135 = vmatpush.bf16.msra.mxu0 %v1096
        %1136 = vmatpush.bf16.msra.mxu0 %v1095
        %1137 = vmatpush.bf16.msra.mxu0 %v1094
        %1138 = vmatpush.bf16.msra.mxu0 %v1093
        %1139 = vmatmul.bf16.gmra.mxu0 %v820
        %v1140 = vpop.f32.mrf.mxu0
        %v1141 = vadd.f32 %v1015, %v1140
        %v1142 = vpop.f32.mrf.mxu0
        %v1143 = vadd.f32 %v1017, %v1142
        %1144 = vdwg.mxu0
        %1145 = vmatpush.bf16.msra.mxu0 %v1108
        %1146 = vmatpush.bf16.msra.mxu0 %v1107
        %1147 = vmatpush.bf16.msra.mxu0 %v1106
        %1148 = vmatpush.bf16.msra.mxu0 %v1105
        %1149 = vmatpush.bf16.msra.mxu0 %v1104
        %1150 = vmatpush.bf16.msra.mxu0 %v1103
        %1151 = vmatpush.bf16.msra.mxu0 %v1102
        %1152 = vmatpush.bf16.msra.mxu0 %v1101
        %1153 = vmatmul.bf16.gmra.mxu0 %v821
        %v1154 = vpop.f32.mrf.mxu0
        %v1155 = vadd.f32 %v1141, %v1154
        %v1156 = vpop.f32.mrf.mxu0
        %v1157 = vadd.f32 %v1143, %v1156
        %1158 = vdwg.mxu0
        %1159 = vmatpush.bf16.msra.mxu0 0
        %1160 = vmatpush.bf16.msra.mxu0 0
        %1161 = vmatpush.bf16.msra.mxu0 0
        %1162 = vmatpush.bf16.msra.mxu0 0
        %1163 = vmatpush.bf16.msra.mxu0 0
        %1164 = vmatpush.bf16.msra.mxu0 0
        %1165 = vmatpush.bf16.msra.mxu0 %v1110
        %1166 = vmatpush.bf16.msra.mxu0 %v1109
        %1167 = vmatmul.bf16.gmra.mxu0 %v1129
        %v1168 = vpop.f32.mrf.mxu0
        %v1169 = vadd.f32 %v1155, %v1168
        %v1170 = vpop.f32.mrf.mxu0
        %v1171 = vadd.f32 %v1157, %v1170
        %1172 = vdwg.mxu0
        %v1173 = vld [vmem:[%s718] sm:$0xee]
        %v1174 = vld [vmem:[%s718 + $0x8] sm:$0xe]
        %s1175 = scalar_lea.vmem %s681, 288 [#allocation2]
        %v1176 = vld [vmem:[%s1175] sm:$0xf]
        %v1177 = vld [vmem:[%s1175 + $0x4] sm:$0xf]
        %v1178 = vld [vmem:[%s1175 + $0x8] sm:$0xf]
        %v1179 = vld [vmem:[%s1175 + $0xc] sm:$0xf]
        %v1180 = vld [vmem:[%s1175 + $0x10] sm:$0xf]
        %v1181 = vld [vmem:[%s1175 + $0x14] sm:$0xf]
        %v1182 = vld [vmem:[%s1175 + $0x18] sm:$0xf]
        %v1183 = vld [vmem:[%s1175 + $0x1c] sm:$0xf]
        %v1184 = vld [vmem:[%s1175 + $0x20] sm:$0xf]
        %v1185 = vld [vmem:[%s1175 + $0x24] sm:$0xf]
        %v1186 = vld [vmem:[%s1175 + $0x28] sm:$0xf]
        %v1187 = vld [vmem:[%s1175 + $0x2c] sm:$0xf]
        %v1188 = vld [vmem:[%s1175 + $0x30] sm:$0xf]
        %v1189 = vld [vmem:[%s1175 + $0x34] sm:$0xf]
        %v1190 = vld [vmem:[%s1175 + $0x38] sm:$0xf]
        %v1191 = vld [vmem:[%s1175 + $0x3c] sm:$0xf]
        %v1192 = vld [vmem:[%s1175 + $0x40] sm:$0xf]
        %v1193 = vld [vmem:[%s1175 + $0x44] sm:$0xf]
        %v1194 = vld [vmem:[%s1175 + $0x48] sm:$0xf]
        %v1195 = vld [vmem:[%s1175 + $0x4c] sm:$0xf]
        %v1196 = vld [vmem:[%s1175 + $0x50] sm:$0xf]
        %v1197 = vld [vmem:[%s1175 + $0x54] sm:$0xf]
        %v1198 = vld [vmem:[%s1175 + $0x58] sm:$0xf]
        %v1199 = vld [vmem:[%s1175 + $0x5c] sm:$0xf]
        %v1200 = vld [vmem:[%s1175 + $0x60] sm:$0xf]
        %v1201 = vld [vmem:[%s1175 + $0x64] sm:$0xf]
        %v1202 = vld [vmem:[%s1175 + $0x68] sm:$0xf]
        %v1203 = vld [vmem:[%s1175 + $0x6c] sm:$0xf]
        %v1204 = vld [vmem:[%s1175 + $0x70] sm:$0xf]
        %v1205 = vld [vmem:[%s1175 + $0x74] sm:$0xf]
        %v1206 = vld [vmem:[%s1175 + $0x78] sm:$0xf]
        %v1207 = vld [vmem:[%s1175 + $0x7c] sm:$0xf]
        %v1208 = vld [vmem:[%s1175 + $0x80] sm:$0xf]
        %v1209 = vld [vmem:[%s1175 + $0x84] sm:$0xf]
        %v1210 = vld [vmem:[%s1175 + $0x88] sm:$0xf]
        %v1211 = vld [vmem:[%s1175 + $0x8c] sm:$0xf]
        %v1214 = vunpack.c.l.b16 %v1173
        %v1215 = vunpack.c.h.b16 %v1173
        %v1216 = vunpack.c.l.b16 %v1174
        %v1217 = vpack.c.b16 %v814, %v1214
        %v1218 = vpack.c.b16 %v815, %v1215
        %v1219 = vpack.c.b16 %v816, %v1216
        %vm1220 = vcmask 1046528
        %v1221 = vrot.slane %v1217, 1
        %v1222 = vrot.slane %v823, 1
        %v1223 = vsel %vm1220, %v1221, %v1222
        %v1224 = vrot.slane %v1218, 1
        %v1225 = vrot.slane %v824, 1
        %v1226 = vsel %vm1220, %v1224, %v1225
        %v1227 = vrot.slane %v1219, 1
        %v1228 = vrot.slane %v825, 1
        %v1229 = vsel %vm1220, %v1227, %v1228
        %v1268 = vunpack.c.l.b16 %v1176
        %v1269 = vunpack.c.l.b16 %v1177
        %v1270 = vunpack.c.l.b16 %v1178
        %v1271 = vunpack.c.l.b16 %v1179
        %v1272 = vunpack.c.l.b16 %v1180
        %v1273 = vunpack.c.l.b16 %v1181
        %v1274 = vunpack.c.l.b16 %v1182
        %v1275 = vunpack.c.l.b16 %v1183
        %v1276 = vunpack.c.l.b16 %v1184
        %v1277 = vunpack.c.l.b16 %v1185
        %v1278 = vunpack.c.l.b16 %v1186
        %v1279 = vunpack.c.l.b16 %v1187
        %v1280 = vunpack.c.l.b16 %v1188
        %v1281 = vunpack.c.l.b16 %v1189
        %v1282 = vunpack.c.l.b16 %v1190
        %v1283 = vunpack.c.l.b16 %v1191
        %v1284 = vunpack.c.l.b16 %v1192
        %v1285 = vunpack.c.l.b16 %v1193
        %v1286 = vunpack.c.l.b16 %v1194
        %v1287 = vunpack.c.l.b16 %v1195
        %v1288 = vunpack.c.l.b16 %v1196
        %v1289 = vunpack.c.l.b16 %v1197
        %v1290 = vunpack.c.l.b16 %v1198
        %v1291 = vunpack.c.l.b16 %v1199
        %v1292 = vunpack.c.l.b16 %v1200
        %v1293 = vunpack.c.l.b16 %v1201
        %v1294 = vunpack.c.l.b16 %v1202
        %v1295 = vunpack.c.l.b16 %v1203
        %v1296 = vunpack.c.l.b16 %v1204
        %v1297 = vunpack.c.l.b16 %v1205
        %v1298 = vunpack.c.l.b16 %v1206
        %v1299 = vunpack.c.l.b16 %v1207
        %v1300 = vunpack.c.l.b16 %v1208
        %v1301 = vunpack.c.l.b16 %v1209
        %v1302 = vunpack.c.l.b16 %v1210
        %v1303 = vunpack.c.l.b16 %v1211
        %v1304 = vpack.c.b16 %v1269, %v1268
        %v1305 = vpack.c.b16 %v1271, %v1270
        %v1306 = vpack.c.b16 %v1273, %v1272
        %v1307 = vpack.c.b16 %v1275, %v1274
        %v1308 = vpack.c.b16 %v1277, %v1276
        %v1309 = vpack.c.b16 %v1279, %v1278
        %v1310 = vpack.c.b16 %v1281, %v1280
        %v1311 = vpack.c.b16 %v1283, %v1282
        %v1312 = vpack.c.b16 %v1285, %v1284
        %v1313 = vpack.c.b16 %v1287, %v1286
        %v1314 = vpack.c.b16 %v1289, %v1288
        %v1315 = vpack.c.b16 %v1291, %v1290
        %v1316 = vpack.c.b16 %v1293, %v1292
        %v1317 = vpack.c.b16 %v1295, %v1294
        %v1318 = vpack.c.b16 %v1297, %v1296
        %v1319 = vpack.c.b16 %v1299, %v1298
        %v1320 = vpack.c.b16 %v1301, %v1300
        %v1321 = vpack.c.b16 %v1303, %v1302
        %v1341 = vsel %vm973, %v1229, 0
        %1343 = vmatpush.bf16.msra.mxu0 %v1311
        %1344 = vmatpush.bf16.msra.mxu0 %v1310
        %1345 = vmatpush.bf16.msra.mxu0 %v1309
        %1346 = vmatpush.bf16.msra.mxu0 %v1308
        %1347 = vmatpush.bf16.msra.mxu0 %v1307
        %1348 = vmatpush.bf16.msra.mxu0 %v1306
        %1349 = vmatpush.bf16.msra.mxu0 %v1305
        %1350 = vmatpush.bf16.msra.mxu0 %v1304
        %1351 = vmatmul.bf16.gmra.mxu0 %v1223
        %v1352 = vpop.f32.mrf.mxu0
        %v1353 = vadd.f32 0.0, %v1352
        %v1354 = vpop.f32.mrf.mxu0
        %v1355 = vadd.f32 0.0, %v1354
        %1356 = vdwg.mxu0
        %1357 = vmatpush.bf16.msra.mxu0 %v1319
        %1358 = vmatpush.bf16.msra.mxu0 %v1318
        %1359 = vmatpush.bf16.msra.mxu0 %v1317
        %1360 = vmatpush.bf16.msra.mxu0 %v1316
        %1361 = vmatpush.bf16.msra.mxu0 %v1315
        %1362 = vmatpush.bf16.msra.mxu0 %v1314
        %1363 = vmatpush.bf16.msra.mxu0 %v1313
        %1364 = vmatpush.bf16.msra.mxu0 %v1312
        %1365 = vmatmul.bf16.gmra.mxu0 %v1226
        %v1366 = vpop.f32.mrf.mxu0
        %v1367 = vadd.f32 %v1353, %v1366
        %v1368 = vpop.f32.mrf.mxu0
        %v1369 = vadd.f32 %v1355, %v1368
        %1370 = vdwg.mxu0
        %1371 = vmatpush.bf16.msra.mxu0 0
        %1372 = vmatpush.bf16.msra.mxu0 0
        %1373 = vmatpush.bf16.msra.mxu0 0
        %1374 = vmatpush.bf16.msra.mxu0 0
        %1375 = vmatpush.bf16.msra.mxu0 0
        %1376 = vmatpush.bf16.msra.mxu0 0
        %1377 = vmatpush.bf16.msra.mxu0 %v1321
        %1378 = vmatpush.bf16.msra.mxu0 %v1320
        %1379 = vmatmul.bf16.gmra.mxu0 %v1341
        %v1380 = vpop.f32.mrf.mxu0
        %v1381 = vadd.f32 %v1367, %v1380
        %v1382 = vpop.f32.mrf.mxu0
        %v1383 = vadd.f32 %v1369, %v1382
        %1384 = vdwg.mxu0
        %v1385 = vadd.f32 %v1169, %v1381
        %v1386 = vadd.f32 %v1171, %v1383
        %v1387 = vld [vmem:[%s721] sm:$0x1]
        %v1389 = vperm.slane %v1387, 0
        %v1391 = vmul.f32 %v1385, %v1389
        %v1392 = vmul.f32 %v1386, %v1389
        %v1393 = vld [vmem:[%s724] sm:$0x1]
        %v1395 = vperm.slane %v1393, 0
        %v1397 = vadd.f32 %v1391, %v1395
        %v1398 = vadd.f32 %v1392, %v1395
        %v1399 = vsub.f32 0.0, %v1397
        %v1400 = vsub.f32 0.0, %v1398
        %v1401 = vmul.f32 %v1399, 1.442695
        %v1402 = vpow.pop %v1401
        %v1403 = vmul.f32 %v1400, 1.442695
        %v1404 = vpow.pop %v1403
        %v1405 = vadd.f32 %v1402, 1.0
        %v1406 = vadd.f32 %v1404, 1.0
        %v1407 = vrcp.pop %v1405
        %v1408 = vrcp.pop %v1406
        %v1409 = vmul.f32 %v1397, %v1407
        %v1410 = vmul.f32 %v1398, %v1408
        %v1411 = vpack.c.bf16 %v1409, %v1409
        %v1412 = vpack.c.bf16 %v1410, %v1410
        %1413 = vst [vmem:[%s713] sm:$0xf] %v1411
        %1414 = vst [vmem:[%s713 + $0x4] sm:$0xf] %v1412
        %s1415 = sand.u32 %s141, 1
        %s1416 = sand.u32 %s141, 1
        %s1417 = smul.addr %s1416, 8
        %s1418 = scalar_lea.vmem [#allocation3], %s1417
        // Predicated region
        $region78: #{_lambda_.5} parent=72 // pred_check
          %p1419 = pneg %p151
        $region79: #{_lambda_.5} parent=72 // pred_check_branch
          %1421 = sbr.rel (%p1419) target = $region81
        $region80: #{_lambda_.5} parent=72 // pred_region
          %s1422 = smul.addr %s19, 4
          %s1423 = sadd.s32 %s20, %s1422
          %s1424 = smul.addr %s1423, 4
          %s1425 = scalar_lea.vmem %s4, %s1424
          // Predicated region
          $region82: #{_lambda_.5} parent=80 // pred_check
            _
          $region83: #{_lambda_.5} parent=80 // pred_check_branch
            %1427 = sbr.rel (0) target = $region85
          $region84: #{_lambda_.5} parent=80 // pred_region
            // Predicated region
            $region86: #{_lambda_.5} parent=84 // pred_check
              _
            $region87: #{_lambda_.5} parent=84 // pred_check_branch
              %1429 = sbr.rel target = $region89
            $region88: #{_lambda_.5} parent=84 // pred_region
              // Predicated region
              $region101: #{_lambda_.5} parent=88 // pred_check
                _
              $region102: #{_lambda_.5} parent=88 // pred_check_branch
                %1447 = sbr.rel (0) target = $region104
              $region103: #{_lambda_.5} parent=88 // pred_region
                loop: start=0, step=1, limit=1
                $region105: #{_lambda_.5} parent=103 // loop_pre_header
                  _
                $region106: #{_lambda_.5} parent=103 // loop_header
                  %s1449 = sphi 0, %s1453
                  %p1450 = scmp.ge.s32.totalorder %s1449, 1
                  %s1454 = sphi %s1418, %s1418
                  %s1455 = sphi %s1425, %s1425
                $region107: #{_lambda_.5} parent=103 // loop_header_branch
                  %1452 = sbr.rel (%p1450) target = $region111
                $region108: #{_lambda_.5} parent=103 // loop_body
                  _
                $region109: #{_lambda_.5} parent=103 // loop_footer
                  %s1453 = sadd.s32 1, %s1449
                $region110: #{_lambda_.5} parent=103 // loop_footer_branch
                  %1448 = sbr.rel target = $region106
                $region111: #{_lambda_.5} parent=103 // loop_exit
                  _
                %s1457 = ssub.s32 16, 1
                loop: start=0, step=1, limit=1
                $region112: #{_lambda_.5} parent=103 // loop_pre_header
                  _
                $region113: #{_lambda_.5} parent=103 // loop_header
                  %s1459 = sphi 0, %s1463
                  %p1460 = scmp.ge.s32.totalorder %s1459, 1
                  %s1464 = sphi %s1418, %s1418
                  %s1465 = sphi %s1425, %s1425
                $region114: #{_lambda_.5} parent=103 // loop_header_branch
                  %1462 = sbr.rel (%p1460) target = $region118
                $region115: #{_lambda_.5} parent=103 // loop_body
                  %v1466 = vld [vmem:[%s1464] sm:%s1457]
                  %1467 = vst [vmem:[%s1465] sm:%s1457] %v1466
                  %v1468 = vld [vmem:[%s1464 + $0x4] sm:%s1457]
                  %1469 = vst [vmem:[%s1465 + $0x8] sm:%s1457] %v1468
                $region116: #{_lambda_.5} parent=103 // loop_footer
                  %s1463 = sadd.s32 1, %s1459
                $region117: #{_lambda_.5} parent=103 // loop_footer_branch
                  %1458 = sbr.rel target = $region113
                $region118: #{_lambda_.5} parent=103 // loop_exit
                  _
              $region104: #{_lambda_.5} parent=88 // pred_fallthru
                _
            $region89: #{_lambda_.5} parent=84 // pred_fallthru
              _
            // Predicated region
            $region90: #{_lambda_.5} parent=84 // pred_check
              _
            $region91: #{_lambda_.5} parent=84 // pred_check_branch
              %1431 = sbr.rel (0) target = $region93
            $region92: #{_lambda_.5} parent=84 // pred_region
              %s1433 = ssub.s32 16, 1
              loop: start=0, step=1, limit=1
              $region94: #{_lambda_.5} parent=92 // loop_pre_header
                _
              $region95: #{_lambda_.5} parent=92 // loop_header
                %s1435 = sphi 0, %s1439
                %p1436 = scmp.ge.s32.totalorder %s1435, 1
                %s1440 = sphi %s1418, %s1418
                %s1441 = sphi %s1425, %s1425
              $region96: #{_lambda_.5} parent=92 // loop_header_branch
                %1438 = sbr.rel (%p1436) target = $region100
              $region97: #{_lambda_.5} parent=92 // loop_body
                %v1442 = vld [vmem:[%s1440] sm:%s1433]
                %1443 = vst [vmem:[%s1441] sm:%s1433] %v1442
                %v1444 = vld [vmem:[%s1440 + $0x4] sm:%s1433]
                %1445 = vst [vmem:[%s1441 + $0x8] sm:%s1433] %v1444
              $region98: #{_lambda_.5} parent=92 // loop_footer
                %s1439 = sadd.s32 1, %s1435
              $region99: #{_lambda_.5} parent=92 // loop_footer_branch
                %1434 = sbr.rel target = $region95
              $region100: #{_lambda_.5} parent=92 // loop_exit
                _
            $region93: #{_lambda_.5} parent=84 // pred_fallthru
              _
          $region85: #{_lambda_.5} parent=80 // pred_fallthru
            _
          %1470 = vnop
        $region81: #{_lambda_.5} parent=72 // pred_fallthru
          _
      $region73: #{_lambda_.5} parent=5 // pred_fallthru
        _
      %p1471 = scmp.le.s32.totalorder 2, %s10
      // Predicated region
      $region119: #{_lambda_.5} parent=5 // pred_check
        %p1472 = pneg %p1471
      $region120: #{_lambda_.5} parent=5 // pred_check_branch
        %1474 = sbr.rel (%p1472) target = $region122
      $region121: #{_lambda_.5} parent=5 // pred_region
        %s1475 = ssub.s32 %s10, 2
        // Predicated region
        $region123: #{_lambda_.5} parent=121 // pred_check
          %p1476 = pneg %p157
        $region124: #{_lambda_.5} parent=121 // pred_check_branch
          %1478 = sbr.rel (%p1476) target = $region126
        $region125: #{_lambda_.5} parent=121 // pred_region
          %s1479 = sand.u32 %s142, 1
          %s1480 = sand.u32 %s142, 1
          %s1481 = smul.addr %s1480, 8
          %s1482 = scalar_lea.vmem [#allocation3], %s1481
        $region126: #{_lambda_.5} parent=121 // pred_fallthru
          _
      $region122: #{_lambda_.5} parent=5 // pred_fallthru
        _
    $region6: #{_lambda_.5} parent=1 // loop_footer
      %s14 = sadd.s32 1, %s10
    $region7: #{_lambda_.5} parent=1 // loop_footer_branch
      %9 = sbr.rel target = $region3
    $region8: #{_lambda_.5} parent=1 // loop_exit
      _

// kernel: _lambda_.7
$region0: #{_lambda_.7}
  #allocation0 [shape = 'u32[]', space=smem, size = 0x4, offset = 0x4, fixed_abs, tag = 'smem constant byte address 0x4 - core index']
  #allocation1 [shape = 'u32[72,128]{1,0:T(1,128)}', space=vmem, size = 0x9000, scoped, tag = 'internal scratch']
  %s0 = inlined_call_operand.vmem [shape: bf16[512,48], index: 0, kind: input, shape index: {}]
  %s1 = inlined_call_operand.vmem [shape: bf16[48,32], index: 1, kind: input, shape index: {}]
  %s2 = inlined_call_operand.vmem [shape: f32[1,32], index: 2, kind: input, shape index: {}]
  %s3 = inlined_call_operand.vmem [shape: f32[1,32], index: 3, kind: input, shape index: {}]
  %s4 = inlined_call_operand.hbm [shape: f32[512,32], index: 4, kind: output, shape index: {}]
  %s5 = sld [smem:[#allocation0]]
  $region49: #{_lambda_.7} parent=0
    _
  %s7 = ssub.s32 1, %s5
  %s8 = scalar_select 0, %s7, %s5
  $region1: #{_lambda_.7} parent=0
    #allocation2 [shape = 'u8[262144]{0}', space=vmem, size = 0x40000, scoped, tag = 'output window, operand 0']
    #allocation3 [shape = 's32[2]{0}', space=sflag, size = 0x8, scoped, tag = 'scoped memory for _lambda_.7']
    %9 = vsyncpa [#allocation3], 0
    %s10 = scalar_lea.sflag [#allocation3], 1
    %11 = vsyncpa %s10, 0
    loop: start=0, step=1, limit=4
    $region2: #{_lambda_.7} parent=1 // loop_pre_header
      _
    $region3: #{_lambda_.7} parent=1 // loop_header
      %s13 = sphi 0, %s17
      %p14 = scmp.ge.s32.totalorder %s13, 4
      %s23 = sphi 0, %s25
      %s26 = sphi 0, %s23
      %s27 = sphi 0, %s26
      %s43 = sphi 0, %s27
      %s47 = sphi 0, %s47
      %s49 = sphi 0, %s47
      %s50 = sphi 0, %s49
      %s64 = sphi 0, %s50
      %s68 = sphi 0, %s68
      %s70 = sphi 0, %s68
      %s71 = sphi 0, %s70
      %s85 = sphi 0, %s71
      %s89 = sphi 0, %s89
      %s91 = sphi 0, %s89
      %s92 = sphi 0, %s91
      %s106 = sphi 0, %s92
      %s112 = sphi 0, %s114
      %s115 = sphi 0, %s112
      %s116 = sphi 0, %s115
      %s132 = sphi 0, %s116
    $region4: #{_lambda_.7} parent=1 // loop_header_branch
      %16 = sbr.rel (%p14) target = $region8
    $region5: #{_lambda_.7} parent=1 // loop_body
      %s18 = ssub.s32 %s13, 1
      %s19 = ssub.s32 %s13, 2
      %s20 = sadd.s32 %s13, 1
      %s21 = ssub.s32 %s13, %s20
      %p22 = scmp.eq.s32.totalorder %s21, 0
      %s24 = sadd.s32 %s23, 1
      %s25 = scalar_select %p22, %s23, %s24
      %p28 = pneg %p22
      %p29 = scmp.eq.s32.totalorder %s13, 1
      %p30 = por %p28, %p29
      %p31 = scmp.ne.s32.totalorder %s23, %s26
      %p32 = scmp.eq.s32.totalorder %s13, 0
      %p33 = por %p31, %p32
      %p34 = scmp.ne.s32.totalorder %s23, %s26
      %p35 = scmp.eq.s32.totalorder %s18, 1
      %p36 = por %p34, %p35
      %p37 = scmp.ne.s32.totalorder %s26, %s27
      %p38 = scmp.eq.s32.totalorder %s18, 0
      %p39 = por %p37, %p38
      %p40 = scmp.ne.s32.totalorder %s26, %s27
      %p41 = scmp.eq.s32.totalorder %s19, 1
      %p42 = por %p40, %p41
      %p44 = scmp.ne.s32.totalorder %s27, %s43
      %p45 = scmp.eq.s32.totalorder %s19, 0
      %p46 = por %p44, %p45
      %s48 = sadd.s32 %s47, 1
      %p51 = scmp.eq.s32.totalorder %s13, 1
      %p52 = scmp.ne.s32.totalorder %s47, %s49
      %p53 = scmp.eq.s32.totalorder %s13, 0
      %p54 = por %p52, %p53
      %p55 = scmp.ne.s32.totalorder %s47, %s49
      %p56 = scmp.eq.s32.totalorder %s18, 1
      %p57 = por %p55, %p56
      %p58 = scmp.ne.s32.totalorder %s49, %s50
      %p59 = scmp.eq.s32.totalorder %s18, 0
      %p60 = por %p58, %p59
      %p61 = scmp.ne.s32.totalorder %s49, %s50
      %p62 = scmp.eq.s32.totalorder %s19, 1
      %p63 = por %p61, %p62
      %p65 = scmp.ne.s32.totalorder %s50, %s64
      %p66 = scmp.eq.s32.totalorder %s19, 0
      %p67 = por %p65, %p66
      %s69 = sadd.s32 %s68, 1
      %p72 = scmp.eq.s32.totalorder %s13, 1
      %p73 = scmp.ne.s32.totalorder %s68, %s70
      %p74 = scmp.eq.s32.totalorder %s13, 0
      %p75 = por %p73, %p74
      %p76 = scmp.ne.s32.totalorder %s68, %s70
      %p77 = scmp.eq.s32.totalorder %s18, 1
      %p78 = por %p76, %p77
      %p79 = scmp.ne.s32.totalorder %s70, %s71
      %p80 = scmp.eq.s32.totalorder %s18, 0
      %p81 = por %p79, %p80
      %p82 = scmp.ne.s32.totalorder %s70, %s71
      %p83 = scmp.eq.s32.totalorder %s19, 1
      %p84 = por %p82, %p83
      %p86 = scmp.ne.s32.totalorder %s71, %s85
      %p87 = scmp.eq.s32.totalorder %s19, 0
      %p88 = por %p86, %p87
      %s90 = sadd.s32 %s89, 1
      %p93 = scmp.eq.s32.totalorder %s13, 1
      %p94 = scmp.ne.s32.totalorder %s89, %s91
      %p95 = scmp.eq.s32.totalorder %s13, 0
      %p96 = por %p94, %p95
      %p97 = scmp.ne.s32.totalorder %s89, %s91
      %p98 = scmp.eq.s32.totalorder %s18, 1
      %p99 = por %p97, %p98
      %p100 = scmp.ne.s32.totalorder %s91, %s92
      %p101 = scmp.eq.s32.totalorder %s18, 0
      %p102 = por %p100, %p101
      %p103 = scmp.ne.s32.totalorder %s91, %s92
      %p104 = scmp.eq.s32.totalorder %s19, 1
      %p105 = por %p103, %p104
      %p107 = scmp.ne.s32.totalorder %s92, %s106
      %p108 = scmp.eq.s32.totalorder %s19, 0
      %p109 = por %p107, %p108
      %s110 = ssub.s32 %s13, %s20
      %p111 = scmp.eq.s32.totalorder %s110, 0
      %s113 = sadd.s32 %s112, 1
      %s114 = scalar_select %p111, %s112, %s113
      %p117 = pneg %p111
      %p118 = scmp.eq.s32.totalorder %s13, 1
      %p119 = por %p117, %p118
      %p120 = scmp.ne.s32.totalorder %s112, %s115
      %p121 = scmp.eq.s32.totalorder %s13, 0
      %p122 = por %p120, %p121
      %p123 = scmp.ne.s32.totalorder %s112, %s115
      %p124 = scmp.eq.s32.totalorder %s18, 1
      %p125 = por %p123, %p124
      %p126 = scmp.ne.s32.totalorder %s115, %s116
      %p127 = scmp.eq.s32.totalorder %s18, 0
      %p128 = por %p126, %p127
      %p129 = scmp.ne.s32.totalorder %s115, %s116
      %p130 = scmp.eq.s32.totalorder %s19, 1
      %p131 = por %p129, %p130
      %p133 = scmp.ne.s32.totalorder %s116, %s132
      %p134 = scmp.eq.s32.totalorder %s19, 0
      %p135 = por %p133, %p134
      %p136 = scmp.le.s32.totalorder 1, %s13
      %p137 = scmp.lt.s32.totalorder %s13, 3
      %p138 = pnand %p136, %p137
      %p139 = pneg %p138
      // Predicated region
      $region9: #{_lambda_.7} parent=5 // pred_check
        _
      $region10: #{_lambda_.7} parent=5 // pred_check_branch
        %141 = sbr.rel (%p138) target = $region12
      $region11: #{_lambda_.7} parent=5 // pred_region
        %s142 = ssub.s32 %s13, 1
        // Predicated region
        $region13: #{_lambda_.7} parent=11 // pred_check
          %p143 = pneg %p60
        $region14: #{_lambda_.7} parent=11 // pred_check_branch
          %145 = sbr.rel (%p143) target = $region16
        $region15: #{_lambda_.7} parent=11 // pred_region
          _
        $region16: #{_lambda_.7} parent=11 // pred_fallthru
          _
        // Predicated region
        $region17: #{_lambda_.7} parent=11 // pred_check
          %p146 = pneg %p81
        $region18: #{_lambda_.7} parent=11 // pred_check_branch
          %148 = sbr.rel (%p146) target = $region20
        $region19: #{_lambda_.7} parent=11 // pred_region
          _
        $region20: #{_lambda_.7} parent=11 // pred_fallthru
          _
        // Predicated region
        $region21: #{_lambda_.7} parent=11 // pred_check
          %p149 = pneg %p102
        $region22: #{_lambda_.7} parent=11 // pred_check_branch
          %151 = sbr.rel (%p149) target = $region24
        $region23: #{_lambda_.7} parent=11 // pred_region
          _
        $region24: #{_lambda_.7} parent=11 // pred_fallthru
          _
      $region12: #{_lambda_.7} parent=5 // pred_fallthru
        _
      %p152 = scmp.lt.s32.totalorder %s13, 2
      // Predicated region
      $region25: #{_lambda_.7} parent=5 // pred_check
        %p153 = pneg %p152
      $region26: #{_lambda_.7} parent=5 // pred_check_branch
        %155 = sbr.rel (%p153) target = $region28
      $region27: #{_lambda_.7} parent=5 // pred_region
        // Predicated region
        $region29: #{_lambda_.7} parent=27 // pred_check
          %p156 = pneg %p33
        $region30: #{_lambda_.7} parent=27 // pred_check_branch
          %158 = sbr.rel (%p156) target = $region32
        $region31: #{_lambda_.7} parent=27 // pred_region
          %s159 = smul.u32 32, %s13
          %p160 = scmp.lt.s32.totalorder %s159, 63
          %s161 = scalar_select %p160, %s159, 63
          %s162 = smul.addr %s161, 4
          %s163 = scalar_lea.vmem %s0, %s162
          %s164 = smul.u32 32, %s13
        $region32: #{_lambda_.7} parent=27 // pred_fallthru
          _
      $region28: #{_lambda_.7} parent=5 // pred_fallthru
        _
      %p165 = scmp.le.s32.totalorder 1, %s13
      %p166 = scmp.lt.s32.totalorder %s13, 3
      %p167 = pnand %p165, %p166
      %p168 = pneg %p167
      // Predicated region
      $region33: #{_lambda_.7} parent=5 // pred_check
        _
      $region34: #{_lambda_.7} parent=5 // pred_check_branch
        %170 = sbr.rel (%p167) target = $region36
      $region35: #{_lambda_.7} parent=5 // pred_region
        %s171 = ssub.s32 %s13, 1
        %s172 = smul.u32 32, %s18
        %p173 = scmp.lt.s32.totalorder %s172, 63
        %s174 = scalar_select %p173, %s172, 63
        %s175 = smul.addr %s174, 4
        %s176 = scalar_lea.vmem %s0, %s175
        %p177 = pneg %p39
        %p178 = pneg %p36
        %p179 = pneg %p60
        %p180 = pneg %p57
        %p181 = pneg %p81
        %p182 = pneg %p78
        %p183 = pneg %p102
        %p184 = pneg %p99
        %p185 = pneg %p128
        %p186 = pneg %p125
        %s187 = sand.u32 %s115, 1
        %s188 = scalar_lea.sflag [#allocation3], %s187
        %s189 = sand.u32 %s115, 1
        %s190 = smul.addr %s189, 256
        %s191 = scalar_lea.vmem [#allocation2], %s190
        %s192 = smul.u32 32, %s18
        %p193 = scmp.lt.s32.totalorder %s192, 63
        %s194 = scalar_select %p193, %s192, 63
        %s195 = smul.addr %s194, 4
        %s196 = scalar_lea.vmem %s0, %s195
        %s197 = smul.u32 32, %s18
        %s198 = smul.u32 32, %s18
        %v200 = vld [vmem:[%s196] sm:$0xf]
        %v201 = vld [vmem:[%s196 + $0x4] sm:$0xf]
        %v202 = vld [vmem:[%s196 + $0x8] sm:$0xf]
        %v203 = vld [vmem:[%s196 + $0xc] sm:$0xf]
        %v204 = vld [vmem:[%s196 + $0x10] sm:$0xf]
        %v205 = vld [vmem:[%s196 + $0x14] sm:$0xf]
        %v206 = vld [vmem:[%s196 + $0x18] sm:$0xf]
        %v207 = vld [vmem:[%s196 + $0x1c] sm:$0xf]
        %v208 = vld [vmem:[%s196 + $0x20] sm:$0xf]
        %v209 = vld [vmem:[%s196 + $0x24] sm:$0xf]
        %v210 = vld [vmem:[%s196 + $0x28] sm:$0xf]
        %v211 = vld [vmem:[%s196 + $0x2c] sm:$0xf]
        %v212 = vld [vmem:[%s196 + $0x30] sm:$0xf]
        %v213 = vld [vmem:[%s196 + $0x34] sm:$0xf]
        %v214 = vld [vmem:[%s196 + $0x38] sm:$0xf]
        %v215 = vld [vmem:[%s196 + $0x3c] sm:$0xf]
        %v216 = vld [vmem:[%s196 + $0x40] sm:$0xf]
        %v217 = vld [vmem:[%s196 + $0x44] sm:$0xf]
        %v218 = vld [vmem:[%s196 + $0x48] sm:$0xf]
        %v219 = vld [vmem:[%s196 + $0x4c] sm:$0xf]
        %v220 = vld [vmem:[%s196 + $0x50] sm:$0xf]
        %v221 = vld [vmem:[%s196 + $0x54] sm:$0xf]
        %v222 = vld [vmem:[%s196 + $0x58] sm:$0xf]
        %v223 = vld [vmem:[%s196 + $0x5c] sm:$0xf]
        %v224 = vld [vmem:[%s196 + $0x60] sm:$0xf]
        %v225 = vld [vmem:[%s196 + $0x64] sm:$0xf]
        %v226 = vld [vmem:[%s196 + $0x68] sm:$0xf]
        %v227 = vld [vmem:[%s196 + $0x6c] sm:$0xf]
        %v228 = vld [vmem:[%s196 + $0x70] sm:$0xf]
        %v229 = vld [vmem:[%s196 + $0x74] sm:$0xf]
        %v230 = vld [vmem:[%s196 + $0x78] sm:$0xf]
        %v231 = vld [vmem:[%s196 + $0x7c] sm:$0xf]
        %v232 = vld [vmem:[%s1] sm:$0xf]
        %v233 = vld [vmem:[%s1 + $0x4] sm:$0xf]
        %v234 = vld [vmem:[%s1 + $0x8] sm:$0xf]
        %v235 = vld [vmem:[%s1 + $0xc] sm:$0xf]
        %v236 = vld [vmem:[%s1 + $0x10] sm:$0xf]
        %v237 = vld [vmem:[%s1 + $0x14] sm:$0xf]
        %v270 = vunpack.c.l.b16 %v200
        %v271 = vunpack.c.l.b16 %v201
        %v272 = vunpack.c.l.b16 %v202
        %v273 = vunpack.c.l.b16 %v203
        %v274 = vunpack.c.l.b16 %v204
        %v275 = vunpack.c.l.b16 %v205
        %v276 = vunpack.c.l.b16 %v206
        %v277 = vunpack.c.l.b16 %v207
        %v278 = vunpack.c.l.b16 %v208
        %v279 = vunpack.c.l.b16 %v209
        %v280 = vunpack.c.l.b16 %v210
        %v281 = vunpack.c.l.b16 %v211
        %v282 = vunpack.c.l.b16 %v212
        %v283 = vunpack.c.l.b16 %v213
        %v284 = vunpack.c.l.b16 %v214
        %v285 = vunpack.c.l.b16 %v215
        %v286 = vunpack.c.l.b16 %v216
        %v287 = vunpack.c.l.b16 %v217
        %v288 = vunpack.c.l.b16 %v218
        %v289 = vunpack.c.l.b16 %v219
        %v290 = vunpack.c.l.b16 %v220
        %v291 = vunpack.c.l.b16 %v221
        %v292 = vunpack.c.l.b16 %v222
        %v293 = vunpack.c.l.b16 %v223
        %v294 = vunpack.c.l.b16 %v224
        %v295 = vunpack.c.l.b16 %v225
        %v296 = vunpack.c.l.b16 %v226
        %v297 = vunpack.c.l.b16 %v227
        %v298 = vunpack.c.l.b16 %v228
        %v299 = vunpack.c.l.b16 %v229
        %v300 = vunpack.c.l.b16 %v230
        %v301 = vunpack.c.l.b16 %v231
        %v302 = vpack.c.b16 %v271, %v270
        %v303 = vpack.c.b16 %v273, %v272
        %v304 = vpack.c.b16 %v275, %v274
        %v305 = vpack.c.b16 %v277, %v276
        %v306 = vpack.c.b16 %v279, %v278
        %v307 = vpack.c.b16 %v281, %v280
        %v308 = vpack.c.b16 %v283, %v282
        %v309 = vpack.c.b16 %v285, %v284
        %v310 = vpack.c.b16 %v287, %v286
        %v311 = vpack.c.b16 %v289, %v288
        %v312 = vpack.c.b16 %v291, %v290
        %v313 = vpack.c.b16 %v293, %v292
        %v314 = vpack.c.b16 %v295, %v294
        %v315 = vpack.c.b16 %v297, %v296
        %v316 = vpack.c.b16 %v299, %v298
        %v317 = vpack.c.b16 %v301, %v300
        %v324 = vunpack.c.l.b16 %v232
        %v325 = vunpack.c.l.b16 %v233
        %v326 = vunpack.c.l.b16 %v234
        %v327 = vunpack.c.l.b16 %v235
        %v328 = vunpack.c.l.b16 %v236
        %v329 = vunpack.c.l.b16 %v237
        %v330 = vpack.c.b16 %v325, %v324
        %v331 = vpack.c.b16 %v327, %v326
        %v332 = vpack.c.b16 %v329, %v328
        %vm336 = vcmask 392192
        %v338 = vsel %vm336, %v302, 0
        %v341 = vsel %vm336, %v303, 0
        %v344 = vsel %vm336, %v304, 0
        %v347 = vsel %vm336, %v305, 0
        %v350 = vsel %vm336, %v306, 0
        %v353 = vsel %vm336, %v307, 0
        %v356 = vsel %vm336, %v308, 0
        %v359 = vsel %vm336, %v309, 0
        %v362 = vsel %vm336, %v310, 0
        %v365 = vsel %vm336, %v311, 0
        %v368 = vsel %vm336, %v312, 0
        %v371 = vsel %vm336, %v313, 0
        %v374 = vsel %vm336, %v314, 0
        %v377 = vsel %vm336, %v315, 0
        %v380 = vsel %vm336, %v316, 0
        %v383 = vsel %vm336, %v317, 0
        %385 = vmatpush.bf16.msra.mxu0 0
        %386 = vmatpush.bf16.msra.mxu0 0
        %387 = vmatpush.bf16.msra.mxu0 0
        %388 = vmatpush.bf16.msra.mxu0 0
        %389 = vmatpush.bf16.msra.mxu0 0
        %390 = vmatpush.bf16.msra.mxu0 %v332
        %391 = vmatpush.bf16.msra.mxu0 %v331
        %392 = vmatpush.bf16.msra.mxu0 %v330
        %393 = vmatmul.bf16.gmra.mxu0 %v338
        %v394 = vpop.f32.mrf.mxu0
        %v395 = vadd.f32 0.0, %v394
        %v396 = vpop.f32.mrf.mxu0
        %v397 = vadd.f32 0.0, %v396
        %398 = vmatmul.bf16.gmra.mxu0 %v341
        %v399 = vpop.f32.mrf.mxu0
        %v400 = vadd.f32 0.0, %v399
        %v401 = vpop.f32.mrf.mxu0
        %v402 = vadd.f32 0.0, %v401
        %403 = vmatmul.bf16.gmra.mxu0 %v344
        %v404 = vpop.f32.mrf.mxu0
        %v405 = vadd.f32 0.0, %v404
        %v406 = vpop.f32.mrf.mxu0
        %v407 = vadd.f32 0.0, %v406
        %408 = vmatmul.bf16.gmra.mxu0 %v347
        %v409 = vpop.f32.mrf.mxu0
        %v410 = vadd.f32 0.0, %v409
        %v411 = vpop.f32.mrf.mxu0
        %v412 = vadd.f32 0.0, %v411
        %413 = vmatmul.bf16.gmra.mxu0 %v350
        %v414 = vpop.f32.mrf.mxu0
        %v415 = vadd.f32 0.0, %v414
        %v416 = vpop.f32.mrf.mxu0
        %v417 = vadd.f32 0.0, %v416
        %418 = vmatmul.bf16.gmra.mxu0 %v353
        %v419 = vpop.f32.mrf.mxu0
        %v420 = vadd.f32 0.0, %v419
        %v421 = vpop.f32.mrf.mxu0
        %v422 = vadd.f32 0.0, %v421
        %423 = vmatmul.bf16.gmra.mxu0 %v356
        %v424 = vpop.f32.mrf.mxu0
        %v425 = vadd.f32 0.0, %v424
        %v426 = vpop.f32.mrf.mxu0
        %v427 = vadd.f32 0.0, %v426
        %428 = vmatmul.bf16.gmra.mxu0 %v359
        %v429 = vpop.f32.mrf.mxu0
        %v430 = vadd.f32 0.0, %v429
        %v431 = vpop.f32.mrf.mxu0
        %v432 = vadd.f32 0.0, %v431
        %433 = vmatmul.bf16.gmra.mxu0 %v362
        %v434 = vpop.f32.mrf.mxu0
        %v435 = vadd.f32 0.0, %v434
        %v436 = vpop.f32.mrf.mxu0
        %v437 = vadd.f32 0.0, %v436
        %438 = vmatmul.bf16.gmra.mxu0 %v365
        %v439 = vpop.f32.mrf.mxu0
        %v440 = vadd.f32 0.0, %v439
        %v441 = vpop.f32.mrf.mxu0
        %v442 = vadd.f32 0.0, %v441
        %443 = vmatmul.bf16.gmra.mxu0 %v368
        %v444 = vpop.f32.mrf.mxu0
        %v445 = vadd.f32 0.0, %v444
        %v446 = vpop.f32.mrf.mxu0
        %v447 = vadd.f32 0.0, %v446
        %448 = vmatmul.bf16.gmra.mxu0 %v371
        %v449 = vpop.f32.mrf.mxu0
        %v450 = vadd.f32 0.0, %v449
        %v451 = vpop.f32.mrf.mxu0
        %v452 = vadd.f32 0.0, %v451
        %453 = vmatmul.bf16.gmra.mxu0 %v374
        %v454 = vpop.f32.mrf.mxu0
        %v455 = vadd.f32 0.0, %v454
        %v456 = vpop.f32.mrf.mxu0
        %v457 = vadd.f32 0.0, %v456
        %458 = vmatmul.bf16.gmra.mxu0 %v377
        %v459 = vpop.f32.mrf.mxu0
        %v460 = vadd.f32 0.0, %v459
        %v461 = vpop.f32.mrf.mxu0
        %v462 = vadd.f32 0.0, %v461
        %463 = vmatmul.bf16.gmra.mxu0 %v380
        %v464 = vpop.f32.mrf.mxu0
        %v465 = vadd.f32 0.0, %v464
        %v466 = vpop.f32.mrf.mxu0
        %v467 = vadd.f32 0.0, %v466
        %468 = vmatmul.bf16.gmra.mxu0 %v383
        %v469 = vpop.f32.mrf.mxu0
        %v470 = vadd.f32 0.0, %v469
        %v471 = vpop.f32.mrf.mxu0
        %v472 = vadd.f32 0.0, %v471
        %473 = vdwg.mxu0
        %v474 = vld [vmem:[%s2] sm:$0x1]
        %v476 = vperm.slane %v474, 0
        %v478 = vmul.f32 %v395, %v476
        %v479 = vmul.f32 %v397, %v476
        %v480 = vmul.f32 %v400, %v476
        %v481 = vmul.f32 %v402, %v476
        %v482 = vmul.f32 %v405, %v476
        %v483 = vmul.f32 %v407, %v476
        %v484 = vmul.f32 %v410, %v476
        %v485 = vmul.f32 %v412, %v476
        %v486 = vmul.f32 %v415, %v476
        %v487 = vmul.f32 %v417, %v476
        %v488 = vmul.f32 %v420, %v476
        %v489 = vmul.f32 %v422, %v476
        %v490 = vmul.f32 %v425, %v476
        %v491 = vmul.f32 %v427, %v476
        %v492 = vmul.f32 %v430, %v476
        %v493 = vmul.f32 %v432, %v476
        %v494 = vmul.f32 %v435, %v476
        %v495 = vmul.f32 %v437, %v476
        %v496 = vmul.f32 %v440, %v476
        %v497 = vmul.f32 %v442, %v476
        %v498 = vmul.f32 %v445, %v476
        %v499 = vmul.f32 %v447, %v476
        %v500 = vmul.f32 %v450, %v476
        %v501 = vmul.f32 %v452, %v476
        %v502 = vmul.f32 %v455, %v476
        %v503 = vmul.f32 %v457, %v476
        %v504 = vmul.f32 %v460, %v476
        %v505 = vmul.f32 %v462, %v476
        %v506 = vmul.f32 %v465, %v476
        %v507 = vmul.f32 %v467, %v476
        %v508 = vmul.f32 %v470, %v476
        %v509 = vmul.f32 %v472, %v476
        %v510 = vld [vmem:[%s3] sm:$0x1]
        %v512 = vperm.slane %v510, 0
        %v514 = vadd.f32 %v478, %v512
        %v515 = vadd.f32 %v479, %v512
        %v516 = vadd.f32 %v480, %v512
        %v517 = vadd.f32 %v481, %v512
        %v518 = vadd.f32 %v482, %v512
        %v519 = vadd.f32 %v483, %v512
        %v520 = vadd.f32 %v484, %v512
        %v521 = vadd.f32 %v485, %v512
        %v522 = vadd.f32 %v486, %v512
        %v523 = vadd.f32 %v487, %v512
        %v524 = vadd.f32 %v488, %v512
        %v525 = vadd.f32 %v489, %v512
        %v526 = vadd.f32 %v490, %v512
        %v527 = vadd.f32 %v491, %v512
        %v528 = vadd.f32 %v492, %v512
        %v529 = vadd.f32 %v493, %v512
        %v530 = vadd.f32 %v494, %v512
        %v531 = vadd.f32 %v495, %v512
        %v532 = vadd.f32 %v496, %v512
        %v533 = vadd.f32 %v497, %v512
        %v534 = vadd.f32 %v498, %v512
        %v535 = vadd.f32 %v499, %v512
        %v536 = vadd.f32 %v500, %v512
        %v537 = vadd.f32 %v501, %v512
        %v538 = vadd.f32 %v502, %v512
        %v539 = vadd.f32 %v503, %v512
        %v540 = vadd.f32 %v504, %v512
        %v541 = vadd.f32 %v505, %v512
        %v542 = vadd.f32 %v506, %v512
        %v543 = vadd.f32 %v507, %v512
        %v544 = vadd.f32 %v508, %v512
        %v545 = vadd.f32 %v509, %v512
        %v546 = vsub.f32 0.0, %v514
        %v547 = vsub.f32 0.0, %v515
        %v548 = vsub.f32 0.0, %v516
        %v549 = vsub.f32 0.0, %v517
        %v550 = vsub.f32 0.0, %v518
        %v551 = vsub.f32 0.0, %v519
        %v552 = vsub.f32 0.0, %v520
        %v553 = vsub.f32 0.0, %v521
        %v554 = vsub.f32 0.0, %v522
        %v555 = vsub.f32 0.0, %v523
        %v556 = vsub.f32 0.0, %v524
        %v557 = vsub.f32 0.0, %v525
        %v558 = vsub.f32 0.0, %v526
        %v559 = vsub.f32 0.0, %v527
        %v560 = vsub.f32 0.0, %v528
        %v561 = vsub.f32 0.0, %v529
        %v562 = vsub.f32 0.0, %v530
        %v563 = vsub.f32 0.0, %v531
        %v564 = vsub.f32 0.0, %v532
        %v565 = vsub.f32 0.0, %v533
        %v566 = vsub.f32 0.0, %v534
        %v567 = vsub.f32 0.0, %v535
        %v568 = vsub.f32 0.0, %v536
        %v569 = vsub.f32 0.0, %v537
        %v570 = vsub.f32 0.0, %v538
        %v571 = vsub.f32 0.0, %v539
        %v572 = vsub.f32 0.0, %v540
        %v573 = vsub.f32 0.0, %v541
        %v574 = vsub.f32 0.0, %v542
        %v575 = vsub.f32 0.0, %v543
        %v576 = vsub.f32 0.0, %v544
        %v577 = vsub.f32 0.0, %v545
        %v578 = vmul.f32 %v546, 1.442695
        %v579 = vpow.pop %v578
        %v580 = vmul.f32 %v547, 1.442695
        %v581 = vpow.pop %v580
        %v582 = vmul.f32 %v548, 1.442695
        %v583 = vpow.pop %v582
        %v584 = vmul.f32 %v549, 1.442695
        %v585 = vpow.pop %v584
        %v586 = vmul.f32 %v550, 1.442695
        %v587 = vpow.pop %v586
        %v588 = vmul.f32 %v551, 1.442695
        %v589 = vpow.pop %v588
        %v590 = vmul.f32 %v552, 1.442695
        %v591 = vpow.pop %v590
        %v592 = vmul.f32 %v553, 1.442695
        %v593 = vpow.pop %v592
        %v594 = vmul.f32 %v554, 1.442695
        %v595 = vpow.pop %v594
        %v596 = vmul.f32 %v555, 1.442695
        %v597 = vpow.pop %v596
        %v598 = vmul.f32 %v556, 1.442695
        %v599 = vpow.pop %v598
        %v600 = vmul.f32 %v557, 1.442695
        %v601 = vpow.pop %v600
        %v602 = vmul.f32 %v558, 1.442695
        %v603 = vpow.pop %v602
        %v604 = vmul.f32 %v559, 1.442695
        %v605 = vpow.pop %v604
        %v606 = vmul.f32 %v560, 1.442695
        %v607 = vpow.pop %v606
        %v608 = vmul.f32 %v561, 1.442695
        %v609 = vpow.pop %v608
        %v610 = vmul.f32 %v562, 1.442695
        %v611 = vpow.pop %v610
        %v612 = vmul.f32 %v563, 1.442695
        %v613 = vpow.pop %v612
        %v614 = vmul.f32 %v564, 1.442695
        %v615 = vpow.pop %v614
        %v616 = vmul.f32 %v565, 1.442695
        %v617 = vpow.pop %v616
        %v618 = vmul.f32 %v566, 1.442695
        %v619 = vpow.pop %v618
        %v620 = vmul.f32 %v567, 1.442695
        %v621 = vpow.pop %v620
        %v622 = vmul.f32 %v568, 1.442695
        %v623 = vpow.pop %v622
        %v624 = vmul.f32 %v569, 1.442695
        %v625 = vpow.pop %v624
        %v626 = vmul.f32 %v570, 1.442695
        %v627 = vpow.pop %v626
        %v628 = vmul.f32 %v571, 1.442695
        %v629 = vpow.pop %v628
        %v630 = vmul.f32 %v572, 1.442695
        %v631 = vpow.pop %v630
        %v632 = vmul.f32 %v573, 1.442695
        %v633 = vpow.pop %v632
        %v634 = vmul.f32 %v574, 1.442695
        %v635 = vpow.pop %v634
        %v636 = vmul.f32 %v575, 1.442695
        %v637 = vpow.pop %v636
        %v638 = vmul.f32 %v576, 1.442695
        %v639 = vpow.pop %v638
        %v640 = vmul.f32 %v577, 1.442695
        %v641 = vpow.pop %v640
        %v642 = vadd.f32 %v579, 1.0
        %v643 = vadd.f32 %v581, 1.0
        %v644 = vadd.f32 %v583, 1.0
        %v645 = vadd.f32 %v585, 1.0
        %v646 = vadd.f32 %v587, 1.0
        %v647 = vadd.f32 %v589, 1.0
        %v648 = vadd.f32 %v591, 1.0
        %v649 = vadd.f32 %v593, 1.0
        %v650 = vadd.f32 %v595, 1.0
        %v651 = vadd.f32 %v597, 1.0
        %v652 = vadd.f32 %v599, 1.0
        %v653 = vadd.f32 %v601, 1.0
        %v654 = vadd.f32 %v603, 1.0
        %v655 = vadd.f32 %v605, 1.0
        %v656 = vadd.f32 %v607, 1.0
        %v657 = vadd.f32 %v609, 1.0
        %v658 = vadd.f32 %v611, 1.0
        %v659 = vadd.f32 %v613, 1.0
        %v660 = vadd.f32 %v615, 1.0
        %v661 = vadd.f32 %v617, 1.0
        %v662 = vadd.f32 %v619, 1.0
        %v663 = vadd.f32 %v621, 1.0
        %v664 = vadd.f32 %v623, 1.0
        %v665 = vadd.f32 %v625, 1.0
        %v666 = vadd.f32 %v627, 1.0
        %v667 = vadd.f32 %v629, 1.0
        %v668 = vadd.f32 %v631, 1.0
        %v669 = vadd.f32 %v633, 1.0
        %v670 = vadd.f32 %v635, 1.0
        %v671 = vadd.f32 %v637, 1.0
        %v672 = vadd.f32 %v639, 1.0
        %v673 = vadd.f32 %v641, 1.0
        %v674 = vrcp.pop %v642
        %v675 = vrcp.pop %v643
        %v676 = vrcp.pop %v644
        %v677 = vrcp.pop %v645
        %v678 = vrcp.pop %v646
        %v679 = vrcp.pop %v647
        %v680 = vrcp.pop %v648
        %v681 = vrcp.pop %v649
        %v682 = vrcp.pop %v650
        %v683 = vrcp.pop %v651
        %v684 = vrcp.pop %v652
        %v685 = vrcp.pop %v653
        %v686 = vrcp.pop %v654
        %v687 = vrcp.pop %v655
        %v688 = vrcp.pop %v656
        %v689 = vrcp.pop %v657
        %v690 = vrcp.pop %v658
        %v691 = vrcp.pop %v659
        %v692 = vrcp.pop %v660
        %v693 = vrcp.pop %v661
        %v694 = vrcp.pop %v662
        %v695 = vrcp.pop %v663
        %v696 = vrcp.pop %v664
        %v697 = vrcp.pop %v665
        %v698 = vrcp.pop %v666
        %v699 = vrcp.pop %v667
        %v700 = vrcp.pop %v668
        %v701 = vrcp.pop %v669
        %v702 = vrcp.pop %v670
        %v703 = vrcp.pop %v671
        %v704 = vrcp.pop %v672
        %v705 = vrcp.pop %v673
        %v706 = vmul.f32 %v514, %v674
        %v707 = vmul.f32 %v515, %v675
        %v708 = vmul.f32 %v516, %v676
        %v709 = vmul.f32 %v517, %v677
        %v710 = vmul.f32 %v518, %v678
        %v711 = vmul.f32 %v519, %v679
        %v712 = vmul.f32 %v520, %v680
        %v713 = vmul.f32 %v521, %v681
        %v714 = vmul.f32 %v522, %v682
        %v715 = vmul.f32 %v523, %v683
        %v716 = vmul.f32 %v524, %v684
        %v717 = vmul.f32 %v525, %v685
        %v718 = vmul.f32 %v526, %v686
        %v719 = vmul.f32 %v527, %v687
        %v720 = vmul.f32 %v528, %v688
        %v721 = vmul.f32 %v529, %v689
        %v722 = vmul.f32 %v530, %v690
        %v723 = vmul.f32 %v531, %v691
        %v724 = vmul.f32 %v532, %v692
        %v725 = vmul.f32 %v533, %v693
        %v726 = vmul.f32 %v534, %v694
        %v727 = vmul.f32 %v535, %v695
        %v728 = vmul.f32 %v536, %v696
        %v729 = vmul.f32 %v537, %v697
        %v730 = vmul.f32 %v538, %v698
        %v731 = vmul.f32 %v539, %v699
        %v732 = vmul.f32 %v540, %v700
        %v733 = vmul.f32 %v541, %v701
        %v734 = vmul.f32 %v542, %v702
        %v735 = vmul.f32 %v543, %v703
        %v736 = vmul.f32 %v544, %v704
        %v737 = vmul.f32 %v545, %v705
        %vm738 = vcmask 261120
        %739 = vst.msk [vmem:[%s191] sm:$0xff] %vm738, %v706
        %740 = vst.msk [vmem:[%s191 + $0x8] sm:$0xff] %vm738, %v707
        %741 = vst.msk [vmem:[%s191 + $0x10] sm:$0xff] %vm738, %v708
        %742 = vst.msk [vmem:[%s191 + $0x18] sm:$0xff] %vm738, %v709
        %743 = vst.msk [vmem:[%s191 + $0x20] sm:$0xff] %vm738, %v710
        %744 = vst.msk [vmem:[%s191 + $0x28] sm:$0xff] %vm738, %v711
        %745 = vst.msk [vmem:[%s191 + $0x30] sm:$0xff] %vm738, %v712
        %746 = vst.msk [vmem:[%s191 + $0x38] sm:$0xff] %vm738, %v713
        %747 = vst.msk [vmem:[%s191 + $0x40] sm:$0xff] %vm738, %v714
        %748 = vst.msk [vmem:[%s191 + $0x48] sm:$0xff] %vm738, %v715
        %749 = vst.msk [vmem:[%s191 + $0x50] sm:$0xff] %vm738, %v716
        %750 = vst.msk [vmem:[%s191 + $0x58] sm:$0xff] %vm738, %v717
        %751 = vst.msk [vmem:[%s191 + $0x60] sm:$0xff] %vm738, %v718
        %752 = vst.msk [vmem:[%s191 + $0x68] sm:$0xff] %vm738, %v719
        %753 = vst.msk [vmem:[%s191 + $0x70] sm:$0xff] %vm738, %v720
        %754 = vst.msk [vmem:[%s191 + $0x78] sm:$0xff] %vm738, %v721
        %755 = vst.msk [vmem:[%s191 + $0x80] sm:$0xff] %vm738, %v722
        %756 = vst.msk [vmem:[%s191 + $0x88] sm:$0xff] %vm738, %v723
        %757 = vst.msk [vmem:[%s191 + $0x90] sm:$0xff] %vm738, %v724
        %758 = vst.msk [vmem:[%s191 + $0x98] sm:$0xff] %vm738, %v725
        %759 = vst.msk [vmem:[%s191 + $0xa0] sm:$0xff] %vm738, %v726
        %760 = vst.msk [vmem:[%s191 + $0xa8] sm:$0xff] %vm738, %v727
        %761 = vst.msk [vmem:[%s191 + $0xb0] sm:$0xff] %vm738, %v728
        %762 = vst.msk [vmem:[%s191 + $0xb8] sm:$0xff] %vm738, %v729
        %763 = vst.msk [vmem:[%s191 + $0xc0] sm:$0xff] %vm738, %v730
        %764 = vst.msk [vmem:[%s191 + $0xc8] sm:$0xff] %vm738, %v731
        %765 = vst.msk [vmem:[%s191 + $0xd0] sm:$0xff] %vm738, %v732
        %766 = vst.msk [vmem:[%s191 + $0xd8] sm:$0xff] %vm738, %v733
        %767 = vst.msk [vmem:[%s191 + $0xe0] sm:$0xff] %vm738, %v734
        %768 = vst.msk [vmem:[%s191 + $0xe8] sm:$0xff] %vm738, %v735
        %769 = vst.msk [vmem:[%s191 + $0xf0] sm:$0xff] %vm738, %v736
        %770 = vst.msk [vmem:[%s191 + $0xf8] sm:$0xff] %vm738, %v737
        %s771 = sand.u32 %s115, 1
        %s772 = scalar_lea.sflag [#allocation3], %s771
        %s773 = sand.u32 %s115, 1
        %s774 = smul.addr %s773, 256
        %s775 = scalar_lea.vmem [#allocation2], %s774
        // Predicated region
        $region37: #{_lambda_.7} parent=35 // pred_check
          %p776 = pneg %p125
        $region38: #{_lambda_.7} parent=35 // pred_check_branch
          %778 = sbr.rel (%p776) target = $region40
        $region39: #{_lambda_.7} parent=35 // pred_region
          %s779 = smul.u32 32, %s18
          %781 = vsyncadd %s772, 0
          %s782 = smul.addr %s779, 8
          %s783 = scalar_lea.hbm %s4, %s782
          %s784 = sshll.u32 %s775, 4
          %s785 = int_to_ptr.vmem [resolvable:$true] %s784
          %s786 = sshll.u32 %s783, 4
          %s787 = int_to_ptr.hbm [resolvable:$true] %s786
          %792 = dma.vmem_to_hbm [thread:$0]  %s785, 4096, %s787, %s772, 128, 128, 8
        $region40: #{_lambda_.7} parent=35 // pred_fallthru
          _
      $region36: #{_lambda_.7} parent=5 // pred_fallthru
        _
      %p793 = scmp.le.s32.totalorder 2, %s13
      // Predicated region
      $region41: #{_lambda_.7} parent=5 // pred_check
        %p794 = pneg %p793
      $region42: #{_lambda_.7} parent=5 // pred_check_branch
        %796 = sbr.rel (%p794) target = $region44
      $region43: #{_lambda_.7} parent=5 // pred_region
        %s797 = ssub.s32 %s13, 2
        // Predicated region
        $region45: #{_lambda_.7} parent=43 // pred_check
          %p798 = pneg %p131
        $region46: #{_lambda_.7} parent=43 // pred_check_branch
          %800 = sbr.rel (%p798) target = $region48
        $region47: #{_lambda_.7} parent=43 // pred_region
          %s801 = sand.u32 %s116, 1
          %s802 = scalar_lea.sflag [#allocation3], %s801
          %s803 = sand.u32 %s116, 1
          %s804 = smul.addr %s803, 256
          %s805 = scalar_lea.vmem [#allocation2], %s804
          %807 = dma.done %s802, 4096
        $region48: #{_lambda_.7} parent=43 // pred_fallthru
          _
      $region44: #{_lambda_.7} parent=5 // pred_fallthru
        _
    $region6: #{_lambda_.7} parent=1 // loop_footer
      %s17 = sadd.s32 1, %s13
    $region7: #{_lambda_.7} parent=1 // loop_footer_branch
      %12 = sbr.rel target = $region3
    $region8: #{_lambda_.7} parent=1 // loop_exit
      _
    %808 = vsyncpa [#allocation3], 1
    %s809 = scalar_lea.sflag [#allocation3], 1
    %810 = vsyncpa %s809, 1

// kernel: _lambda_.6
$region0: #{_lambda_.6}
  #allocation0 [shape = 'u32[]', space=smem, size = 0x4, offset = 0x4, fixed_abs, tag = 'smem constant byte address 0x4 - core index']
  #allocation1 [shape = 'u32[72,128]{1,0:T(1,128)}', space=vmem, size = 0x9000, scoped, tag = 'internal scratch']
  %s0 = inlined_call_operand.vmem [shape: bf16[2,22,352], index: 0, kind: input, shape index: {}]
  %s1 = inlined_call_operand.vmem [shape: bf16[2,16,256], index: 1, kind: input, shape index: {}]
  %s2 = inlined_call_operand.vmem [shape: bf16[3,352,256], index: 2, kind: input, shape index: {}]
  %s3 = inlined_call_operand.vmem [shape: bf16[3,352,256], index: 3, kind: input, shape index: {}]
  %s4 = inlined_call_operand.vmem [shape: f32[256,16], index: 4, kind: input, shape index: {}]
  %s5 = inlined_call_operand.vmem [shape: f32[16,256], index: 5, kind: input, shape index: {}]
  %s6 = inlined_call_operand.vmem [shape: f32[1,256], index: 6, kind: input, shape index: {}]
  %s7 = inlined_call_operand.vmem [shape: f32[1,256], index: 7, kind: input, shape index: {}]
  %s8 = inlined_call_operand.vmem [shape: f32[1,256], index: 8, kind: input, shape index: {}]
  %s9 = inlined_call_operand.vmem [shape: bf16[2,16,256], index: 9, kind: output, shape index: {}]
  %s10 = sld [smem:[#allocation0]]
  $region69: #{_lambda_.6} parent=0
    _
  %s12 = ssub.s32 1, %s10
  %s13 = scalar_select 0, %s12, %s10
  loop: start=0, step=1, limit=4
  $region2: #{_lambda_.6} parent=0 // loop_pre_header
    _
  $region3: #{_lambda_.6} parent=0 // loop_header
    %s15 = sphi 0, %s19
    %p16 = scmp.ge.s32.totalorder %s15, 4
    %s25 = sphi 0, %s27
    %s28 = sphi 0, %s25
    %s29 = sphi 0, %s28
    %s45 = sphi 0, %s29
    %s51 = sphi 0, %s53
    %s54 = sphi 0, %s51
    %s55 = sphi 0, %s54
    %s71 = sphi 0, %s55
    %s75 = sphi 0, %s75
    %s77 = sphi 0, %s75
    %s78 = sphi 0, %s77
    %s92 = sphi 0, %s78
    %s96 = sphi 0, %s96
    %s98 = sphi 0, %s96
    %s99 = sphi 0, %s98
    %s113 = sphi 0, %s99
    %s117 = sphi 0, %s117
    %s119 = sphi 0, %s117
    %s120 = sphi 0, %s119
    %s134 = sphi 0, %s120
    %s138 = sphi 0, %s138
    %s140 = sphi 0, %s138
    %s141 = sphi 0, %s140
    %s155 = sphi 0, %s141
    %s159 = sphi 0, %s159
    %s161 = sphi 0, %s159
    %s162 = sphi 0, %s161
    %s176 = sphi 0, %s162
    %s180 = sphi 0, %s180
    %s182 = sphi 0, %s180
    %s183 = sphi 0, %s182
    %s197 = sphi 0, %s183
    %s201 = sphi 0, %s201
    %s203 = sphi 0, %s201
    %s204 = sphi 0, %s203
    %s218 = sphi 0, %s204
    %s224 = sphi 0, %s226
    %s227 = sphi 0, %s224
    %s228 = sphi 0, %s227
    %s244 = sphi 0, %s228
  $region4: #{_lambda_.6} parent=0 // loop_header_branch
    %18 = sbr.rel (%p16) target = $region8
  $region5: #{_lambda_.6} parent=0 // loop_body
    %s20 = ssub.s32 %s15, 1
    %s21 = ssub.s32 %s15, 2
    %s22 = sadd.s32 %s15, 1
    %s23 = ssub.s32 %s15, %s22
    %p24 = scmp.eq.s32.totalorder %s23, 0
    %s26 = sadd.s32 %s25, 1
    %s27 = scalar_select %p24, %s25, %s26
    %p30 = pneg %p24
    %p31 = scmp.eq.s32.totalorder %s15, 1
    %p32 = por %p30, %p31
    %p33 = scmp.ne.s32.totalorder %s25, %s28
    %p34 = scmp.eq.s32.totalorder %s15, 0
    %p35 = por %p33, %p34
    %p36 = scmp.ne.s32.totalorder %s25, %s28
    %p37 = scmp.eq.s32.totalorder %s20, 1
    %p38 = por %p36, %p37
    %p39 = scmp.ne.s32.totalorder %s28, %s29
    %p40 = scmp.eq.s32.totalorder %s20, 0
    %p41 = por %p39, %p40
    %p42 = scmp.ne.s32.totalorder %s28, %s29
    %p43 = scmp.eq.s32.totalorder %s21, 1
    %p44 = por %p42, %p43
    %p46 = scmp.ne.s32.totalorder %s29, %s45
    %p47 = scmp.eq.s32.totalorder %s21, 0
    %p48 = por %p46, %p47
    %s49 = ssub.s32 %s15, %s22
    %p50 = scmp.eq.s32.totalorder %s49, 0
    %s52 = sadd.s32 %s51, 1
    %s53 = scalar_select %p50, %s51, %s52
    %p56 = pneg %p50
    %p57 = scmp.eq.s32.totalorder %s15, 1
    %p58 = por %p56, %p57
    %p59 = scmp.ne.s32.totalorder %s51, %s54
    %p60 = scmp.eq.s32.totalorder %s15, 0
    %p61 = por %p59, %p60
    %p62 = scmp.ne.s32.totalorder %s51, %s54
    %p63 = scmp.eq.s32.totalorder %s20, 1
    %p64 = por %p62, %p63
    %p65 = scmp.ne.s32.totalorder %s54, %s55
    %p66 = scmp.eq.s32.totalorder %s20, 0
    %p67 = por %p65, %p66
    %p68 = scmp.ne.s32.totalorder %s54, %s55
    %p69 = scmp.eq.s32.totalorder %s21, 1
    %p70 = por %p68, %p69
    %p72 = scmp.ne.s32.totalorder %s55, %s71
    %p73 = scmp.eq.s32.totalorder %s21, 0
    %p74 = por %p72, %p73
    %s76 = sadd.s32 %s75, 1
    %p79 = scmp.eq.s32.totalorder %s15, 1
    %p80 = scmp.ne.s32.totalorder %s75, %s77
    %p81 = scmp.eq.s32.totalorder %s15, 0
    %p82 = por %p80, %p81
    %p83 = scmp.ne.s32.totalorder %s75, %s77
    %p84 = scmp.eq.s32.totalorder %s20, 1
    %p85 = por %p83, %p84
    %p86 = scmp.ne.s32.totalorder %s77, %s78
    %p87 = scmp.eq.s32.totalorder %s20, 0
    %p88 = por %p86, %p87
    %p89 = scmp.ne.s32.totalorder %s77, %s78
    %p90 = scmp.eq.s32.totalorder %s21, 1
    %p91 = por %p89, %p90
    %p93 = scmp.ne.s32.totalorder %s78, %s92
    %p94 = scmp.eq.s32.totalorder %s21, 0
    %p95 = por %p93, %p94
    %s97 = sadd.s32 %s96, 1
    %p100 = scmp.eq.s32.totalorder %s15, 1
    %p101 = scmp.ne.s32.totalorder %s96, %s98
    %p102 = scmp.eq.s32.totalorder %s15, 0
    %p103 = por %p101, %p102
    %p104 = scmp.ne.s32.totalorder %s96, %s98
    %p105 = scmp.eq.s32.totalorder %s20, 1
    %p106 = por %p104, %p105
    %p107 = scmp.ne.s32.totalorder %s98, %s99
    %p108 = scmp.eq.s32.totalorder %s20, 0
    %p109 = por %p107, %p108
    %p110 = scmp.ne.s32.totalorder %s98, %s99
    %p111 = scmp.eq.s32.totalorder %s21, 1
    %p112 = por %p110, %p111
    %p114 = scmp.ne.s32.totalorder %s99, %s113
    %p115 = scmp.eq.s32.totalorder %s21, 0
    %p116 = por %p114, %p115
    %s118 = sadd.s32 %s117, 1
    %p121 = scmp.eq.s32.totalorder %s15, 1
    %p122 = scmp.ne.s32.totalorder %s117, %s119
    %p123 = scmp.eq.s32.totalorder %s15, 0
    %p124 = por %p122, %p123
    %p125 = scmp.ne.s32.totalorder %s117, %s119
    %p126 = scmp.eq.s32.totalorder %s20, 1
    %p127 = por %p125, %p126
    %p128 = scmp.ne.s32.totalorder %s119, %s120
    %p129 = scmp.eq.s32.totalorder %s20, 0
    %p130 = por %p128, %p129
    %p131 = scmp.ne.s32.totalorder %s119, %s120
    %p132 = scmp.eq.s32.totalorder %s21, 1
    %p133 = por %p131, %p132
    %p135 = scmp.ne.s32.totalorder %s120, %s134
    %p136 = scmp.eq.s32.totalorder %s21, 0
    %p137 = por %p135, %p136
    %s139 = sadd.s32 %s138, 1
    %p142 = scmp.eq.s32.totalorder %s15, 1
    %p143 = scmp.ne.s32.totalorder %s138, %s140
    %p144 = scmp.eq.s32.totalorder %s15, 0
    %p145 = por %p143, %p144
    %p146 = scmp.ne.s32.totalorder %s138, %s140
    %p147 = scmp.eq.s32.totalorder %s20, 1
    %p148 = por %p146, %p147
    %p149 = scmp.ne.s32.totalorder %s140, %s141
    %p150 = scmp.eq.s32.totalorder %s20, 0
    %p151 = por %p149, %p150
    %p152 = scmp.ne.s32.totalorder %s140, %s141
    %p153 = scmp.eq.s32.totalorder %s21, 1
    %p154 = por %p152, %p153
    %p156 = scmp.ne.s32.totalorder %s141, %s155
    %p157 = scmp.eq.s32.totalorder %s21, 0
    %p158 = por %p156, %p157
    %s160 = sadd.s32 %s159, 1
    %p163 = scmp.eq.s32.totalorder %s15, 1
    %p164 = scmp.ne.s32.totalorder %s159, %s161
    %p165 = scmp.eq.s32.totalorder %s15, 0
    %p166 = por %p164, %p165
    %p167 = scmp.ne.s32.totalorder %s159, %s161
    %p168 = scmp.eq.s32.totalorder %s20, 1
    %p169 = por %p167, %p168
    %p170 = scmp.ne.s32.totalorder %s161, %s162
    %p171 = scmp.eq.s32.totalorder %s20, 0
    %p172 = por %p170, %p171
    %p173 = scmp.ne.s32.totalorder %s161, %s162
    %p174 = scmp.eq.s32.totalorder %s21, 1
    %p175 = por %p173, %p174
    %p177 = scmp.ne.s32.totalorder %s162, %s176
    %p178 = scmp.eq.s32.totalorder %s21, 0
    %p179 = por %p177, %p178
    %s181 = sadd.s32 %s180, 1
    %p184 = scmp.eq.s32.totalorder %s15, 1
    %p185 = scmp.ne.s32.totalorder %s180, %s182
    %p186 = scmp.eq.s32.totalorder %s15, 0
    %p187 = por %p185, %p186
    %p188 = scmp.ne.s32.totalorder %s180, %s182
    %p189 = scmp.eq.s32.totalorder %s20, 1
    %p190 = por %p188, %p189
    %p191 = scmp.ne.s32.totalorder %s182, %s183
    %p192 = scmp.eq.s32.totalorder %s20, 0
    %p193 = por %p191, %p192
    %p194 = scmp.ne.s32.totalorder %s182, %s183
    %p195 = scmp.eq.s32.totalorder %s21, 1
    %p196 = por %p194, %p195
    %p198 = scmp.ne.s32.totalorder %s183, %s197
    %p199 = scmp.eq.s32.totalorder %s21, 0
    %p200 = por %p198, %p199
    %s202 = sadd.s32 %s201, 1
    %p205 = scmp.eq.s32.totalorder %s15, 1
    %p206 = scmp.ne.s32.totalorder %s201, %s203
    %p207 = scmp.eq.s32.totalorder %s15, 0
    %p208 = por %p206, %p207
    %p209 = scmp.ne.s32.totalorder %s201, %s203
    %p210 = scmp.eq.s32.totalorder %s20, 1
    %p211 = por %p209, %p210
    %p212 = scmp.ne.s32.totalorder %s203, %s204
    %p213 = scmp.eq.s32.totalorder %s20, 0
    %p214 = por %p212, %p213
    %p215 = scmp.ne.s32.totalorder %s203, %s204
    %p216 = scmp.eq.s32.totalorder %s21, 1
    %p217 = por %p215, %p216
    %p219 = scmp.ne.s32.totalorder %s204, %s218
    %p220 = scmp.eq.s32.totalorder %s21, 0
    %p221 = por %p219, %p220
    %s222 = ssub.s32 %s15, %s22
    %p223 = scmp.eq.s32.totalorder %s222, 0
    %s225 = sadd.s32 %s224, 1
    %s226 = scalar_select %p223, %s224, %s225
    %p229 = pneg %p223
    %p230 = scmp.eq.s32.totalorder %s15, 1
    %p231 = por %p229, %p230
    %p232 = scmp.ne.s32.totalorder %s224, %s227
    %p233 = scmp.eq.s32.totalorder %s15, 0
    %p234 = por %p232, %p233
    %p235 = scmp.ne.s32.totalorder %s224, %s227
    %p236 = scmp.eq.s32.totalorder %s20, 1
    %p237 = por %p235, %p236
    %p238 = scmp.ne.s32.totalorder %s227, %s228
    %p239 = scmp.eq.s32.totalorder %s20, 0
    %p240 = por %p238, %p239
    %p241 = scmp.ne.s32.totalorder %s227, %s228
    %p242 = scmp.eq.s32.totalorder %s21, 1
    %p243 = por %p241, %p242
    %p245 = scmp.ne.s32.totalorder %s228, %s244
    %p246 = scmp.eq.s32.totalorder %s21, 0
    %p247 = por %p245, %p246
    %p248 = scmp.le.s32.totalorder 1, %s15
    %p249 = scmp.lt.s32.totalorder %s15, 3
    %p250 = pnand %p248, %p249
    %p251 = pneg %p250
    // Predicated region
    $region9: #{_lambda_.6} parent=5 // pred_check
      _
    $region10: #{_lambda_.6} parent=5 // pred_check_branch
      %253 = sbr.rel (%p250) target = $region12
    $region11: #{_lambda_.6} parent=5 // pred_region
      %s254 = ssub.s32 %s15, 1
      // Predicated region
      $region13: #{_lambda_.6} parent=11 // pred_check
        %p255 = pneg %p88
      $region14: #{_lambda_.6} parent=11 // pred_check_branch
        %257 = sbr.rel (%p255) target = $region16
      $region15: #{_lambda_.6} parent=11 // pred_region
        _
      $region16: #{_lambda_.6} parent=11 // pred_fallthru
        _
      // Predicated region
      $region17: #{_lambda_.6} parent=11 // pred_check
        %p258 = pneg %p109
      $region18: #{_lambda_.6} parent=11 // pred_check_branch
        %260 = sbr.rel (%p258) target = $region20
      $region19: #{_lambda_.6} parent=11 // pred_region
        _
      $region20: #{_lambda_.6} parent=11 // pred_fallthru
        _
      // Predicated region
      $region21: #{_lambda_.6} parent=11 // pred_check
        %p261 = pneg %p130
      $region22: #{_lambda_.6} parent=11 // pred_check_branch
        %263 = sbr.rel (%p261) target = $region24
      $region23: #{_lambda_.6} parent=11 // pred_region
        _
      $region24: #{_lambda_.6} parent=11 // pred_fallthru
        _
      // Predicated region
      $region25: #{_lambda_.6} parent=11 // pred_check
        %p264 = pneg %p151
      $region26: #{_lambda_.6} parent=11 // pred_check_branch
        %266 = sbr.rel (%p264) target = $region28
      $region27: #{_lambda_.6} parent=11 // pred_region
        _
      $region28: #{_lambda_.6} parent=11 // pred_fallthru
        _
      // Predicated region
      $region29: #{_lambda_.6} parent=11 // pred_check
        %p267 = pneg %p172
      $region30: #{_lambda_.6} parent=11 // pred_check_branch
        %269 = sbr.rel (%p267) target = $region32
      $region31: #{_lambda_.6} parent=11 // pred_region
        _
      $region32: #{_lambda_.6} parent=11 // pred_fallthru
        _
      // Predicated region
      $region33: #{_lambda_.6} parent=11 // pred_check
        %p270 = pneg %p193
      $region34: #{_lambda_.6} parent=11 // pred_check_branch
        %272 = sbr.rel (%p270) target = $region36
      $region35: #{_lambda_.6} parent=11 // pred_region
        _
      $region36: #{_lambda_.6} parent=11 // pred_fallthru
        _
      // Predicated region
      $region37: #{_lambda_.6} parent=11 // pred_check
        %p273 = pneg %p214
      $region38: #{_lambda_.6} parent=11 // pred_check_branch
        %275 = sbr.rel (%p273) target = $region40
      $region39: #{_lambda_.6} parent=11 // pred_region
        _
      $region40: #{_lambda_.6} parent=11 // pred_fallthru
        _
    $region12: #{_lambda_.6} parent=5 // pred_fallthru
      _
    %p276 = scmp.lt.s32.totalorder %s15, 2
    // Predicated region
    $region41: #{_lambda_.6} parent=5 // pred_check
      %p277 = pneg %p276
    $region42: #{_lambda_.6} parent=5 // pred_check_branch
      %279 = sbr.rel (%p277) target = $region44
    $region43: #{_lambda_.6} parent=5 // pred_region
      // Predicated region
      $region45: #{_lambda_.6} parent=43 // pred_check
        %p280 = pneg %p35
      $region46: #{_lambda_.6} parent=43 // pred_check_branch
        %282 = sbr.rel (%p280) target = $region48
      $region47: #{_lambda_.6} parent=43 // pred_region
        %p283 = scmp.lt.s32.totalorder %s15, 1
        %s284 = scalar_select %p283, %s15, 1
        %s285 = smul.addr %s284, 9
        %s286 = smul.addr %s285, 4
        %s287 = scalar_lea.vmem %s0, %s286
      $region48: #{_lambda_.6} parent=43 // pred_fallthru
        _
      // Predicated region
      $region49: #{_lambda_.6} parent=43 // pred_check
        %p288 = pneg %p61
      $region50: #{_lambda_.6} parent=43 // pred_check_branch
        %290 = sbr.rel (%p288) target = $region52
      $region51: #{_lambda_.6} parent=43 // pred_region
        %p291 = scmp.lt.s32.totalorder %s15, 1
        %s292 = scalar_select %p291, %s15, 1
        %s293 = smul.addr %s292, 4
        %s294 = smul.addr %s293, 4
        %s295 = scalar_lea.vmem %s1, %s294
      $region52: #{_lambda_.6} parent=43 // pred_fallthru
        _
    $region44: #{_lambda_.6} parent=5 // pred_fallthru
      _
    %p296 = scmp.le.s32.totalorder 1, %s15
    %p297 = scmp.lt.s32.totalorder %s15, 3
    %p298 = pnand %p296, %p297
    %p299 = pneg %p298
    // Predicated region
    $region53: #{_lambda_.6} parent=5 // pred_check
      _
    $region54: #{_lambda_.6} parent=5 // pred_check_branch
      %301 = sbr.rel (%p298) target = $region56
    $region55: #{_lambda_.6} parent=5 // pred_region
      %s302 = ssub.s32 %s15, 1
      %p303 = scmp.lt.s32.totalorder %s20, 1
      %s304 = scalar_select %p303, %s20, 1
      %s305 = smul.addr %s304, 9
      %s306 = smul.addr %s305, 4
      %s307 = scalar_lea.vmem %s0, %s306
      %p308 = pneg %p41
      %p309 = pneg %p38
      %p310 = scmp.lt.s32.totalorder %s20, 1
      %s311 = scalar_select %p310, %s20, 1
      %s312 = smul.addr %s311, 4
      %s313 = smul.addr %s312, 4
      %s314 = scalar_lea.vmem %s1, %s313
      %p315 = pneg %p67
      %p316 = pneg %p64
      %p317 = pneg %p88
      %p318 = pneg %p85
      %p319 = pneg %p109
      %p320 = pneg %p106
      %p321 = pneg %p130
      %p322 = pneg %p127
      %p323 = pneg %p151
      %p324 = pneg %p148
      %p325 = pneg %p172
      %p326 = pneg %p169
      %p327 = pneg %p193
      %p328 = pneg %p190
      %p329 = pneg %p214
      %p330 = pneg %p211
      %p331 = pneg %p240
      %p332 = pneg %p237
      %p333 = scmp.lt.s32.totalorder %s20, 1
      %s334 = scalar_select %p333, %s20, 1
      %s335 = smul.addr %s334, 4
      %s336 = smul.addr %s335, 4
      %s337 = scalar_lea.vmem %s9, %s336
      %p338 = scmp.lt.s32.totalorder %s20, 1
      %s339 = scalar_select %p338, %s20, 1
      %s340 = smul.addr %s339, 9
      %s341 = smul.addr %s340, 4
      %s342 = scalar_lea.vmem %s0, %s341
      %p343 = scmp.lt.s32.totalorder %s20, 1
      %s344 = scalar_select %p343, %s20, 1
      %s345 = smul.addr %s344, 4
      %s346 = smul.addr %s345, 4
      %s347 = scalar_lea.vmem %s1, %s346
      %p348 = scmp.lt.s32.totalorder %s20, 1
      %s349 = scalar_select %p348, %s20, 1
      %s350 = smul.addr %s349, 4
      %s351 = smul.addr %s350, 4
      %s352 = scalar_lea.vmem %s9, %s351
      %v354 = vld [vmem:[%s342] sm:$0xee]
      %v355 = vld [vmem:[%s342 + $0x8] sm:$0xe]
      %v356 = vld [vmem:[%s342 + $0xc] sm:$0xff]
      %v357 = vld [vmem:[%s342 + $0x14] sm:$0xf]
      %v358 = vld [vmem:[%s342 + $0x18] sm:$0x11]
      %v359 = vld [vmem:[%s342 + $0x20] sm:$0x1]
      %v360 = vld [vmem:[%s2] sm:$0xff]
      %v361 = vld [vmem:[%s2 + $0x8] sm:$0xff]
      %v362 = vld [vmem:[%s2 + $0x10] sm:$0xff]
      %v363 = vld [vmem:[%s2 + $0x18] sm:$0xff]
      %v364 = vld [vmem:[%s2 + $0x20] sm:$0xff]
      %v365 = vld [vmem:[%s2 + $0x28] sm:$0xff]
      %v366 = vld [vmem:[%s2 + $0x30] sm:$0xff]
      %v367 = vld [vmem:[%s2 + $0x38] sm:$0xff]
      %v368 = vld [vmem:[%s2 + $0x40] sm:$0xff]
      %v369 = vld [vmem:[%s2 + $0x48] sm:$0xff]
      %v370 = vld [vmem:[%s2 + $0x50] sm:$0xff]
      %v371 = vld [vmem:[%s2 + $0x58] sm:$0xff]
      %v372 = vld [vmem:[%s2 + $0x60] sm:$0xff]
      %v373 = vld [vmem:[%s2 + $0x68] sm:$0xff]
      %v374 = vld [vmem:[%s2 + $0x70] sm:$0xff]
      %v375 = vld [vmem:[%s2 + $0x78] sm:$0xff]
      %v376 = vld [vmem:[%s2 + $0x80] sm:$0xff]
      %v377 = vld [vmem:[%s2 + $0x88] sm:$0xff]
      %v378 = vld [vmem:[%s2 + $0x90] sm:$0xff]
      %v379 = vld [vmem:[%s2 + $0x98] sm:$0xff]
      %v380 = vld [vmem:[%s2 + $0xa0] sm:$0xff]
      %v381 = vld [vmem:[%s2 + $0xa8] sm:$0xff]
      %v382 = vld [vmem:[%s2 + $0xb0] sm:$0xff]
      %v383 = vld [vmem:[%s2 + $0xb8] sm:$0xff]
      %v384 = vld [vmem:[%s2 + $0xc0] sm:$0xff]
      %v385 = vld [vmem:[%s2 + $0xc8] sm:$0xff]
      %v386 = vld [vmem:[%s2 + $0xd0] sm:$0xff]
      %v387 = vld [vmem:[%s2 + $0xd8] sm:$0xff]
      %v388 = vld [vmem:[%s2 + $0xe0] sm:$0xff]
      %v389 = vld [vmem:[%s2 + $0xe8] sm:$0xff]
      %v390 = vld [vmem:[%s2 + $0xf0] sm:$0xff]
      %v391 = vld [vmem:[%s2 + $0xf8] sm:$0xff]
      %v392 = vld [vmem:[%s2 + $0x100] sm:$0xff]
      %v393 = vld [vmem:[%s2 + $0x108] sm:$0xff]
      %v394 = vld [vmem:[%s2 + $0x110] sm:$0xff]
      %v395 = vld [vmem:[%s2 + $0x118] sm:$0xff]
      %v396 = vld [vmem:[%s2 + $0x120] sm:$0xff]
      %v397 = vld [vmem:[%s2 + $0x128] sm:$0xff]
      %v398 = vld [vmem:[%s2 + $0x130] sm:$0xff]
      %v399 = vld [vmem:[%s2 + $0x138] sm:$0xff]
      %v400 = vld [vmem:[%s2 + $0x140] sm:$0xff]
      %v401 = vld [vmem:[%s2 + $0x148] sm:$0xff]
      %v402 = vld [vmem:[%s2 + $0x150] sm:$0xff]
      %v403 = vld [vmem:[%s2 + $0x158] sm:$0xff]
      %v404 = vld [vmem:[%s342] sm:$0xff]
      %v405 = vld [vmem:[%s342 + $0x8] sm:$0xf]
      %v406 = vld [vmem:[%s3] sm:$0xff]
      %v407 = vld [vmem:[%s3 + $0x8] sm:$0xff]
      %v408 = vld [vmem:[%s3 + $0x10] sm:$0xff]
      %v409 = vld [vmem:[%s3 + $0x18] sm:$0xff]
      %v410 = vld [vmem:[%s3 + $0x20] sm:$0xff]
      %v411 = vld [vmem:[%s3 + $0x28] sm:$0xff]
      %v412 = vld [vmem:[%s3 + $0x30] sm:$0xff]
      %v413 = vld [vmem:[%s3 + $0x38] sm:$0xff]
      %v414 = vld [vmem:[%s3 + $0x40] sm:$0xff]
      %v415 = vld [vmem:[%s3 + $0x48] sm:$0xff]
      %v416 = vld [vmem:[%s3 + $0x50] sm:$0xff]
      %v417 = vld [vmem:[%s3 + $0x58] sm:$0xff]
      %v418 = vld [vmem:[%s3 + $0x60] sm:$0xff]
      %v419 = vld [vmem:[%s3 + $0x68] sm:$0xff]
      %v420 = vld [vmem:[%s3 + $0x70] sm:$0xff]
      %v421 = vld [vmem:[%s3 + $0x78] sm:$0xff]
      %v422 = vld [vmem:[%s3 + $0x80] sm:$0xff]
      %v423 = vld [vmem:[%s3 + $0x88] sm:$0xff]
      %v424 = vld [vmem:[%s3 + $0x90] sm:$0xff]
      %v425 = vld [vmem:[%s3 + $0x98] sm:$0xff]
      %v426 = vld [vmem:[%s3 + $0xa0] sm:$0xff]
      %v427 = vld [vmem:[%s3 + $0xa8] sm:$0xff]
      %v428 = vld [vmem:[%s3 + $0xb0] sm:$0xff]
      %v429 = vld [vmem:[%s3 + $0xb8] sm:$0xff]
      %v430 = vld [vmem:[%s3 + $0xc0] sm:$0xff]
      %v431 = vld [vmem:[%s3 + $0xc8] sm:$0xff]
      %v432 = vld [vmem:[%s3 + $0xd0] sm:$0xff]
      %v433 = vld [vmem:[%s3 + $0xd8] sm:$0xff]
      %v434 = vld [vmem:[%s3 + $0xe0] sm:$0xff]
      %v435 = vld [vmem:[%s3 + $0xe8] sm:$0xff]
      %v436 = vld [vmem:[%s3 + $0xf0] sm:$0xff]
      %v437 = vld [vmem:[%s3 + $0xf8] sm:$0xff]
      %v438 = vld [vmem:[%s3 + $0x100] sm:$0xff]
      %v439 = vld [vmem:[%s3 + $0x108] sm:$0xff]
      %v440 = vld [vmem:[%s3 + $0x110] sm:$0xff]
      %v441 = vld [vmem:[%s3 + $0x118] sm:$0xff]
      %v442 = vld [vmem:[%s3 + $0x120] sm:$0xff]
      %v443 = vld [vmem:[%s3 + $0x128] sm:$0xff]
      %v444 = vld [vmem:[%s3 + $0x130] sm:$0xff]
      %v445 = vld [vmem:[%s3 + $0x138] sm:$0xff]
      %v446 = vld [vmem:[%s3 + $0x140] sm:$0xff]
      %v447 = vld [vmem:[%s3 + $0x148] sm:$0xff]
      %v448 = vld [vmem:[%s3 + $0x150] sm:$0xff]
      %v449 = vld [vmem:[%s3 + $0x158] sm:$0xff]
      %v450 = vld [vmem:[%s342 + $0x18] sm:$0x33]
      %v451 = vld [vmem:[%s342 + $0x20] sm:$0x3]
      %s452 = scalar_lea.vmem %s2, 352
      %v453 = vld [vmem:[%s452] sm:$0xff]
      %v454 = vld [vmem:[%s452 + $0x8] sm:$0xff]
      %v455 = vld [vmem:[%s452 + $0x10] sm:$0xff]
      %v456 = vld [vmem:[%s452 + $0x18] sm:$0xff]
      %v457 = vld [vmem:[%s452 + $0x20] sm:$0xff]
      %v458 = vld [vmem:[%s452 + $0x28] sm:$0xff]
      %v459 = vld [vmem:[%s452 + $0x30] sm:$0xff]
      %v460 = vld [vmem:[%s452 + $0x38] sm:$0xff]
      %v461 = vld [vmem:[%s452 + $0x40] sm:$0xff]
      %v462 = vld [vmem:[%s452 + $0x48] sm:$0xff]
      %v463 = vld [vmem:[%s452 + $0x50] sm:$0xff]
      %v464 = vld [vmem:[%s452 + $0x58] sm:$0xff]
      %v465 = vld [vmem:[%s452 + $0x60] sm:$0xff]
      %v466 = vld [vmem:[%s452 + $0x68] sm:$0xff]
      %v467 = vld [vmem:[%s452 + $0x70] sm:$0xff]
      %v468 = vld [vmem:[%s452 + $0x78] sm:$0xff]
      %v469 = vld [vmem:[%s452 + $0x80] sm:$0xff]
      %v470 = vld [vmem:[%s452 + $0x88] sm:$0xff]
      %v471 = vld [vmem:[%s452 + $0x90] sm:$0xff]
      %v472 = vld [vmem:[%s452 + $0x98] sm:$0xff]
      %v473 = vld [vmem:[%s452 + $0xa0] sm:$0xff]
      %v474 = vld [vmem:[%s452 + $0xa8] sm:$0xff]
      %v475 = vld [vmem:[%s452 + $0xb0] sm:$0xff]
      %v476 = vld [vmem:[%s452 + $0xb8] sm:$0xff]
      %v477 = vld [vmem:[%s452 + $0xc0] sm:$0xff]
      %v478 = vld [vmem:[%s452 + $0xc8] sm:$0xff]
      %v479 = vld [vmem:[%s452 + $0xd0] sm:$0xff]
      %v480 = vld [vmem:[%s452 + $0xd8] sm:$0xff]
      %v481 = vld [vmem:[%s452 + $0xe0] sm:$0xff]
      %v482 = vld [vmem:[%s452 + $0xe8] sm:$0xff]
      %v483 = vld [vmem:[%s452 + $0xf0] sm:$0xff]
      %v484 = vld [vmem:[%s452 + $0xf8] sm:$0xff]
      %v485 = vld [vmem:[%s452 + $0x100] sm:$0xff]
      %v486 = vld [vmem:[%s452 + $0x108] sm:$0xff]
      %v487 = vld [vmem:[%s452 + $0x110] sm:$0xff]
      %v488 = vld [vmem:[%s452 + $0x118] sm:$0xff]
      %v489 = vld [vmem:[%s452 + $0x120] sm:$0xff]
      %v490 = vld [vmem:[%s452 + $0x128] sm:$0xff]
      %v491 = vld [vmem:[%s452 + $0x130] sm:$0xff]
      %v492 = vld [vmem:[%s452 + $0x138] sm:$0xff]
      %v493 = vld [vmem:[%s452 + $0x140] sm:$0xff]
      %v494 = vld [vmem:[%s452 + $0x148] sm:$0xff]
      %v495 = vld [vmem:[%s452 + $0x150] sm:$0xff]
      %v496 = vld [vmem:[%s452 + $0x158] sm:$0xff]
      %v503 = vunpack.c.l.b16 %v354
      %v504 = vunpack.c.h.b16 %v354
      %v505 = vunpack.c.l.b16 %v355
      %v506 = vunpack.c.l.b16 %v356
      %v507 = vunpack.c.h.b16 %v356
      %v508 = vunpack.c.l.b16 %v357
      %v509 = vunpack.c.l.b16 %v450
      %v510 = vunpack.c.h.b16 %v450
      %v511 = vunpack.c.l.b16 %v451
      %v512 = vpack.c.b16 %v506, %v503
      %v513 = vpack.c.b16 %v507, %v504
      %v514 = vpack.c.b16 %v508, %v505
      %v515 = vpack.c.b16 %v509, %v509
      %v516 = vpack.c.b16 %v510, %v510
      %v517 = vpack.c.b16 %v511, %v511
      %vm518 = vsmask.f32 6400
      %v520 = vshrl.u32 %v512, 16
      %v522 = vrot.slane %v520, 1
      %v523 = vshll.u32 %v512, 16
      %v525 = vrot.slane %v523, 2
      %v526 = vor.u32 %v522, %v525
      %v528 = vshrl.u32 %v515, 16
      %v530 = vrot.slane %v528, 1
      %v531 = vshll.u32 %v515, 16
      %v533 = vrot.slane %v531, 2
      %v534 = vor.u32 %v530, %v533
      %v535 = vsel %vm518, %v526, %v534
      %v537 = vshrl.u32 %v513, 16
      %v539 = vrot.slane %v537, 1
      %v540 = vshll.u32 %v513, 16
      %v542 = vrot.slane %v540, 2
      %v543 = vor.u32 %v539, %v542
      %v545 = vshrl.u32 %v516, 16
      %v547 = vrot.slane %v545, 1
      %v548 = vshll.u32 %v516, 16
      %v550 = vrot.slane %v548, 2
      %v551 = vor.u32 %v547, %v550
      %v552 = vsel %vm518, %v543, %v551
      %v554 = vshrl.u32 %v514, 16
      %v556 = vrot.slane %v554, 1
      %v557 = vshll.u32 %v514, 16
      %v559 = vrot.slane %v557, 2
      %v560 = vor.u32 %v556, %v559
      %v562 = vshrl.u32 %v517, 16
      %v564 = vrot.slane %v562, 1
      %v565 = vshll.u32 %v517, 16
      %v567 = vrot.slane %v565, 2
      %v568 = vor.u32 %v564, %v567
      %v569 = vsel %vm518, %v560, %v568
      %v616 = vunpack.c.l.b16 %v453
      %v617 = vunpack.c.h.b16 %v453
      %v618 = vunpack.c.l.b16 %v454
      %v619 = vunpack.c.h.b16 %v454
      %v620 = vunpack.c.l.b16 %v455
      %v621 = vunpack.c.h.b16 %v455
      %v622 = vunpack.c.l.b16 %v456
      %v623 = vunpack.c.h.b16 %v456
      %v624 = vunpack.c.l.b16 %v457
      %v625 = vunpack.c.h.b16 %v457
      %v626 = vunpack.c.l.b16 %v458
      %v627 = vunpack.c.h.b16 %v458
      %v628 = vunpack.c.l.b16 %v459
      %v629 = vunpack.c.h.b16 %v459
      %v630 = vunpack.c.l.b16 %v460
      %v631 = vunpack.c.h.b16 %v460
      %v632 = vunpack.c.l.b16 %v461
      %v633 = vunpack.c.h.b16 %v461
      %v634 = vunpack.c.l.b16 %v462
      %v635 = vunpack.c.h.b16 %v462
      %v636 = vunpack.c.l.b16 %v463
      %v637 = vunpack.c.h.b16 %v463
      %v638 = vunpack.c.l.b16 %v464
      %v639 = vunpack.c.h.b16 %v464
      %v640 = vunpack.c.l.b16 %v465
      %v641 = vunpack.c.h.b16 %v465
      %v642 = vunpack.c.l.b16 %v466
      %v643 = vunpack.c.h.b16 %v466
      %v644 = vunpack.c.l.b16 %v467
      %v645 = vunpack.c.h.b16 %v467
      %v646 = vunpack.c.l.b16 %v468
      %v647 = vunpack.c.h.b16 %v468
      %v648 = vunpack.c.l.b16 %v469
      %v649 = vunpack.c.h.b16 %v469
      %v650 = vunpack.c.l.b16 %v470
      %v651 = vunpack.c.h.b16 %v470
      %v652 = vunpack.c.l.b16 %v471
      %v653 = vunpack.c.h.b16 %v471
      %v654 = vunpack.c.l.b16 %v472
      %v655 = vunpack.c.h.b16 %v472
      %v656 = vunpack.c.l.b16 %v473
      %v657 = vunpack.c.h.b16 %v473
      %v658 = vunpack.c.l.b16 %v474
      %v659 = vunpack.c.h.b16 %v474
      %v660 = vunpack.c.l.b16 %v475
      %v661 = vunpack.c.h.b16 %v475
      %v662 = vunpack.c.l.b16 %v476
      %v663 = vunpack.c.h.b16 %v476
      %v664 = vunpack.c.l.b16 %v477
      %v665 = vunpack.c.h.b16 %v477
      %v666 = vunpack.c.l.b16 %v478
      %v667 = vunpack.c.h.b16 %v478
      %v668 = vunpack.c.l.b16 %v479
      %v669 = vunpack.c.h.b16 %v479
      %v670 = vunpack.c.l.b16 %v480
      %v671 = vunpack.c.h.b16 %v480
      %v672 = vunpack.c.l.b16 %v481
      %v673 = vunpack.c.h.b16 %v481
      %v674 = vunpack.c.l.b16 %v482
      %v675 = vunpack.c.h.b16 %v482
      %v676 = vunpack.c.l.b16 %v483
      %v677 = vunpack.c.h.b16 %v483
      %v678 = vunpack.c.l.b16 %v484
      %v679 = vunpack.c.h.b16 %v484
      %v680 = vunpack.c.l.b16 %v485
      %v681 = vunpack.c.h.b16 %v485
      %v682 = vunpack.c.l.b16 %v486
      %v683 = vunpack.c.h.b16 %v486
      %v684 = vunpack.c.l.b16 %v487
      %v685 = vunpack.c.h.b16 %v487
      %v686 = vunpack.c.l.b16 %v488
      %v687 = vunpack.c.h.b16 %v488
      %v688 = vunpack.c.l.b16 %v489
      %v689 = vunpack.c.h.b16 %v489
      %v690 = vunpack.c.l.b16 %v490
      %v691 = vunpack.c.h.b16 %v490
      %v692 = vunpack.c.l.b16 %v491
      %v693 = vunpack.c.h.b16 %v491
      %v694 = vunpack.c.l.b16 %v492
      %v695 = vunpack.c.h.b16 %v492
      %v696 = vunpack.c.l.b16 %v493
      %v697 = vunpack.c.h.b16 %v493
      %v698 = vunpack.c.l.b16 %v494
      %v699 = vunpack.c.h.b16 %v494
      %v700 = vunpack.c.l.b16 %v495
      %v701 = vunpack.c.h.b16 %v495
      %v702 = vunpack.c.l.b16 %v496
      %v703 = vunpack.c.h.b16 %v496
      %v704 = vpack.c.b16 %v618, %v616
      %v705 = vpack.c.b16 %v619, %v617
      %v706 = vpack.c.b16 %v622, %v620
      %v707 = vpack.c.b16 %v623, %v621
      %v708 = vpack.c.b16 %v626, %v624
      %v709 = vpack.c.b16 %v627, %v625
      %v710 = vpack.c.b16 %v630, %v628
      %v711 = vpack.c.b16 %v631, %v629
      %v712 = vpack.c.b16 %v634, %v632
      %v713 = vpack.c.b16 %v635, %v633
      %v714 = vpack.c.b16 %v638, %v636
      %v715 = vpack.c.b16 %v639, %v637
      %v716 = vpack.c.b16 %v642, %v640
      %v717 = vpack.c.b16 %v643, %v641
      %v718 = vpack.c.b16 %v646, %v644
      %v719 = vpack.c.b16 %v647, %v645
      %v720 = vpack.c.b16 %v650, %v648
      %v721 = vpack.c.b16 %v651, %v649
      %v722 = vpack.c.b16 %v654, %v652
      %v723 = vpack.c.b16 %v655, %v653
      %v724 = vpack.c.b16 %v658, %v656
      %v725 = vpack.c.b16 %v659, %v657
      %v726 = vpack.c.b16 %v662, %v660
      %v727 = vpack.c.b16 %v663, %v661
      %v728 = vpack.c.b16 %v666, %v664
      %v729 = vpack.c.b16 %v667, %v665
      %v730 = vpack.c.b16 %v670, %v668
      %v731 = vpack.c.b16 %v671, %v669
      %v732 = vpack.c.b16 %v674, %v672
      %v733 = vpack.c.b16 %v675, %v673
      %v734 = vpack.c.b16 %v678, %v676
      %v735 = vpack.c.b16 %v679, %v677
      %v736 = vpack.c.b16 %v682, %v680
      %v737 = vpack.c.b16 %v683, %v681
      %v738 = vpack.c.b16 %v686, %v684
      %v739 = vpack.c.b16 %v687, %v685
      %v740 = vpack.c.b16 %v690, %v688
      %v741 = vpack.c.b16 %v691, %v689
      %v742 = vpack.c.b16 %v694, %v692
      %v743 = vpack.c.b16 %v695, %v693
      %v744 = vpack.c.b16 %v698, %v696
      %v745 = vpack.c.b16 %v699, %v697
      %v746 = vpack.c.b16 %v702, %v700
      %v747 = vpack.c.b16 %v703, %v701
      %vm792 = vcmask 785408
      %v794 = vsel %vm792, %v569, 0
      %796 = vmatpush.bf16.msra.mxu0 %v718
      %797 = vmatpush.bf16.msra.mxu0 %v716
      %798 = vmatpush.bf16.msra.mxu0 %v714
      %799 = vmatpush.bf16.msra.mxu0 %v712
      %800 = vmatpush.bf16.msra.mxu0 %v710
      %801 = vmatpush.bf16.msra.mxu0 %v708
      %802 = vmatpush.bf16.msra.mxu0 %v706
      %803 = vmatpush.bf16.msra.mxu0 %v704
      %804 = vmatmul.bf16.gmra.mxu0 %v535
      %v805 = vpop.f32.mrf.mxu0
      %v806 = vadd.f32 0.0, %v805
      %v807 = vpop.f32.mrf.mxu0
      %v808 = vadd.f32 0.0, %v807
      %809 = vdwg.mxu0
      %810 = vmatpush.bf16.msra.mxu0 %v734
      %811 = vmatpush.bf16.msra.mxu0 %v732
      %812 = vmatpush.bf16.msra.mxu0 %v730
      %813 = vmatpush.bf16.msra.mxu0 %v728
      %814 = vmatpush.bf16.msra.mxu0 %v726
      %815 = vmatpush.bf16.msra.mxu0 %v724
      %816 = vmatpush.bf16.msra.mxu0 %v722
      %817 = vmatpush.bf16.msra.mxu0 %v720
      %818 = vmatmul.bf16.gmra.mxu0 %v552
      %v819 = vpop.f32.mrf.mxu0
      %v820 = vadd.f32 %v806, %v819
      %v821 = vpop.f32.mrf.mxu0
      %v822 = vadd.f32 %v808, %v821
      %823 = vdwg.mxu0
      %824 = vmatpush.bf16.msra.mxu0 0
      %825 = vmatpush.bf16.msra.mxu0 0
      %826 = vmatpush.bf16.msra.mxu0 %v746
      %827 = vmatpush.bf16.msra.mxu0 %v744
      %828 = vmatpush.bf16.msra.mxu0 %v742
      %829 = vmatpush.bf16.msra.mxu0 %v740
      %830 = vmatpush.bf16.msra.mxu0 %v738
      %831 = vmatpush.bf16.msra.mxu0 %v736
      %832 = vmatmul.bf16.gmra.mxu0 %v794
      %v833 = vpop.f32.mrf.mxu0
      %v834 = vadd.f32 %v820, %v833
      %v835 = vpop.f32.mrf.mxu0
      %v836 = vadd.f32 %v822, %v835
      %837 = vdwg.mxu0
      %838 = vmatpush.bf16.msra.mxu0 %v719
      %839 = vmatpush.bf16.msra.mxu0 %v717
      %840 = vmatpush.bf16.msra.mxu0 %v715
      %841 = vmatpush.bf16.msra.mxu0 %v713
      %842 = vmatpush.bf16.msra.mxu0 %v711
      %843 = vmatpush.bf16.msra.mxu0 %v709
      %844 = vmatpush.bf16.msra.mxu0 %v707
      %845 = vmatpush.bf16.msra.mxu0 %v705
      %846 = vmatmul.bf16.gmra.mxu0 %v535
      %v847 = vpop.f32.mrf.mxu0
      %v848 = vadd.f32 0.0, %v847
      %v849 = vpop.f32.mrf.mxu0
      %v850 = vadd.f32 0.0, %v849
      %851 = vdwg.mxu0
      %852 = vmatpush.bf16.msra.mxu0 %v735
      %853 = vmatpush.bf16.msra.mxu0 %v733
      %854 = vmatpush.bf16.msra.mxu0 %v731
      %855 = vmatpush.bf16.msra.mxu0 %v729
      %856 = vmatpush.bf16.msra.mxu0 %v727
      %857 = vmatpush.bf16.msra.mxu0 %v725
      %858 = vmatpush.bf16.msra.mxu0 %v723
      %859 = vmatpush.bf16.msra.mxu0 %v721
      %860 = vmatmul.bf16.gmra.mxu0 %v552
      %v861 = vpop.f32.mrf.mxu0
      %v862 = vadd.f32 %v848, %v861
      %v863 = vpop.f32.mrf.mxu0
      %v864 = vadd.f32 %v850, %v863
      %865 = vdwg.mxu0
      %866 = vmatpush.bf16.msra.mxu0 0
      %867 = vmatpush.bf16.msra.mxu0 0
      %868 = vmatpush.bf16.msra.mxu0 %v747
      %869 = vmatpush.bf16.msra.mxu0 %v745
      %870 = vmatpush.bf16.msra.mxu0 %v743
      %871 = vmatpush.bf16.msra.mxu0 %v741
      %872 = vmatpush.bf16.msra.mxu0 %v739
      %873 = vmatpush.bf16.msra.mxu0 %v737
      %874 = vmatmul.bf16.gmra.mxu0 %v794
      %v875 = vpop.f32.mrf.mxu0
      %v876 = vadd.f32 %v862, %v875
      %v877 = vpop.f32.mrf.mxu0
      %v878 = vadd.f32 %v864, %v877
      %879 = vdwg.mxu0
      %v882 = vunpack.c.l.b16 %v358
      %v883 = vunpack.c.h.b16 %v358
      %v884 = vunpack.c.l.b16 %v359
      %v885 = vpack.c.b16 %v882, %v882
      %v886 = vpack.c.b16 %v883, %v883
      %v887 = vpack.c.b16 %v884, %v884
      %vm888 = vcmask 1046528
      %v889 = vrot.slane %v512, 1
      %v890 = vrot.slane %v885, 1
      %v891 = vsel %vm888, %v889, %v890
      %v892 = vrot.slane %v513, 1
      %v893 = vrot.slane %v886, 1
      %v894 = vsel %vm888, %v892, %v893
      %v895 = vrot.slane %v514, 1
      %v896 = vrot.slane %v887, 1
      %v897 = vsel %vm888, %v895, %v896
      %v944 = vunpack.c.l.b16 %v360
      %v945 = vunpack.c.h.b16 %v360
      %v946 = vunpack.c.l.b16 %v361
      %v947 = vunpack.c.h.b16 %v361
      %v948 = vunpack.c.l.b16 %v362
      %v949 = vunpack.c.h.b16 %v362
      %v950 = vunpack.c.l.b16 %v363
      %v951 = vunpack.c.h.b16 %v363
      %v952 = vunpack.c.l.b16 %v364
      %v953 = vunpack.c.h.b16 %v364
      %v954 = vunpack.c.l.b16 %v365
      %v955 = vunpack.c.h.b16 %v365
      %v956 = vunpack.c.l.b16 %v366
      %v957 = vunpack.c.h.b16 %v366
      %v958 = vunpack.c.l.b16 %v367
      %v959 = vunpack.c.h.b16 %v367
      %v960 = vunpack.c.l.b16 %v368
      %v961 = vunpack.c.h.b16 %v368
      %v962 = vunpack.c.l.b16 %v369
      %v963 = vunpack.c.h.b16 %v369
      %v964 = vunpack.c.l.b16 %v370
      %v965 = vunpack.c.h.b16 %v370
      %v966 = vunpack.c.l.b16 %v371
      %v967 = vunpack.c.h.b16 %v371
      %v968 = vunpack.c.l.b16 %v372
      %v969 = vunpack.c.h.b16 %v372
      %v970 = vunpack.c.l.b16 %v373
      %v971 = vunpack.c.h.b16 %v373
      %v972 = vunpack.c.l.b16 %v374
      %v973 = vunpack.c.h.b16 %v374
      %v974 = vunpack.c.l.b16 %v375
      %v975 = vunpack.c.h.b16 %v375
      %v976 = vunpack.c.l.b16 %v376
      %v977 = vunpack.c.h.b16 %v376
      %v978 = vunpack.c.l.b16 %v377
      %v979 = vunpack.c.h.b16 %v377
      %v980 = vunpack.c.l.b16 %v378
      %v981 = vunpack.c.h.b16 %v378
      %v982 = vunpack.c.l.b16 %v379
      %v983 = vunpack.c.h.b16 %v379
      %v984 = vunpack.c.l.b16 %v380
      %v985 = vunpack.c.h.b16 %v380
      %v986 = vunpack.c.l.b16 %v381
      %v987 = vunpack.c.h.b16 %v381
      %v988 = vunpack.c.l.b16 %v382
      %v989 = vunpack.c.h.b16 %v382
      %v990 = vunpack.c.l.b16 %v383
      %v991 = vunpack.c.h.b16 %v383
      %v992 = vunpack.c.l.b16 %v384
      %v993 = vunpack.c.h.b16 %v384
      %v994 = vunpack.c.l.b16 %v385
      %v995 = vunpack.c.h.b16 %v385
      %v996 = vunpack.c.l.b16 %v386
      %v997 = vunpack.c.h.b16 %v386
      %v998 = vunpack.c.l.b16 %v387
      %v999 = vunpack.c.h.b16 %v387
      %v1000 = vunpack.c.l.b16 %v388
      %v1001 = vunpack.c.h.b16 %v388
      %v1002 = vunpack.c.l.b16 %v389
      %v1003 = vunpack.c.h.b16 %v389
      %v1004 = vunpack.c.l.b16 %v390
      %v1005 = vunpack.c.h.b16 %v390
      %v1006 = vunpack.c.l.b16 %v391
      %v1007 = vunpack.c.h.b16 %v391
      %v1008 = vunpack.c.l.b16 %v392
      %v1009 = vunpack.c.h.b16 %v392
      %v1010 = vunpack.c.l.b16 %v393
      %v1011 = vunpack.c.h.b16 %v393
      %v1012 = vunpack.c.l.b16 %v394
      %v1013 = vunpack.c.h.b16 %v394
      %v1014 = vunpack.c.l.b16 %v395
      %v1015 = vunpack.c.h.b16 %v395
      %v1016 = vunpack.c.l.b16 %v396
      %v1017 = vunpack.c.h.b16 %v396
      %v1018 = vunpack.c.l.b16 %v397
      %v1019 = vunpack.c.h.b16 %v397
      %v1020 = vunpack.c.l.b16 %v398
      %v1021 = vunpack.c.h.b16 %v398
      %v1022 = vunpack.c.l.b16 %v399
      %v1023 = vunpack.c.h.b16 %v399
      %v1024 = vunpack.c.l.b16 %v400
      %v1025 = vunpack.c.h.b16 %v400
      %v1026 = vunpack.c.l.b16 %v401
      %v1027 = vunpack.c.h.b16 %v401
      %v1028 = vunpack.c.l.b16 %v402
      %v1029 = vunpack.c.h.b16 %v402
      %v1030 = vunpack.c.l.b16 %v403
      %v1031 = vunpack.c.h.b16 %v403
      %v1032 = vpack.c.b16 %v946, %v944
      %v1033 = vpack.c.b16 %v947, %v945
      %v1034 = vpack.c.b16 %v950, %v948
      %v1035 = vpack.c.b16 %v951, %v949
      %v1036 = vpack.c.b16 %v954, %v952
      %v1037 = vpack.c.b16 %v955, %v953
      %v1038 = vpack.c.b16 %v958, %v956
      %v1039 = vpack.c.b16 %v959, %v957
      %v1040 = vpack.c.b16 %v962, %v960
      %v1041 = vpack.c.b16 %v963, %v961
      %v1042 = vpack.c.b16 %v966, %v964
      %v1043 = vpack.c.b16 %v967, %v965
      %v1044 = vpack.c.b16 %v970, %v968
      %v1045 = vpack.c.b16 %v971, %v969
      %v1046 = vpack.c.b16 %v974, %v972
      %v1047 = vpack.c.b16 %v975, %v973
      %v1048 = vpack.c.b16 %v978, %v976
      %v1049 = vpack.c.b16 %v979, %v977
      %v1050 = vpack.c.b16 %v982, %v980
      %v1051 = vpack.c.b16 %v983, %v981
      %v1052 = vpack.c.b16 %v986, %v984
      %v1053 = vpack.c.b16 %v987, %v985
      %v1054 = vpack.c.b16 %v990, %v988
      %v1055 = vpack.c.b16 %v991, %v989
      %v1056 = vpack.c.b16 %v994, %v992
      %v1057 = vpack.c.b16 %v995, %v993
      %v1058 = vpack.c.b16 %v998, %v996
      %v1059 = vpack.c.b16 %v999, %v997
      %v1060 = vpack.c.b16 %v1002, %v1000
      %v1061 = vpack.c.b16 %v1003, %v1001
      %v1062 = vpack.c.b16 %v1006, %v1004
      %v1063 = vpack.c.b16 %v1007, %v1005
      %v1064 = vpack.c.b16 %v1010, %v1008
      %v1065 = vpack.c.b16 %v1011, %v1009
      %v1066 = vpack.c.b16 %v1014, %v1012
      %v1067 = vpack.c.b16 %v1015, %v1013
      %v1068 = vpack.c.b16 %v1018, %v1016
      %v1069 = vpack.c.b16 %v1019, %v1017
      %v1070 = vpack.c.b16 %v1022, %v1020
      %v1071 = vpack.c.b16 %v1023, %v1021
      %v1072 = vpack.c.b16 %v1026, %v1024
      %v1073 = vpack.c.b16 %v1027, %v1025
      %v1074 = vpack.c.b16 %v1030, %v1028
      %v1075 = vpack.c.b16 %v1031, %v1029
      %v1121 = vsel %vm792, %v897, 0
      %1123 = vmatpush.bf16.msra.mxu0 %v1046
      %1124 = vmatpush.bf16.msra.mxu0 %v1044
      %1125 = vmatpush.bf16.msra.mxu0 %v1042
      %1126 = vmatpush.bf16.msra.mxu0 %v1040
      %1127 = vmatpush.bf16.msra.mxu0 %v1038
      %1128 = vmatpush.bf16.msra.mxu0 %v1036
      %1129 = vmatpush.bf16.msra.mxu0 %v1034
      %1130 = vmatpush.bf16.msra.mxu0 %v1032
      %1131 = vmatmul.bf16.gmra.mxu0 %v891
      %v1132 = vpop.f32.mrf.mxu0
      %v1133 = vadd.f32 %v834, %v1132
      %v1134 = vpop.f32.mrf.mxu0
      %v1135 = vadd.f32 %v836, %v1134
      %1136 = vdwg.mxu0
      %1137 = vmatpush.bf16.msra.mxu0 %v1062
      %1138 = vmatpush.bf16.msra.mxu0 %v1060
      %1139 = vmatpush.bf16.msra.mxu0 %v1058
      %1140 = vmatpush.bf16.msra.mxu0 %v1056
      %1141 = vmatpush.bf16.msra.mxu0 %v1054
      %1142 = vmatpush.bf16.msra.mxu0 %v1052
      %1143 = vmatpush.bf16.msra.mxu0 %v1050
      %1144 = vmatpush.bf16.msra.mxu0 %v1048
      %1145 = vmatmul.bf16.gmra.mxu0 %v894
      %v1146 = vpop.f32.mrf.mxu0
      %v1147 = vadd.f32 %v1133, %v1146
      %v1148 = vpop.f32.mrf.mxu0
      %v1149 = vadd.f32 %v1135, %v1148
      %1150 = vdwg.mxu0
      %1151 = vmatpush.bf16.msra.mxu0 0
      %1152 = vmatpush.bf16.msra.mxu0 0
      %1153 = vmatpush.bf16.msra.mxu0 %v1074
      %1154 = vmatpush.bf16.msra.mxu0 %v1072
      %1155 = vmatpush.bf16.msra.mxu0 %v1070
      %1156 = vmatpush.bf16.msra.mxu0 %v1068
      %1157 = vmatpush.bf16.msra.mxu0 %v1066
      %1158 = vmatpush.bf16.msra.mxu0 %v1064
      %1159 = vmatmul.bf16.gmra.mxu0 %v1121
      %v1160 = vpop.f32.mrf.mxu0
      %v1161 = vadd.f32 %v1147, %v1160
      %v1162 = vpop.f32.mrf.mxu0
      %v1163 = vadd.f32 %v1149, %v1162
      %1164 = vdwg.mxu0
      %1165 = vmatpush.bf16.msra.mxu0 %v1047
      %1166 = vmatpush.bf16.msra.mxu0 %v1045
      %1167 = vmatpush.bf16.msra.mxu0 %v1043
      %1168 = vmatpush.bf16.msra.mxu0 %v1041
      %1169 = vmatpush.bf16.msra.mxu0 %v1039
      %1170 = vmatpush.bf16.msra.mxu0 %v1037
      %1171 = vmatpush.bf16.msra.mxu0 %v1035
      %1172 = vmatpush.bf16.msra.mxu0 %v1033
      %1173 = vmatmul.bf16.gmra.mxu0 %v891
      %v1174 = vpop.f32.mrf.mxu0
      %v1175 = vadd.f32 %v876, %v1174
      %v1176 = vpop.f32.mrf.mxu0
      %v1177 = vadd.f32 %v878, %v1176
      %1178 = vdwg.mxu0
      %1179 = vmatpush.bf16.msra.mxu0 %v1063
      %1180 = vmatpush.bf16.msra.mxu0 %v1061
      %1181 = vmatpush.bf16.msra.mxu0 %v1059
      %1182 = vmatpush.bf16.msra.mxu0 %v1057
      %1183 = vmatpush.bf16.msra.mxu0 %v1055
      %1184 = vmatpush.bf16.msra.mxu0 %v1053
      %1185 = vmatpush.bf16.msra.mxu0 %v1051
      %1186 = vmatpush.bf16.msra.mxu0 %v1049
      %1187 = vmatmul.bf16.gmra.mxu0 %v894
      %v1188 = vpop.f32.mrf.mxu0
      %v1189 = vadd.f32 %v1175, %v1188
      %v1190 = vpop.f32.mrf.mxu0
      %v1191 = vadd.f32 %v1177, %v1190
      %1192 = vdwg.mxu0
      %1193 = vmatpush.bf16.msra.mxu0 0
      %1194 = vmatpush.bf16.msra.mxu0 0
      %1195 = vmatpush.bf16.msra.mxu0 %v1075
      %1196 = vmatpush.bf16.msra.mxu0 %v1073
      %1197 = vmatpush.bf16.msra.mxu0 %v1071
      %1198 = vmatpush.bf16.msra.mxu0 %v1069
      %1199 = vmatpush.bf16.msra.mxu0 %v1067
      %1200 = vmatpush.bf16.msra.mxu0 %v1065
      %1201 = vmatmul.bf16.gmra.mxu0 %v1121
      %v1202 = vpop.f32.mrf.mxu0
      %v1203 = vadd.f32 %v1189, %v1202
      %v1204 = vpop.f32.mrf.mxu0
      %v1205 = vadd.f32 %v1191, %v1204
      %1206 = vdwg.mxu0
      %s1207 = scalar_lea.vmem %s3, 352
      %v1208 = vld [vmem:[%s1207] sm:$0xff]
      %v1209 = vld [vmem:[%s1207 + $0x8] sm:$0xff]
      %v1210 = vld [vmem:[%s1207 + $0x10] sm:$0xff]
      %v1211 = vld [vmem:[%s1207 + $0x18] sm:$0xff]
      %v1212 = vld [vmem:[%s1207 + $0x20] sm:$0xff]
      %v1213 = vld [vmem:[%s1207 + $0x28] sm:$0xff]
      %v1214 = vld [vmem:[%s1207 + $0x30] sm:$0xff]
      %v1215 = vld [vmem:[%s1207 + $0x38] sm:$0xff]
      %v1216 = vld [vmem:[%s1207 + $0x40] sm:$0xff]
      %v1217 = vld [vmem:[%s1207 + $0x48] sm:$0xff]
      %v1218 = vld [vmem:[%s1207 + $0x50] sm:$0xff]
      %v1219 = vld [vmem:[%s1207 + $0x58] sm:$0xff]
      %v1220 = vld [vmem:[%s1207 + $0x60] sm:$0xff]
      %v1221 = vld [vmem:[%s1207 + $0x68] sm:$0xff]
      %v1222 = vld [vmem:[%s1207 + $0x70] sm:$0xff]
      %v1223 = vld [vmem:[%s1207 + $0x78] sm:$0xff]
      %v1224 = vld [vmem:[%s1207 + $0x80] sm:$0xff]
      %v1225 = vld [vmem:[%s1207 + $0x88] sm:$0xff]
      %v1226 = vld [vmem:[%s1207 + $0x90] sm:$0xff]
      %v1227 = vld [vmem:[%s1207 + $0x98] sm:$0xff]
      %v1228 = vld [vmem:[%s1207 + $0xa0] sm:$0xff]
      %v1229 = vld [vmem:[%s1207 + $0xa8] sm:$0xff]
      %v1230 = vld [vmem:[%s1207 + $0xb0] sm:$0xff]
      %v1231 = vld [vmem:[%s1207 + $0xb8] sm:$0xff]
      %v1232 = vld [vmem:[%s1207 + $0xc0] sm:$0xff]
      %v1233 = vld [vmem:[%s1207 + $0xc8] sm:$0xff]
      %v1234 = vld [vmem:[%s1207 + $0xd0] sm:$0xff]
      %v1235 = vld [vmem:[%s1207 + $0xd8] sm:$0xff]
      %v1236 = vld [vmem:[%s1207 + $0xe0] sm:$0xff]
      %v1237 = vld [vmem:[%s1207 + $0xe8] sm:$0xff]
      %v1238 = vld [vmem:[%s1207 + $0xf0] sm:$0xff]
      %v1239 = vld [vmem:[%s1207 + $0xf8] sm:$0xff]
      %v1240 = vld [vmem:[%s1207 + $0x100] sm:$0xff]
      %v1241 = vld [vmem:[%s1207 + $0x108] sm:$0xff]
      %v1242 = vld [vmem:[%s1207 + $0x110] sm:$0xff]
      %v1243 = vld [vmem:[%s1207 + $0x118] sm:$0xff]
      %v1244 = vld [vmem:[%s1207 + $0x120] sm:$0xff]
      %v1245 = vld [vmem:[%s1207 + $0x128] sm:$0xff]
      %v1246 = vld [vmem:[%s1207 + $0x130] sm:$0xff]
      %v1247 = vld [vmem:[%s1207 + $0x138] sm:$0xff]
      %v1248 = vld [vmem:[%s1207 + $0x140] sm:$0xff]
      %v1249 = vld [vmem:[%s1207 + $0x148] sm:$0xff]
      %v1250 = vld [vmem:[%s1207 + $0x150] sm:$0xff]
      %v1251 = vld [vmem:[%s1207 + $0x158] sm:$0xff]
      %v1296 = vunpack.c.l.b16 %v1208
      %v1297 = vunpack.c.h.b16 %v1208
      %v1298 = vunpack.c.l.b16 %v1209
      %v1299 = vunpack.c.h.b16 %v1209
      %v1300 = vunpack.c.l.b16 %v1210
      %v1301 = vunpack.c.h.b16 %v1210
      %v1302 = vunpack.c.l.b16 %v1211
      %v1303 = vunpack.c.h.b16 %v1211
      %v1304 = vunpack.c.l.b16 %v1212
      %v1305 = vunpack.c.h.b16 %v1212
      %v1306 = vunpack.c.l.b16 %v1213
      %v1307 = vunpack.c.h.b16 %v1213
      %v1308 = vunpack.c.l.b16 %v1214
      %v1309 = vunpack.c.h.b16 %v1214
      %v1310 = vunpack.c.l.b16 %v1215
      %v1311 = vunpack.c.h.b16 %v1215
      %v1312 = vunpack.c.l.b16 %v1216
      %v1313 = vunpack.c.h.b16 %v1216
      %v1314 = vunpack.c.l.b16 %v1217
      %v1315 = vunpack.c.h.b16 %v1217
      %v1316 = vunpack.c.l.b16 %v1218
      %v1317 = vunpack.c.h.b16 %v1218
      %v1318 = vunpack.c.l.b16 %v1219
      %v1319 = vunpack.c.h.b16 %v1219
      %v1320 = vunpack.c.l.b16 %v1220
      %v1321 = vunpack.c.h.b16 %v1220
      %v1322 = vunpack.c.l.b16 %v1221
      %v1323 = vunpack.c.h.b16 %v1221
      %v1324 = vunpack.c.l.b16 %v1222
      %v1325 = vunpack.c.h.b16 %v1222
      %v1326 = vunpack.c.l.b16 %v1223
      %v1327 = vunpack.c.h.b16 %v1223
      %v1328 = vunpack.c.l.b16 %v1224
      %v1329 = vunpack.c.h.b16 %v1224
      %v1330 = vunpack.c.l.b16 %v1225
      %v1331 = vunpack.c.h.b16 %v1225
      %v1332 = vunpack.c.l.b16 %v1226
      %v1333 = vunpack.c.h.b16 %v1226
      %v1334 = vunpack.c.l.b16 %v1227
      %v1335 = vunpack.c.h.b16 %v1227
      %v1336 = vunpack.c.l.b16 %v1228
      %v1337 = vunpack.c.h.b16 %v1228
      %v1338 = vunpack.c.l.b16 %v1229
      %v1339 = vunpack.c.h.b16 %v1229
      %v1340 = vunpack.c.l.b16 %v1230
      %v1341 = vunpack.c.h.b16 %v1230
      %v1342 = vunpack.c.l.b16 %v1231
      %v1343 = vunpack.c.h.b16 %v1231
      %v1344 = vunpack.c.l.b16 %v1232
      %v1345 = vunpack.c.h.b16 %v1232
      %v1346 = vunpack.c.l.b16 %v1233
      %v1347 = vunpack.c.h.b16 %v1233
      %v1348 = vunpack.c.l.b16 %v1234
      %v1349 = vunpack.c.h.b16 %v1234
      %v1350 = vunpack.c.l.b16 %v1235
      %v1351 = vunpack.c.h.b16 %v1235
      %v1352 = vunpack.c.l.b16 %v1236
      %v1353 = vunpack.c.h.b16 %v1236
      %v1354 = vunpack.c.l.b16 %v1237
      %v1355 = vunpack.c.h.b16 %v1237
      %v1356 = vunpack.c.l.b16 %v1238
      %v1357 = vunpack.c.h.b16 %v1238
      %v1358 = vunpack.c.l.b16 %v1239
      %v1359 = vunpack.c.h.b16 %v1239
      %v1360 = vunpack.c.l.b16 %v1240
      %v1361 = vunpack.c.h.b16 %v1240
      %v1362 = vunpack.c.l.b16 %v1241
      %v1363 = vunpack.c.h.b16 %v1241
      %v1364 = vunpack.c.l.b16 %v1242
      %v1365 = vunpack.c.h.b16 %v1242
      %v1366 = vunpack.c.l.b16 %v1243
      %v1367 = vunpack.c.h.b16 %v1243
      %v1368 = vunpack.c.l.b16 %v1244
      %v1369 = vunpack.c.h.b16 %v1244
      %v1370 = vunpack.c.l.b16 %v1245
      %v1371 = vunpack.c.h.b16 %v1245
      %v1372 = vunpack.c.l.b16 %v1246
      %v1373 = vunpack.c.h.b16 %v1246
      %v1374 = vunpack.c.l.b16 %v1247
      %v1375 = vunpack.c.h.b16 %v1247
      %v1376 = vunpack.c.l.b16 %v1248
      %v1377 = vunpack.c.h.b16 %v1248
      %v1378 = vunpack.c.l.b16 %v1249
      %v1379 = vunpack.c.h.b16 %v1249
      %v1380 = vunpack.c.l.b16 %v1250
      %v1381 = vunpack.c.h.b16 %v1250
      %v1382 = vunpack.c.l.b16 %v1251
      %v1383 = vunpack.c.h.b16 %v1251
      %v1384 = vpack.c.b16 %v1298, %v1296
      %v1385 = vpack.c.b16 %v1299, %v1297
      %v1386 = vpack.c.b16 %v1302, %v1300
      %v1387 = vpack.c.b16 %v1303, %v1301
      %v1388 = vpack.c.b16 %v1306, %v1304
      %v1389 = vpack.c.b16 %v1307, %v1305
      %v1390 = vpack.c.b16 %v1310, %v1308
      %v1391 = vpack.c.b16 %v1311, %v1309
      %v1392 = vpack.c.b16 %v1314, %v1312
      %v1393 = vpack.c.b16 %v1315, %v1313
      %v1394 = vpack.c.b16 %v1318, %v1316
      %v1395 = vpack.c.b16 %v1319, %v1317
      %v1396 = vpack.c.b16 %v1322, %v1320
      %v1397 = vpack.c.b16 %v1323, %v1321
      %v1398 = vpack.c.b16 %v1326, %v1324
      %v1399 = vpack.c.b16 %v1327, %v1325
      %v1400 = vpack.c.b16 %v1330, %v1328
      %v1401 = vpack.c.b16 %v1331, %v1329
      %v1402 = vpack.c.b16 %v1334, %v1332
      %v1403 = vpack.c.b16 %v1335, %v1333
      %v1404 = vpack.c.b16 %v1338, %v1336
      %v1405 = vpack.c.b16 %v1339, %v1337
      %v1406 = vpack.c.b16 %v1342, %v1340
      %v1407 = vpack.c.b16 %v1343, %v1341
      %v1408 = vpack.c.b16 %v1346, %v1344
      %v1409 = vpack.c.b16 %v1347, %v1345
      %v1410 = vpack.c.b16 %v1350, %v1348
      %v1411 = vpack.c.b16 %v1351, %v1349
      %v1412 = vpack.c.b16 %v1354, %v1352
      %v1413 = vpack.c.b16 %v1355, %v1353
      %v1414 = vpack.c.b16 %v1358, %v1356
      %v1415 = vpack.c.b16 %v1359, %v1357
      %v1416 = vpack.c.b16 %v1362, %v1360
      %v1417 = vpack.c.b16 %v1363, %v1361
      %v1418 = vpack.c.b16 %v1366, %v1364
      %v1419 = vpack.c.b16 %v1367, %v1365
      %v1420 = vpack.c.b16 %v1370, %v1368
      %v1421 = vpack.c.b16 %v1371, %v1369
      %v1422 = vpack.c.b16 %v1374, %v1372
      %v1423 = vpack.c.b16 %v1375, %v1373
      %v1424 = vpack.c.b16 %v1378, %v1376
      %v1425 = vpack.c.b16 %v1379, %v1377
      %v1426 = vpack.c.b16 %v1382, %v1380
      %v1427 = vpack.c.b16 %v1383, %v1381
      %1472 = vmatpush.bf16.msra.mxu0 %v1398
      %1473 = vmatpush.bf16.msra.mxu0 %v1396
      %1474 = vmatpush.bf16.msra.mxu0 %v1394
      %1475 = vmatpush.bf16.msra.mxu0 %v1392
      %1476 = vmatpush.bf16.msra.mxu0 %v1390
      %1477 = vmatpush.bf16.msra.mxu0 %v1388
      %1478 = vmatpush.bf16.msra.mxu0 %v1386
      %1479 = vmatpush.bf16.msra.mxu0 %v1384
      %1480 = vmatmul.bf16.gmra.mxu0 %v535
      %v1481 = vpop.f32.mrf.mxu0
      %v1482 = vadd.f32 0.0, %v1481
      %v1483 = vpop.f32.mrf.mxu0
      %v1484 = vadd.f32 0.0, %v1483
      %1485 = vdwg.mxu0
      %1486 = vmatpush.bf16.msra.mxu0 %v1414
      %1487 = vmatpush.bf16.msra.mxu0 %v1412
      %1488 = vmatpush.bf16.msra.mxu0 %v1410
      %1489 = vmatpush.bf16.msra.mxu0 %v1408
      %1490 = vmatpush.bf16.msra.mxu0 %v1406
      %1491 = vmatpush.bf16.msra.mxu0 %v1404
      %1492 = vmatpush.bf16.msra.mxu0 %v1402
      %1493 = vmatpush.bf16.msra.mxu0 %v1400
      %1494 = vmatmul.bf16.gmra.mxu0 %v552
      %v1495 = vpop.f32.mrf.mxu0
      %v1496 = vadd.f32 %v1482, %v1495
      %v1497 = vpop.f32.mrf.mxu0
      %v1498 = vadd.f32 %v1484, %v1497
      %1499 = vdwg.mxu0
      %1500 = vmatpush.bf16.msra.mxu0 0
      %1501 = vmatpush.bf16.msra.mxu0 0
      %1502 = vmatpush.bf16.msra.mxu0 %v1426
      %1503 = vmatpush.bf16.msra.mxu0 %v1424
      %1504 = vmatpush.bf16.msra.mxu0 %v1422
      %1505 = vmatpush.bf16.msra.mxu0 %v1420
      %1506 = vmatpush.bf16.msra.mxu0 %v1418
      %1507 = vmatpush.bf16.msra.mxu0 %v1416
      %1508 = vmatmul.bf16.gmra.mxu0 %v794
      %v1509 = vpop.f32.mrf.mxu0
      %v1510 = vadd.f32 %v1496, %v1509
      %v1511 = vpop.f32.mrf.mxu0
      %v1512 = vadd.f32 %v1498, %v1511
      %1513 = vdwg.mxu0
      %1514 = vmatpush.bf16.msra.mxu0 %v1399
      %1515 = vmatpush.bf16.msra.mxu0 %v1397
      %1516 = vmatpush.bf16.msra.mxu0 %v1395
      %1517 = vmatpush.bf16.msra.mxu0 %v1393
      %1518 = vmatpush.bf16.msra.mxu0 %v1391
      %1519 = vmatpush.bf16.msra.mxu0 %v1389
      %1520 = vmatpush.bf16.msra.mxu0 %v1387
      %1521 = vmatpush.bf16.msra.mxu0 %v1385
      %1522 = vmatmul.bf16.gmra.mxu0 %v535
      %v1523 = vpop.f32.mrf.mxu0
      %v1524 = vadd.f32 0.0, %v1523
      %v1525 = vpop.f32.mrf.mxu0
      %v1526 = vadd.f32 0.0, %v1525
      %1527 = vdwg.mxu0
      %1528 = vmatpush.bf16.msra.mxu0 %v1415
      %1529 = vmatpush.bf16.msra.mxu0 %v1413
      %1530 = vmatpush.bf16.msra.mxu0 %v1411
      %1531 = vmatpush.bf16.msra.mxu0 %v1409
      %1532 = vmatpush.bf16.msra.mxu0 %v1407
      %1533 = vmatpush.bf16.msra.mxu0 %v1405
      %1534 = vmatpush.bf16.msra.mxu0 %v1403
      %1535 = vmatpush.bf16.msra.mxu0 %v1401
      %1536 = vmatmul.bf16.gmra.mxu0 %v552
      %v1537 = vpop.f32.mrf.mxu0
      %v1538 = vadd.f32 %v1524, %v1537
      %v1539 = vpop.f32.mrf.mxu0
      %v1540 = vadd.f32 %v1526, %v1539
      %1541 = vdwg.mxu0
      %1542 = vmatpush.bf16.msra.mxu0 0
      %1543 = vmatpush.bf16.msra.mxu0 0
      %1544 = vmatpush.bf16.msra.mxu0 %v1427
      %1545 = vmatpush.bf16.msra.mxu0 %v1425
      %1546 = vmatpush.bf16.msra.mxu0 %v1423
      %1547 = vmatpush.bf16.msra.mxu0 %v1421
      %1548 = vmatpush.bf16.msra.mxu0 %v1419
      %1549 = vmatpush.bf16.msra.mxu0 %v1417
      %1550 = vmatmul.bf16.gmra.mxu0 %v794
      %v1551 = vpop.f32.mrf.mxu0
      %v1552 = vadd.f32 %v1538, %v1551
      %v1553 = vpop.f32.mrf.mxu0
      %v1554 = vadd.f32 %v1540, %v1553
      %1555 = vdwg.mxu0
      %v1558 = vunpack.c.l.b16 %v404
      %v1559 = vunpack.c.h.b16 %v404
      %v1560 = vunpack.c.l.b16 %v405
      %v1561 = vpack.c.b16 %v506, %v1558
      %v1562 = vpack.c.b16 %v507, %v1559
      %v1563 = vpack.c.b16 %v508, %v1560
      %v1610 = vunpack.c.l.b16 %v406
      %v1611 = vunpack.c.h.b16 %v406
      %v1612 = vunpack.c.l.b16 %v407
      %v1613 = vunpack.c.h.b16 %v407
      %v1614 = vunpack.c.l.b16 %v408
      %v1615 = vunpack.c.h.b16 %v408
      %v1616 = vunpack.c.l.b16 %v409
      %v1617 = vunpack.c.h.b16 %v409
      %v1618 = vunpack.c.l.b16 %v410
      %v1619 = vunpack.c.h.b16 %v410
      %v1620 = vunpack.c.l.b16 %v411
      %v1621 = vunpack.c.h.b16 %v411
      %v1622 = vunpack.c.l.b16 %v412
      %v1623 = vunpack.c.h.b16 %v412
      %v1624 = vunpack.c.l.b16 %v413
      %v1625 = vunpack.c.h.b16 %v413
      %v1626 = vunpack.c.l.b16 %v414
      %v1627 = vunpack.c.h.b16 %v414
      %v1628 = vunpack.c.l.b16 %v415
      %v1629 = vunpack.c.h.b16 %v415
      %v1630 = vunpack.c.l.b16 %v416
      %v1631 = vunpack.c.h.b16 %v416
      %v1632 = vunpack.c.l.b16 %v417
      %v1633 = vunpack.c.h.b16 %v417
      %v1634 = vunpack.c.l.b16 %v418
      %v1635 = vunpack.c.h.b16 %v418
      %v1636 = vunpack.c.l.b16 %v419
      %v1637 = vunpack.c.h.b16 %v419
      %v1638 = vunpack.c.l.b16 %v420
      %v1639 = vunpack.c.h.b16 %v420
      %v1640 = vunpack.c.l.b16 %v421
      %v1641 = vunpack.c.h.b16 %v421
      %v1642 = vunpack.c.l.b16 %v422
      %v1643 = vunpack.c.h.b16 %v422
      %v1644 = vunpack.c.l.b16 %v423
      %v1645 = vunpack.c.h.b16 %v423
      %v1646 = vunpack.c.l.b16 %v424
      %v1647 = vunpack.c.h.b16 %v424
      %v1648 = vunpack.c.l.b16 %v425
      %v1649 = vunpack.c.h.b16 %v425
      %v1650 = vunpack.c.l.b16 %v426
      %v1651 = vunpack.c.h.b16 %v426
      %v1652 = vunpack.c.l.b16 %v427
      %v1653 = vunpack.c.h.b16 %v427
      %v1654 = vunpack.c.l.b16 %v428
      %v1655 = vunpack.c.h.b16 %v428
      %v1656 = vunpack.c.l.b16 %v429
      %v1657 = vunpack.c.h.b16 %v429
      %v1658 = vunpack.c.l.b16 %v430
      %v1659 = vunpack.c.h.b16 %v430
      %v1660 = vunpack.c.l.b16 %v431
      %v1661 = vunpack.c.h.b16 %v431
      %v1662 = vunpack.c.l.b16 %v432
      %v1663 = vunpack.c.h.b16 %v432
      %v1664 = vunpack.c.l.b16 %v433
      %v1665 = vunpack.c.h.b16 %v433
      %v1666 = vunpack.c.l.b16 %v434
      %v1667 = vunpack.c.h.b16 %v434
      %v1668 = vunpack.c.l.b16 %v435
      %v1669 = vunpack.c.h.b16 %v435
      %v1670 = vunpack.c.l.b16 %v436
      %v1671 = vunpack.c.h.b16 %v436
      %v1672 = vunpack.c.l.b16 %v437
      %v1673 = vunpack.c.h.b16 %v437
      %v1674 = vunpack.c.l.b16 %v438
      %v1675 = vunpack.c.h.b16 %v438
      %v1676 = vunpack.c.l.b16 %v439
      %v1677 = vunpack.c.h.b16 %v439
      %v1678 = vunpack.c.l.b16 %v440
      %v1679 = vunpack.c.h.b16 %v440
      %v1680 = vunpack.c.l.b16 %v441
      %v1681 = vunpack.c.h.b16 %v441
      %v1682 = vunpack.c.l.b16 %v442
      %v1683 = vunpack.c.h.b16 %v442
      %v1684 = vunpack.c.l.b16 %v443
      %v1685 = vunpack.c.h.b16 %v443
      %v1686 = vunpack.c.l.b16 %v444
      %v1687 = vunpack.c.h.b16 %v444
      %v1688 = vunpack.c.l.b16 %v445
      %v1689 = vunpack.c.h.b16 %v445
      %v1690 = vunpack.c.l.b16 %v446
      %v1691 = vunpack.c.h.b16 %v446
      %v1692 = vunpack.c.l.b16 %v447
      %v1693 = vunpack.c.h.b16 %v447
      %v1694 = vunpack.c.l.b16 %v448
      %v1695 = vunpack.c.h.b16 %v448
      %v1696 = vunpack.c.l.b16 %v449
      %v1697 = vunpack.c.h.b16 %v449
      %v1698 = vpack.c.b16 %v1612, %v1610
      %v1699 = vpack.c.b16 %v1613, %v1611
      %v1700 = vpack.c.b16 %v1616, %v1614
      %v1701 = vpack.c.b16 %v1617, %v1615
      %v1702 = vpack.c.b16 %v1620, %v1618
      %v1703 = vpack.c.b16 %v1621, %v1619
      %v1704 = vpack.c.b16 %v1624, %v1622
      %v1705 = vpack.c.b16 %v1625, %v1623
      %v1706 = vpack.c.b16 %v1628, %v1626
      %v1707 = vpack.c.b16 %v1629, %v1627
      %v1708 = vpack.c.b16 %v1632, %v1630
      %v1709 = vpack.c.b16 %v1633, %v1631
      %v1710 = vpack.c.b16 %v1636, %v1634
      %v1711 = vpack.c.b16 %v1637, %v1635
      %v1712 = vpack.c.b16 %v1640, %v1638
      %v1713 = vpack.c.b16 %v1641, %v1639
      %v1714 = vpack.c.b16 %v1644, %v1642
      %v1715 = vpack.c.b16 %v1645, %v1643
      %v1716 = vpack.c.b16 %v1648, %v1646
      %v1717 = vpack.c.b16 %v1649, %v1647
      %v1718 = vpack.c.b16 %v1652, %v1650
      %v1719 = vpack.c.b16 %v1653, %v1651
      %v1720 = vpack.c.b16 %v1656, %v1654
      %v1721 = vpack.c.b16 %v1657, %v1655
      %v1722 = vpack.c.b16 %v1660, %v1658
      %v1723 = vpack.c.b16 %v1661, %v1659
      %v1724 = vpack.c.b16 %v1664, %v1662
      %v1725 = vpack.c.b16 %v1665, %v1663
      %v1726 = vpack.c.b16 %v1668, %v1666
      %v1727 = vpack.c.b16 %v1669, %v1667
      %v1728 = vpack.c.b16 %v1672, %v1670
      %v1729 = vpack.c.b16 %v1673, %v1671
      %v1730 = vpack.c.b16 %v1676, %v1674
      %v1731 = vpack.c.b16 %v1677, %v1675
      %v1732 = vpack.c.b16 %v1680, %v1678
      %v1733 = vpack.c.b16 %v1681, %v1679
      %v1734 = vpack.c.b16 %v1684, %v1682
      %v1735 = vpack.c.b16 %v1685, %v1683
      %v1736 = vpack.c.b16 %v1688, %v1686
      %v1737 = vpack.c.b16 %v1689, %v1687
      %v1738 = vpack.c.b16 %v1692, %v1690
      %v1739 = vpack.c.b16 %v1693, %v1691
      %v1740 = vpack.c.b16 %v1696, %v1694
      %v1741 = vpack.c.b16 %v1697, %v1695
      %v1787 = vsel %vm792, %v1563, 0
      %1789 = vmatpush.bf16.msra.mxu0 %v1712
      %1790 = vmatpush.bf16.msra.mxu0 %v1710
      %1791 = vmatpush.bf16.msra.mxu0 %v1708
      %1792 = vmatpush.bf16.msra.mxu0 %v1706
      %1793 = vmatpush.bf16.msra.mxu0 %v1704
      %1794 = vmatpush.bf16.msra.mxu0 %v1702
      %1795 = vmatpush.bf16.msra.mxu0 %v1700
      %1796 = vmatpush.bf16.msra.mxu0 %v1698
      %1797 = vmatmul.bf16.gmra.mxu0 %v1561
      %v1798 = vpop.f32.mrf.mxu0
      %v1799 = vadd.f32 %v1510, %v1798
      %v1800 = vpop.f32.mrf.mxu0
      %v1801 = vadd.f32 %v1512, %v1800
      %1802 = vdwg.mxu0
      %1803 = vmatpush.bf16.msra.mxu0 %v1728
      %1804 = vmatpush.bf16.msra.mxu0 %v1726
      %1805 = vmatpush.bf16.msra.mxu0 %v1724
      %1806 = vmatpush.bf16.msra.mxu0 %v1722
      %1807 = vmatpush.bf16.msra.mxu0 %v1720
      %1808 = vmatpush.bf16.msra.mxu0 %v1718
      %1809 = vmatpush.bf16.msra.mxu0 %v1716
      %1810 = vmatpush.bf16.msra.mxu0 %v1714
      %1811 = vmatmul.bf16.gmra.mxu0 %v1562
      %v1812 = vpop.f32.mrf.mxu0
      %v1813 = vadd.f32 %v1799, %v1812
      %v1814 = vpop.f32.mrf.mxu0
      %v1815 = vadd.f32 %v1801, %v1814
      %1816 = vdwg.mxu0
      %1817 = vmatpush.bf16.msra.mxu0 0
      %1818 = vmatpush.bf16.msra.mxu0 0
      %1819 = vmatpush.bf16.msra.mxu0 %v1740
      %1820 = vmatpush.bf16.msra.mxu0 %v1738
      %1821 = vmatpush.bf16.msra.mxu0 %v1736
      %1822 = vmatpush.bf16.msra.mxu0 %v1734
      %1823 = vmatpush.bf16.msra.mxu0 %v1732
      %1824 = vmatpush.bf16.msra.mxu0 %v1730
      %1825 = vmatmul.bf16.gmra.mxu0 %v1787
      %v1826 = vpop.f32.mrf.mxu0
      %v1827 = vadd.f32 %v1813, %v1826
      %v1828 = vpop.f32.mrf.mxu0
      %v1829 = vadd.f32 %v1815, %v1828
      %1830 = vdwg.mxu0
      %1831 = vmatpush.bf16.msra.mxu0 %v1713
      %1832 = vmatpush.bf16.msra.mxu0 %v1711
      %1833 = vmatpush.bf16.msra.mxu0 %v1709
      %1834 = vmatpush.bf16.msra.mxu0 %v1707
      %1835 = vmatpush.bf16.msra.mxu0 %v1705
      %1836 = vmatpush.bf16.msra.mxu0 %v1703
      %1837 = vmatpush.bf16.msra.mxu0 %v1701
      %1838 = vmatpush.bf16.msra.mxu0 %v1699
      %1839 = vmatmul.bf16.gmra.mxu0 %v1561
      %v1840 = vpop.f32.mrf.mxu0
      %v1841 = vadd.f32 %v1552, %v1840
      %v1842 = vpop.f32.mrf.mxu0
      %v1843 = vadd.f32 %v1554, %v1842
      %1844 = vdwg.mxu0
      %1845 = vmatpush.bf16.msra.mxu0 %v1729
      %1846 = vmatpush.bf16.msra.mxu0 %v1727
      %1847 = vmatpush.bf16.msra.mxu0 %v1725
      %1848 = vmatpush.bf16.msra.mxu0 %v1723
      %1849 = vmatpush.bf16.msra.mxu0 %v1721
      %1850 = vmatpush.bf16.msra.mxu0 %v1719
      %1851 = vmatpush.bf16.msra.mxu0 %v1717
      %1852 = vmatpush.bf16.msra.mxu0 %v1715
      %1853 = vmatmul.bf16.gmra.mxu0 %v1562
      %v1854 = vpop.f32.mrf.mxu0
      %v1855 = vadd.f32 %v1841, %v1854
      %v1856 = vpop.f32.mrf.mxu0
      %v1857 = vadd.f32 %v1843, %v1856
      %1858 = vdwg.mxu0
      %1859 = vmatpush.bf16.msra.mxu0 0
      %1860 = vmatpush.bf16.msra.mxu0 0
      %1861 = vmatpush.bf16.msra.mxu0 %v1741
      %1862 = vmatpush.bf16.msra.mxu0 %v1739
      %1863 = vmatpush.bf16.msra.mxu0 %v1737
      %1864 = vmatpush.bf16.msra.mxu0 %v1735
      %1865 = vmatpush.bf16.msra.mxu0 %v1733
      %1866 = vmatpush.bf16.msra.mxu0 %v1731
      %1867 = vmatmul.bf16.gmra.mxu0 %v1787
      %v1868 = vpop.f32.mrf.mxu0
      %v1869 = vadd.f32 %v1855, %v1868
      %v1870 = vpop.f32.mrf.mxu0
      %v1871 = vadd.f32 %v1857, %v1870
      %1872 = vdwg.mxu0
      %v1873 = vld [vmem:[%s342] sm:$0xcc]
      %v1874 = vld [vmem:[%s342 + $0x8] sm:$0xc]
      %s1875 = scalar_lea.vmem %s2, 704
      %v1876 = vld [vmem:[%s1875] sm:$0xff]
      %v1877 = vld [vmem:[%s1875 + $0x8] sm:$0xff]
      %v1878 = vld [vmem:[%s1875 + $0x10] sm:$0xff]
      %v1879 = vld [vmem:[%s1875 + $0x18] sm:$0xff]
      %v1880 = vld [vmem:[%s1875 + $0x20] sm:$0xff]
      %v1881 = vld [vmem:[%s1875 + $0x28] sm:$0xff]
      %v1882 = vld [vmem:[%s1875 + $0x30] sm:$0xff]
      %v1883 = vld [vmem:[%s1875 + $0x38] sm:$0xff]
      %v1884 = vld [vmem:[%s1875 + $0x40] sm:$0xff]
      %v1885 = vld [vmem:[%s1875 + $0x48] sm:$0xff]
      %v1886 = vld [vmem:[%s1875 + $0x50] sm:$0xff]
      %v1887 = vld [vmem:[%s1875 + $0x58] sm:$0xff]
      %v1888 = vld [vmem:[%s1875 + $0x60] sm:$0xff]
      %v1889 = vld [vmem:[%s1875 + $0x68] sm:$0xff]
      %v1890 = vld [vmem:[%s1875 + $0x70] sm:$0xff]
      %v1891 = vld [vmem:[%s1875 + $0x78] sm:$0xff]
      %v1892 = vld [vmem:[%s1875 + $0x80] sm:$0xff]
      %v1893 = vld [vmem:[%s1875 + $0x88] sm:$0xff]
      %v1894 = vld [vmem:[%s1875 + $0x90] sm:$0xff]
      %v1895 = vld [vmem:[%s1875 + $0x98] sm:$0xff]
      %v1896 = vld [vmem:[%s1875 + $0xa0] sm:$0xff]
      %v1897 = vld [vmem:[%s1875 + $0xa8] sm:$0xff]
      %v1898 = vld [vmem:[%s1875 + $0xb0] sm:$0xff]
      %v1899 = vld [vmem:[%s1875 + $0xb8] sm:$0xff]
      %v1900 = vld [vmem:[%s1875 + $0xc0] sm:$0xff]
      %v1901 = vld [vmem:[%s1875 + $0xc8] sm:$0xff]
      %v1902 = vld [vmem:[%s1875 + $0xd0] sm:$0xff]
      %v1903 = vld [vmem:[%s1875 + $0xd8] sm:$0xff]
      %v1904 = vld [vmem:[%s1875 + $0xe0] sm:$0xff]
      %v1905 = vld [vmem:[%s1875 + $0xe8] sm:$0xff]
      %v1906 = vld [vmem:[%s1875 + $0xf0] sm:$0xff]
      %v1907 = vld [vmem:[%s1875 + $0xf8] sm:$0xff]
      %v1908 = vld [vmem:[%s1875 + $0x100] sm:$0xff]
      %v1909 = vld [vmem:[%s1875 + $0x108] sm:$0xff]
      %v1910 = vld [vmem:[%s1875 + $0x110] sm:$0xff]
      %v1911 = vld [vmem:[%s1875 + $0x118] sm:$0xff]
      %v1912 = vld [vmem:[%s1875 + $0x120] sm:$0xff]
      %v1913 = vld [vmem:[%s1875 + $0x128] sm:$0xff]
      %v1914 = vld [vmem:[%s1875 + $0x130] sm:$0xff]
      %v1915 = vld [vmem:[%s1875 + $0x138] sm:$0xff]
      %v1916 = vld [vmem:[%s1875 + $0x140] sm:$0xff]
      %v1917 = vld [vmem:[%s1875 + $0x148] sm:$0xff]
      %v1918 = vld [vmem:[%s1875 + $0x150] sm:$0xff]
      %v1919 = vld [vmem:[%s1875 + $0x158] sm:$0xff]
      %v1922 = vunpack.c.l.b16 %v1873
      %v1923 = vunpack.c.h.b16 %v1873
      %v1924 = vunpack.c.l.b16 %v1874
      %v1925 = vpack.c.b16 %v506, %v1922
      %v1926 = vpack.c.b16 %v507, %v1923
      %v1927 = vpack.c.b16 %v508, %v1924
      %vm1928 = vcmask 1045504
      %v1929 = vrot.slane %v1925, 2
      %v1930 = vrot.slane %v515, 2
      %v1931 = vsel %vm1928, %v1929, %v1930
      %v1932 = vrot.slane %v1926, 2
      %v1933 = vrot.slane %v516, 2
      %v1934 = vsel %vm1928, %v1932, %v1933
      %v1935 = vrot.slane %v1927, 2
      %v1936 = vrot.slane %v517, 2
      %v1937 = vsel %vm1928, %v1935, %v1936
      %v1984 = vunpack.c.l.b16 %v1876
      %v1985 = vunpack.c.h.b16 %v1876
      %v1986 = vunpack.c.l.b16 %v1877
      %v1987 = vunpack.c.h.b16 %v1877
      %v1988 = vunpack.c.l.b16 %v1878
      %v1989 = vunpack.c.h.b16 %v1878
      %v1990 = vunpack.c.l.b16 %v1879
      %v1991 = vunpack.c.h.b16 %v1879
      %v1992 = vunpack.c.l.b16 %v1880
      %v1993 = vunpack.c.h.b16 %v1880
      %v1994 = vunpack.c.l.b16 %v1881
      %v1995 = vunpack.c.h.b16 %v1881
      %v1996 = vunpack.c.l.b16 %v1882
      %v1997 = vunpack.c.h.b16 %v1882
      %v1998 = vunpack.c.l.b16 %v1883
      %v1999 = vunpack.c.h.b16 %v1883
      %v2000 = vunpack.c.l.b16 %v1884
      %v2001 = vunpack.c.h.b16 %v1884
      %v2002 = vunpack.c.l.b16 %v1885
      %v2003 = vunpack.c.h.b16 %v1885
      %v2004 = vunpack.c.l.b16 %v1886
      %v2005 = vunpack.c.h.b16 %v1886
      %v2006 = vunpack.c.l.b16 %v1887
      %v2007 = vunpack.c.h.b16 %v1887
      %v2008 = vunpack.c.l.b16 %v1888
      %v2009 = vunpack.c.h.b16 %v1888
      %v2010 = vunpack.c.l.b16 %v1889
      %v2011 = vunpack.c.h.b16 %v1889
      %v2012 = vunpack.c.l.b16 %v1890
      %v2013 = vunpack.c.h.b16 %v1890
      %v2014 = vunpack.c.l.b16 %v1891
      %v2015 = vunpack.c.h.b16 %v1891
      %v2016 = vunpack.c.l.b16 %v1892
      %v2017 = vunpack.c.h.b16 %v1892
      %v2018 = vunpack.c.l.b16 %v1893
      %v2019 = vunpack.c.h.b16 %v1893
      %v2020 = vunpack.c.l.b16 %v1894
      %v2021 = vunpack.c.h.b16 %v1894
      %v2022 = vunpack.c.l.b16 %v1895
      %v2023 = vunpack.c.h.b16 %v1895
      %v2024 = vunpack.c.l.b16 %v1896
      %v2025 = vunpack.c.h.b16 %v1896
      %v2026 = vunpack.c.l.b16 %v1897
      %v2027 = vunpack.c.h.b16 %v1897
      %v2028 = vunpack.c.l.b16 %v1898
      %v2029 = vunpack.c.h.b16 %v1898
      %v2030 = vunpack.c.l.b16 %v1899
      %v2031 = vunpack.c.h.b16 %v1899
      %v2032 = vunpack.c.l.b16 %v1900
      %v2033 = vunpack.c.h.b16 %v1900
      %v2034 = vunpack.c.l.b16 %v1901
      %v2035 = vunpack.c.h.b16 %v1901
      %v2036 = vunpack.c.l.b16 %v1902
      %v2037 = vunpack.c.h.b16 %v1902
      %v2038 = vunpack.c.l.b16 %v1903
      %v2039 = vunpack.c.h.b16 %v1903
      %v2040 = vunpack.c.l.b16 %v1904
      %v2041 = vunpack.c.h.b16 %v1904
      %v2042 = vunpack.c.l.b16 %v1905
      %v2043 = vunpack.c.h.b16 %v1905
      %v2044 = vunpack.c.l.b16 %v1906
      %v2045 = vunpack.c.h.b16 %v1906
      %v2046 = vunpack.c.l.b16 %v1907
      %v2047 = vunpack.c.h.b16 %v1907
      %v2048 = vunpack.c.l.b16 %v1908
      %v2049 = vunpack.c.h.b16 %v1908
      %v2050 = vunpack.c.l.b16 %v1909
      %v2051 = vunpack.c.h.b16 %v1909
      %v2052 = vunpack.c.l.b16 %v1910
      %v2053 = vunpack.c.h.b16 %v1910
      %v2054 = vunpack.c.l.b16 %v1911
      %v2055 = vunpack.c.h.b16 %v1911
      %v2056 = vunpack.c.l.b16 %v1912
      %v2057 = vunpack.c.h.b16 %v1912
      %v2058 = vunpack.c.l.b16 %v1913
      %v2059 = vunpack.c.h.b16 %v1913
      %v2060 = vunpack.c.l.b16 %v1914
      %v2061 = vunpack.c.h.b16 %v1914
      %v2062 = vunpack.c.l.b16 %v1915
      %v2063 = vunpack.c.h.b16 %v1915
      %v2064 = vunpack.c.l.b16 %v1916
      %v2065 = vunpack.c.h.b16 %v1916
      %v2066 = vunpack.c.l.b16 %v1917
      %v2067 = vunpack.c.h.b16 %v1917
      %v2068 = vunpack.c.l.b16 %v1918
      %v2069 = vunpack.c.h.b16 %v1918
      %v2070 = vunpack.c.l.b16 %v1919
      %v2071 = vunpack.c.h.b16 %v1919
      %v2072 = vpack.c.b16 %v1986, %v1984
      %v2073 = vpack.c.b16 %v1987, %v1985
      %v2074 = vpack.c.b16 %v1990, %v1988
      %v2075 = vpack.c.b16 %v1991, %v1989
      %v2076 = vpack.c.b16 %v1994, %v1992
      %v2077 = vpack.c.b16 %v1995, %v1993
      %v2078 = vpack.c.b16 %v1998, %v1996
      %v2079 = vpack.c.b16 %v1999, %v1997
      %v2080 = vpack.c.b16 %v2002, %v2000
      %v2081 = vpack.c.b16 %v2003, %v2001
      %v2082 = vpack.c.b16 %v2006, %v2004
      %v2083 = vpack.c.b16 %v2007, %v2005
      %v2084 = vpack.c.b16 %v2010, %v2008
      %v2085 = vpack.c.b16 %v2011, %v2009
      %v2086 = vpack.c.b16 %v2014, %v2012
      %v2087 = vpack.c.b16 %v2015, %v2013
      %v2088 = vpack.c.b16 %v2018, %v2016
      %v2089 = vpack.c.b16 %v2019, %v2017
      %v2090 = vpack.c.b16 %v2022, %v2020
      %v2091 = vpack.c.b16 %v2023, %v2021
      %v2092 = vpack.c.b16 %v2026, %v2024
      %v2093 = vpack.c.b16 %v2027, %v2025
      %v2094 = vpack.c.b16 %v2030, %v2028
      %v2095 = vpack.c.b16 %v2031, %v2029
      %v2096 = vpack.c.b16 %v2034, %v2032
      %v2097 = vpack.c.b16 %v2035, %v2033
      %v2098 = vpack.c.b16 %v2038, %v2036
      %v2099 = vpack.c.b16 %v2039, %v2037
      %v2100 = vpack.c.b16 %v2042, %v2040
      %v2101 = vpack.c.b16 %v2043, %v2041
      %v2102 = vpack.c.b16 %v2046, %v2044
      %v2103 = vpack.c.b16 %v2047, %v2045
      %v2104 = vpack.c.b16 %v2050, %v2048
      %v2105 = vpack.c.b16 %v2051, %v2049
      %v2106 = vpack.c.b16 %v2054, %v2052
      %v2107 = vpack.c.b16 %v2055, %v2053
      %v2108 = vpack.c.b16 %v2058, %v2056
      %v2109 = vpack.c.b16 %v2059, %v2057
      %v2110 = vpack.c.b16 %v2062, %v2060
      %v2111 = vpack.c.b16 %v2063, %v2061
      %v2112 = vpack.c.b16 %v2066, %v2064
      %v2113 = vpack.c.b16 %v2067, %v2065
      %v2114 = vpack.c.b16 %v2070, %v2068
      %v2115 = vpack.c.b16 %v2071, %v2069
      %v2161 = vsel %vm792, %v1937, 0
      %2163 = vmatpush.bf16.msra.mxu0 %v2086
      %2164 = vmatpush.bf16.msra.mxu0 %v2084
      %2165 = vmatpush.bf16.msra.mxu0 %v2082
      %2166 = vmatpush.bf16.msra.mxu0 %v2080
      %2167 = vmatpush.bf16.msra.mxu0 %v2078
      %2168 = vmatpush.bf16.msra.mxu0 %v2076
      %2169 = vmatpush.bf16.msra.mxu0 %v2074
      %2170 = vmatpush.bf16.msra.mxu0 %v2072
      %2171 = vmatmul.bf16.gmra.mxu0 %v1931
      %v2172 = vpop.f32.mrf.mxu0
      %v2173 = vadd.f32 0.0, %v2172
      %v2174 = vpop.f32.mrf.mxu0
      %v2175 = vadd.f32 0.0, %v2174
      %2176 = vdwg.mxu0
      %2177 = vmatpush.bf16.msra.mxu0 %v2102
      %2178 = vmatpush.bf16.msra.mxu0 %v2100
      %2179 = vmatpush.bf16.msra.mxu0 %v2098
      %2180 = vmatpush.bf16.msra.mxu0 %v2096
      %2181 = vmatpush.bf16.msra.mxu0 %v2094
      %2182 = vmatpush.bf16.msra.mxu0 %v2092
      %2183 = vmatpush.bf16.msra.mxu0 %v2090
      %2184 = vmatpush.bf16.msra.mxu0 %v2088
      %2185 = vmatmul.bf16.gmra.mxu0 %v1934
      %v2186 = vpop.f32.mrf.mxu0
      %v2187 = vadd.f32 %v2173, %v2186
      %v2188 = vpop.f32.mrf.mxu0
      %v2189 = vadd.f32 %v2175, %v2188
      %2190 = vdwg.mxu0
      %2191 = vmatpush.bf16.msra.mxu0 0
      %2192 = vmatpush.bf16.msra.mxu0 0
      %2193 = vmatpush.bf16.msra.mxu0 %v2114
      %2194 = vmatpush.bf16.msra.mxu0 %v2112
      %2195 = vmatpush.bf16.msra.mxu0 %v2110
      %2196 = vmatpush.bf16.msra.mxu0 %v2108
      %2197 = vmatpush.bf16.msra.mxu0 %v2106
      %2198 = vmatpush.bf16.msra.mxu0 %v2104
      %2199 = vmatmul.bf16.gmra.mxu0 %v2161
      %v2200 = vpop.f32.mrf.mxu0
      %v2201 = vadd.f32 %v2187, %v2200
      %v2202 = vpop.f32.mrf.mxu0
      %v2203 = vadd.f32 %v2189, %v2202
      %2204 = vdwg.mxu0
      %2205 = vmatpush.bf16.msra.mxu0 %v2087
      %2206 = vmatpush.bf16.msra.mxu0 %v2085
      %2207 = vmatpush.bf16.msra.mxu0 %v2083
      %2208 = vmatpush.bf16.msra.mxu0 %v2081
      %2209 = vmatpush.bf16.msra.mxu0 %v2079
      %2210 = vmatpush.bf16.msra.mxu0 %v2077
      %2211 = vmatpush.bf16.msra.mxu0 %v2075
      %2212 = vmatpush.bf16.msra.mxu0 %v2073
      %2213 = vmatmul.bf16.gmra.mxu0 %v1931
      %v2214 = vpop.f32.mrf.mxu0
      %v2215 = vadd.f32 0.0, %v2214
      %v2216 = vpop.f32.mrf.mxu0
      %v2217 = vadd.f32 0.0, %v2216
      %2218 = vdwg.mxu0
      %2219 = vmatpush.bf16.msra.mxu0 %v2103
      %2220 = vmatpush.bf16.msra.mxu0 %v2101
      %2221 = vmatpush.bf16.msra.mxu0 %v2099
      %2222 = vmatpush.bf16.msra.mxu0 %v2097
      %2223 = vmatpush.bf16.msra.mxu0 %v2095
      %2224 = vmatpush.bf16.msra.mxu0 %v2093
      %2225 = vmatpush.bf16.msra.mxu0 %v2091
      %2226 = vmatpush.bf16.msra.mxu0 %v2089
      %2227 = vmatmul.bf16.gmra.mxu0 %v1934
      %v2228 = vpop.f32.mrf.mxu0
      %v2229 = vadd.f32 %v2215, %v2228
      %v2230 = vpop.f32.mrf.mxu0
      %v2231 = vadd.f32 %v2217, %v2230
      %2232 = vdwg.mxu0
      %2233 = vmatpush.bf16.msra.mxu0 0
      %2234 = vmatpush.bf16.msra.mxu0 0
      %2235 = vmatpush.bf16.msra.mxu0 %v2115
      %2236 = vmatpush.bf16.msra.mxu0 %v2113
      %2237 = vmatpush.bf16.msra.mxu0 %v2111
      %2238 = vmatpush.bf16.msra.mxu0 %v2109
      %2239 = vmatpush.bf16.msra.mxu0 %v2107
      %2240 = vmatpush.bf16.msra.mxu0 %v2105
      %2241 = vmatmul.bf16.gmra.mxu0 %v2161
      %v2242 = vpop.f32.mrf.mxu0
      %v2243 = vadd.f32 %v2229, %v2242
      %v2244 = vpop.f32.mrf.mxu0
      %v2245 = vadd.f32 %v2231, %v2244
      %2246 = vdwg.mxu0
      %v2247 = vadd.f32 %v1161, %v2201
      %v2248 = vadd.f32 %v1203, %v2243
      %v2249 = vadd.f32 %v1163, %v2203
      %v2250 = vadd.f32 %v1205, %v2245
      %v2251 = vld [vmem:[%s342] sm:$0x88]
      %v2252 = vld [vmem:[%s342 + $0x8] sm:$0x8]
      %v2253 = vld [vmem:[%s342 + $0x18] sm:$0x77]
      %v2254 = vld [vmem:[%s342 + $0x20] sm:$0x7]
      %s2255 = scalar_lea.vmem %s3, 704
      %v2256 = vld [vmem:[%s2255] sm:$0xff]
      %v2257 = vld [vmem:[%s2255 + $0x8] sm:$0xff]
      %v2258 = vld [vmem:[%s2255 + $0x10] sm:$0xff]
      %v2259 = vld [vmem:[%s2255 + $0x18] sm:$0xff]
      %v2260 = vld [vmem:[%s2255 + $0x20] sm:$0xff]
      %v2261 = vld [vmem:[%s2255 + $0x28] sm:$0xff]
      %v2262 = vld [vmem:[%s2255 + $0x30] sm:$0xff]
      %v2263 = vld [vmem:[%s2255 + $0x38] sm:$0xff]
      %v2264 = vld [vmem:[%s2255 + $0x40] sm:$0xff]
      %v2265 = vld [vmem:[%s2255 + $0x48] sm:$0xff]
      %v2266 = vld [vmem:[%s2255 + $0x50] sm:$0xff]
      %v2267 = vld [vmem:[%s2255 + $0x58] sm:$0xff]
      %v2268 = vld [vmem:[%s2255 + $0x60] sm:$0xff]
      %v2269 = vld [vmem:[%s2255 + $0x68] sm:$0xff]
      %v2270 = vld [vmem:[%s2255 + $0x70] sm:$0xff]
      %v2271 = vld [vmem:[%s2255 + $0x78] sm:$0xff]
      %v2272 = vld [vmem:[%s2255 + $0x80] sm:$0xff]
      %v2273 = vld [vmem:[%s2255 + $0x88] sm:$0xff]
      %v2274 = vld [vmem:[%s2255 + $0x90] sm:$0xff]
      %v2275 = vld [vmem:[%s2255 + $0x98] sm:$0xff]
      %v2276 = vld [vmem:[%s2255 + $0xa0] sm:$0xff]
      %v2277 = vld [vmem:[%s2255 + $0xa8] sm:$0xff]
      %v2278 = vld [vmem:[%s2255 + $0xb0] sm:$0xff]
      %v2279 = vld [vmem:[%s2255 + $0xb8] sm:$0xff]
      %v2280 = vld [vmem:[%s2255 + $0xc0] sm:$0xff]
      %v2281 = vld [vmem:[%s2255 + $0xc8] sm:$0xff]
      %v2282 = vld [vmem:[%s2255 + $0xd0] sm:$0xff]
      %v2283 = vld [vmem:[%s2255 + $0xd8] sm:$0xff]
      %v2284 = vld [vmem:[%s2255 + $0xe0] sm:$0xff]
      %v2285 = vld [vmem:[%s2255 + $0xe8] sm:$0xff]
      %v2286 = vld [vmem:[%s2255 + $0xf0] sm:$0xff]
      %v2287 = vld [vmem:[%s2255 + $0xf8] sm:$0xff]
      %v2288 = vld [vmem:[%s2255 + $0x100] sm:$0xff]
      %v2289 = vld [vmem:[%s2255 + $0x108] sm:$0xff]
      %v2290 = vld [vmem:[%s2255 + $0x110] sm:$0xff]
      %v2291 = vld [vmem:[%s2255 + $0x118] sm:$0xff]
      %v2292 = vld [vmem:[%s2255 + $0x120] sm:$0xff]
      %v2293 = vld [vmem:[%s2255 + $0x128] sm:$0xff]
      %v2294 = vld [vmem:[%s2255 + $0x130] sm:$0xff]
      %v2295 = vld [vmem:[%s2255 + $0x138] sm:$0xff]
      %v2296 = vld [vmem:[%s2255 + $0x140] sm:$0xff]
      %v2297 = vld [vmem:[%s2255 + $0x148] sm:$0xff]
      %v2298 = vld [vmem:[%s2255 + $0x150] sm:$0xff]
      %v2299 = vld [vmem:[%s2255 + $0x158] sm:$0xff]
      %v2304 = vunpack.c.l.b16 %v2251
      %v2305 = vunpack.c.h.b16 %v2251
      %v2306 = vunpack.c.l.b16 %v2252
      %v2307 = vunpack.c.l.b16 %v2253
      %v2308 = vunpack.c.h.b16 %v2253
      %v2309 = vunpack.c.l.b16 %v2254
      %v2310 = vpack.c.b16 %v506, %v2304
      %v2311 = vpack.c.b16 %v507, %v2305
      %v2312 = vpack.c.b16 %v508, %v2306
      %v2313 = vpack.c.b16 %v2307, %v2307
      %v2314 = vpack.c.b16 %v2308, %v2308
      %v2315 = vpack.c.b16 %v2309, %v2309
      %vm2316 = vcmask 1044480
      %v2317 = vrot.slane %v2310, 3
      %v2318 = vrot.slane %v2313, 3
      %v2319 = vsel %vm2316, %v2317, %v2318
      %v2320 = vrot.slane %v2311, 3
      %v2321 = vrot.slane %v2314, 3
      %v2322 = vsel %vm2316, %v2320, %v2321
      %v2323 = vrot.slane %v2312, 3
      %v2324 = vrot.slane %v2315, 3
      %v2325 = vsel %vm2316, %v2323, %v2324
      %v2372 = vunpack.c.l.b16 %v2256
      %v2373 = vunpack.c.h.b16 %v2256
      %v2374 = vunpack.c.l.b16 %v2257
      %v2375 = vunpack.c.h.b16 %v2257
      %v2376 = vunpack.c.l.b16 %v2258
      %v2377 = vunpack.c.h.b16 %v2258
      %v2378 = vunpack.c.l.b16 %v2259
      %v2379 = vunpack.c.h.b16 %v2259
      %v2380 = vunpack.c.l.b16 %v2260
      %v2381 = vunpack.c.h.b16 %v2260
      %v2382 = vunpack.c.l.b16 %v2261
      %v2383 = vunpack.c.h.b16 %v2261
      %v2384 = vunpack.c.l.b16 %v2262
      %v2385 = vunpack.c.h.b16 %v2262
      %v2386 = vunpack.c.l.b16 %v2263
      %v2387 = vunpack.c.h.b16 %v2263
      %v2388 = vunpack.c.l.b16 %v2264
      %v2389 = vunpack.c.h.b16 %v2264
      %v2390 = vunpack.c.l.b16 %v2265
      %v2391 = vunpack.c.h.b16 %v2265
      %v2392 = vunpack.c.l.b16 %v2266
      %v2393 = vunpack.c.h.b16 %v2266
      %v2394 = vunpack.c.l.b16 %v2267
      %v2395 = vunpack.c.h.b16 %v2267
      %v2396 = vunpack.c.l.b16 %v2268
      %v2397 = vunpack.c.h.b16 %v2268
      %v2398 = vunpack.c.l.b16 %v2269
      %v2399 = vunpack.c.h.b16 %v2269
      %v2400 = vunpack.c.l.b16 %v2270
      %v2401 = vunpack.c.h.b16 %v2270
      %v2402 = vunpack.c.l.b16 %v2271
      %v2403 = vunpack.c.h.b16 %v2271
      %v2404 = vunpack.c.l.b16 %v2272
      %v2405 = vunpack.c.h.b16 %v2272
      %v2406 = vunpack.c.l.b16 %v2273
      %v2407 = vunpack.c.h.b16 %v2273
      %v2408 = vunpack.c.l.b16 %v2274
      %v2409 = vunpack.c.h.b16 %v2274
      %v2410 = vunpack.c.l.b16 %v2275
      %v2411 = vunpack.c.h.b16 %v2275
      %v2412 = vunpack.c.l.b16 %v2276
      %v2413 = vunpack.c.h.b16 %v2276
      %v2414 = vunpack.c.l.b16 %v2277
      %v2415 = vunpack.c.h.b16 %v2277
      %v2416 = vunpack.c.l.b16 %v2278
      %v2417 = vunpack.c.h.b16 %v2278
      %v2418 = vunpack.c.l.b16 %v2279
      %v2419 = vunpack.c.h.b16 %v2279
      %v2420 = vunpack.c.l.b16 %v2280
      %v2421 = vunpack.c.h.b16 %v2280
      %v2422 = vunpack.c.l.b16 %v2281
      %v2423 = vunpack.c.h.b16 %v2281
      %v2424 = vunpack.c.l.b16 %v2282
      %v2425 = vunpack.c.h.b16 %v2282
      %v2426 = vunpack.c.l.b16 %v2283
      %v2427 = vunpack.c.h.b16 %v2283
      %v2428 = vunpack.c.l.b16 %v2284
      %v2429 = vunpack.c.h.b16 %v2284
      %v2430 = vunpack.c.l.b16 %v2285
      %v2431 = vunpack.c.h.b16 %v2285
      %v2432 = vunpack.c.l.b16 %v2286
      %v2433 = vunpack.c.h.b16 %v2286
      %v2434 = vunpack.c.l.b16 %v2287
      %v2435 = vunpack.c.h.b16 %v2287
      %v2436 = vunpack.c.l.b16 %v2288
      %v2437 = vunpack.c.h.b16 %v2288
      %v2438 = vunpack.c.l.b16 %v2289
      %v2439 = vunpack.c.h.b16 %v2289
      %v2440 = vunpack.c.l.b16 %v2290
      %v2441 = vunpack.c.h.b16 %v2290
      %v2442 = vunpack.c.l.b16 %v2291
      %v2443 = vunpack.c.h.b16 %v2291
      %v2444 = vunpack.c.l.b16 %v2292
      %v2445 = vunpack.c.h.b16 %v2292
      %v2446 = vunpack.c.l.b16 %v2293
      %v2447 = vunpack.c.h.b16 %v2293
      %v2448 = vunpack.c.l.b16 %v2294
      %v2449 = vunpack.c.h.b16 %v2294
      %v2450 = vunpack.c.l.b16 %v2295
      %v2451 = vunpack.c.h.b16 %v2295
      %v2452 = vunpack.c.l.b16 %v2296
      %v2453 = vunpack.c.h.b16 %v2296
      %v2454 = vunpack.c.l.b16 %v2297
      %v2455 = vunpack.c.h.b16 %v2297
      %v2456 = vunpack.c.l.b16 %v2298
      %v2457 = vunpack.c.h.b16 %v2298
      %v2458 = vunpack.c.l.b16 %v2299
      %v2459 = vunpack.c.h.b16 %v2299
      %v2460 = vpack.c.b16 %v2374, %v2372
      %v2461 = vpack.c.b16 %v2375, %v2373
      %v2462 = vpack.c.b16 %v2378, %v2376
      %v2463 = vpack.c.b16 %v2379, %v2377
      %v2464 = vpack.c.b16 %v2382, %v2380
      %v2465 = vpack.c.b16 %v2383, %v2381
      %v2466 = vpack.c.b16 %v2386, %v2384
      %v2467 = vpack.c.b16 %v2387, %v2385
      %v2468 = vpack.c.b16 %v2390, %v2388
      %v2469 = vpack.c.b16 %v2391, %v2389
      %v2470 = vpack.c.b16 %v2394, %v2392
      %v2471 = vpack.c.b16 %v2395, %v2393
      %v2472 = vpack.c.b16 %v2398, %v2396
      %v2473 = vpack.c.b16 %v2399, %v2397
      %v2474 = vpack.c.b16 %v2402, %v2400
      %v2475 = vpack.c.b16 %v2403, %v2401
      %v2476 = vpack.c.b16 %v2406, %v2404
      %v2477 = vpack.c.b16 %v2407, %v2405
      %v2478 = vpack.c.b16 %v2410, %v2408
      %v2479 = vpack.c.b16 %v2411, %v2409
      %v2480 = vpack.c.b16 %v2414, %v2412
      %v2481 = vpack.c.b16 %v2415, %v2413
      %v2482 = vpack.c.b16 %v2418, %v2416
      %v2483 = vpack.c.b16 %v2419, %v2417
      %v2484 = vpack.c.b16 %v2422, %v2420
      %v2485 = vpack.c.b16 %v2423, %v2421
      %v2486 = vpack.c.b16 %v2426, %v2424
      %v2487 = vpack.c.b16 %v2427, %v2425
      %v2488 = vpack.c.b16 %v2430, %v2428
      %v2489 = vpack.c.b16 %v2431, %v2429
      %v2490 = vpack.c.b16 %v2434, %v2432
      %v2491 = vpack.c.b16 %v2435, %v2433
      %v2492 = vpack.c.b16 %v2438, %v2436
      %v2493 = vpack.c.b16 %v2439, %v2437
      %v2494 = vpack.c.b16 %v2442, %v2440
      %v2495 = vpack.c.b16 %v2443, %v2441
      %v2496 = vpack.c.b16 %v2446, %v2444
      %v2497 = vpack.c.b16 %v2447, %v2445
      %v2498 = vpack.c.b16 %v2450, %v2448
      %v2499 = vpack.c.b16 %v2451, %v2449
      %v2500 = vpack.c.b16 %v2454, %v2452
      %v2501 = vpack.c.b16 %v2455, %v2453
      %v2502 = vpack.c.b16 %v2458, %v2456
      %v2503 = vpack.c.b16 %v2459, %v2457
      %v2549 = vsel %vm792, %v2325, 0
      %2551 = vmatpush.bf16.msra.mxu0 %v2474
      %2552 = vmatpush.bf16.msra.mxu0 %v2472
      %2553 = vmatpush.bf16.msra.mxu0 %v2470
      %2554 = vmatpush.bf16.msra.mxu0 %v2468
      %2555 = vmatpush.bf16.msra.mxu0 %v2466
      %2556 = vmatpush.bf16.msra.mxu0 %v2464
      %2557 = vmatpush.bf16.msra.mxu0 %v2462
      %2558 = vmatpush.bf16.msra.mxu0 %v2460
      %2559 = vmatmul.bf16.gmra.mxu0 %v2319
      %v2560 = vpop.f32.mrf.mxu0
      %v2561 = vadd.f32 0.0, %v2560
      %v2562 = vpop.f32.mrf.mxu0
      %v2563 = vadd.f32 0.0, %v2562
      %2564 = vdwg.mxu0
      %2565 = vmatpush.bf16.msra.mxu0 %v2490
      %2566 = vmatpush.bf16.msra.mxu0 %v2488
      %2567 = vmatpush.bf16.msra.mxu0 %v2486
      %2568 = vmatpush.bf16.msra.mxu0 %v2484
      %2569 = vmatpush.bf16.msra.mxu0 %v2482
      %2570 = vmatpush.bf16.msra.mxu0 %v2480
      %2571 = vmatpush.bf16.msra.mxu0 %v2478
      %2572 = vmatpush.bf16.msra.mxu0 %v2476
      %2573 = vmatmul.bf16.gmra.mxu0 %v2322
      %v2574 = vpop.f32.mrf.mxu0
      %v2575 = vadd.f32 %v2561, %v2574
      %v2576 = vpop.f32.mrf.mxu0
      %v2577 = vadd.f32 %v2563, %v2576
      %2578 = vdwg.mxu0
      %2579 = vmatpush.bf16.msra.mxu0 0
      %2580 = vmatpush.bf16.msra.mxu0 0
      %2581 = vmatpush.bf16.msra.mxu0 %v2502
      %2582 = vmatpush.bf16.msra.mxu0 %v2500
      %2583 = vmatpush.bf16.msra.mxu0 %v2498
      %2584 = vmatpush.bf16.msra.mxu0 %v2496
      %2585 = vmatpush.bf16.msra.mxu0 %v2494
      %2586 = vmatpush.bf16.msra.mxu0 %v2492
      %2587 = vmatmul.bf16.gmra.mxu0 %v2549
      %v2588 = vpop.f32.mrf.mxu0
      %v2589 = vadd.f32 %v2575, %v2588
      %v2590 = vpop.f32.mrf.mxu0
      %v2591 = vadd.f32 %v2577, %v2590
      %2592 = vdwg.mxu0
      %2593 = vmatpush.bf16.msra.mxu0 %v2475
      %2594 = vmatpush.bf16.msra.mxu0 %v2473
      %2595 = vmatpush.bf16.msra.mxu0 %v2471
      %2596 = vmatpush.bf16.msra.mxu0 %v2469
      %2597 = vmatpush.bf16.msra.mxu0 %v2467
      %2598 = vmatpush.bf16.msra.mxu0 %v2465
      %2599 = vmatpush.bf16.msra.mxu0 %v2463
      %2600 = vmatpush.bf16.msra.mxu0 %v2461
      %2601 = vmatmul.bf16.gmra.mxu0 %v2319
      %v2602 = vpop.f32.mrf.mxu0
      %v2603 = vadd.f32 0.0, %v2602
      %v2604 = vpop.f32.mrf.mxu0
      %v2605 = vadd.f32 0.0, %v2604
      %2606 = vdwg.mxu0
      %2607 = vmatpush.bf16.msra.mxu0 %v2491
      %2608 = vmatpush.bf16.msra.mxu0 %v2489
      %2609 = vmatpush.bf16.msra.mxu0 %v2487
      %2610 = vmatpush.bf16.msra.mxu0 %v2485
      %2611 = vmatpush.bf16.msra.mxu0 %v2483
      %2612 = vmatpush.bf16.msra.mxu0 %v2481
      %2613 = vmatpush.bf16.msra.mxu0 %v2479
      %2614 = vmatpush.bf16.msra.mxu0 %v2477
      %2615 = vmatmul.bf16.gmra.mxu0 %v2322
      %v2616 = vpop.f32.mrf.mxu0
      %v2617 = vadd.f32 %v2603, %v2616
      %v2618 = vpop.f32.mrf.mxu0
      %v2619 = vadd.f32 %v2605, %v2618
      %2620 = vdwg.mxu0
      %2621 = vmatpush.bf16.msra.mxu0 0
      %2622 = vmatpush.bf16.msra.mxu0 0
      %2623 = vmatpush.bf16.msra.mxu0 %v2503
      %2624 = vmatpush.bf16.msra.mxu0 %v2501
      %2625 = vmatpush.bf16.msra.mxu0 %v2499
      %2626 = vmatpush.bf16.msra.mxu0 %v2497
      %2627 = vmatpush.bf16.msra.mxu0 %v2495
      %2628 = vmatpush.bf16.msra.mxu0 %v2493
      %2629 = vmatmul.bf16.gmra.mxu0 %v2549
      %v2630 = vpop.f32.mrf.mxu0
      %v2631 = vadd.f32 %v2617, %v2630
      %v2632 = vpop.f32.mrf.mxu0
      %v2633 = vadd.f32 %v2619, %v2632
      %2634 = vdwg.mxu0
      %v2635 = vadd.f32 %v1827, %v2589
      %v2636 = vadd.f32 %v1869, %v2631
      %v2637 = vadd.f32 %v1829, %v2591
      %v2638 = vadd.f32 %v1871, %v2633
      %v2639 = vld [vmem:[%s347] sm:$0xff]
      %v2640 = vld [vmem:[%s347 + $0x8] sm:$0xff]
      %v2641 = vunpack.c.l.bf16 %v2639
      %v2642 = vunpack.c.h.bf16 %v2639
      %v2643 = vunpack.c.l.bf16 %v2640
      %v2644 = vunpack.c.h.bf16 %v2640
      %v2645 = vmul.f32 %v2641, %v2247
      %v2646 = vmul.f32 %v2642, %v2248
      %v2647 = vmul.f32 %v2643, %v2249
      %v2648 = vmul.f32 %v2644, %v2250
      %v2649 = vsub.f32 1.0, %v2641
      %v2650 = vsub.f32 1.0, %v2642
      %v2651 = vsub.f32 1.0, %v2643
      %v2652 = vsub.f32 1.0, %v2644
      %v2653 = vmul.f32 %v2649, %v2635
      %v2654 = vmul.f32 %v2650, %v2636
      %v2655 = vmul.f32 %v2651, %v2637
      %v2656 = vmul.f32 %v2652, %v2638
      %v2657 = vadd.f32 %v2645, %v2653
      %v2658 = vadd.f32 %v2646, %v2654
      %v2659 = vadd.f32 %v2647, %v2655
      %v2660 = vadd.f32 %v2648, %v2656
      %v2661 = vld [vmem:[%s4] sm:$0xff]
      %v2662 = vld [vmem:[%s4 + $0x8] sm:$0xff]
      %v2663 = vld [vmem:[%s4 + $0x10] sm:$0xff]
      %v2664 = vld [vmem:[%s4 + $0x18] sm:$0xff]
      %v2665 = vld [vmem:[%s4 + $0x20] sm:$0xff]
      %v2666 = vld [vmem:[%s4 + $0x28] sm:$0xff]
      %v2667 = vld [vmem:[%s4 + $0x30] sm:$0xff]
      %v2668 = vld [vmem:[%s4 + $0x38] sm:$0xff]
      %v2669 = vld [vmem:[%s4 + $0x40] sm:$0xff]
      %v2670 = vld [vmem:[%s4 + $0x48] sm:$0xff]
      %v2671 = vld [vmem:[%s4 + $0x50] sm:$0xff]
      %v2672 = vld [vmem:[%s4 + $0x58] sm:$0xff]
      %v2673 = vld [vmem:[%s4 + $0x60] sm:$0xff]
      %v2674 = vld [vmem:[%s4 + $0x68] sm:$0xff]
      %v2675 = vld [vmem:[%s4 + $0x70] sm:$0xff]
      %v2676 = vld [vmem:[%s4 + $0x78] sm:$0xff]
      %v2677 = vld [vmem:[%s4 + $0x80] sm:$0xff]
      %v2678 = vld [vmem:[%s4 + $0x88] sm:$0xff]
      %v2679 = vld [vmem:[%s4 + $0x90] sm:$0xff]
      %v2680 = vld [vmem:[%s4 + $0x98] sm:$0xff]
      %v2681 = vld [vmem:[%s4 + $0xa0] sm:$0xff]
      %v2682 = vld [vmem:[%s4 + $0xa8] sm:$0xff]
      %v2683 = vld [vmem:[%s4 + $0xb0] sm:$0xff]
      %v2684 = vld [vmem:[%s4 + $0xb8] sm:$0xff]
      %v2685 = vld [vmem:[%s4 + $0xc0] sm:$0xff]
      %v2686 = vld [vmem:[%s4 + $0xc8] sm:$0xff]
      %v2687 = vld [vmem:[%s4 + $0xd0] sm:$0xff]
      %v2688 = vld [vmem:[%s4 + $0xd8] sm:$0xff]
      %v2689 = vld [vmem:[%s4 + $0xe0] sm:$0xff]
      %v2690 = vld [vmem:[%s4 + $0xe8] sm:$0xff]
      %v2691 = vld [vmem:[%s4 + $0xf0] sm:$0xff]
      %v2692 = vld [vmem:[%s4 + $0xf8] sm:$0xff]
      %2693 = vmatpush.msra.mxu0 %v2676
      %2694 = vmatpush.msra.mxu0 %v2675
      %2695 = vmatpush.msra.mxu0 %v2674
      %2696 = vmatpush.msra.mxu0 %v2673
      %2697 = vmatpush.msra.mxu0 %v2672
      %2698 = vmatpush.msra.mxu0 %v2671
      %2699 = vmatpush.msra.mxu0 %v2670
      %2700 = vmatpush.msra.mxu0 %v2669
      %2701 = vmatpush.msra.mxu0 %v2668
      %2702 = vmatpush.msra.mxu0 %v2667
      %2703 = vmatpush.msra.mxu0 %v2666
      %2704 = vmatpush.msra.mxu0 %v2665
      %2705 = vmatpush.msra.mxu0 %v2664
      %2706 = vmatpush.msra.mxu0 %v2663
      %2707 = vmatpush.msra.mxu0 %v2662
      %2708 = vmatpush.msra.mxu0 %v2661
      %2709 = vmatmul.f32.gmra.mxu0 %v2657
      %v2710 = vpop.f32.mrf.mxu0
      %v2711 = vadd.f32 0.0, %v2710
      %2712 = vmatmul.f32.gmra.mxu0 %v2659
      %v2713 = vpop.f32.mrf.mxu0
      %v2714 = vadd.f32 0.0, %v2713
      %2715 = vdwg.mxu0
      %2716 = vmatpush.msra.mxu0 %v2692
      %2717 = vmatpush.msra.mxu0 %v2691
      %2718 = vmatpush.msra.mxu0 %v2690
      %2719 = vmatpush.msra.mxu0 %v2689
      %2720 = vmatpush.msra.mxu0 %v2688
      %2721 = vmatpush.msra.mxu0 %v2687
      %2722 = vmatpush.msra.mxu0 %v2686
      %2723 = vmatpush.msra.mxu0 %v2685
      %2724 = vmatpush.msra.mxu0 %v2684
      %2725 = vmatpush.msra.mxu0 %v2683
      %2726 = vmatpush.msra.mxu0 %v2682
      %2727 = vmatpush.msra.mxu0 %v2681
      %2728 = vmatpush.msra.mxu0 %v2680
      %2729 = vmatpush.msra.mxu0 %v2679
      %2730 = vmatpush.msra.mxu0 %v2678
      %2731 = vmatpush.msra.mxu0 %v2677
      %2732 = vmatmul.f32.gmra.mxu0 %v2658
      %v2733 = vpop.f32.mrf.mxu0
      %v2734 = vadd.f32 %v2711, %v2733
      %2735 = vmatmul.f32.gmra.mxu0 %v2660
      %v2736 = vpop.f32.mrf.mxu0
      %v2737 = vadd.f32 %v2714, %v2736
      %2738 = vdwg.mxu0
      %v2739 = vld [vmem:[%s5] sm:$0xff]
      %v2740 = vld [vmem:[%s5 + $0x8] sm:$0xff]
      %v2741 = vld [vmem:[%s5 + $0x10] sm:$0xff]
      %v2742 = vld [vmem:[%s5 + $0x18] sm:$0xff]
      %vm2743 = vcmask 130048
      %v2745 = vsel %vm2743, %v2734, 0
      %v2748 = vsel %vm2743, %v2737, 0
      %2750 = vmatpush.msra.mxu0 0.0
      %2751 = vmatpush.msra.mxu0 0.0
      %2752 = vmatpush.msra.mxu0 0.0
      %2753 = vmatpush.msra.mxu0 0.0
      %2754 = vmatpush.msra.mxu0 0.0
      %2755 = vmatpush.msra.mxu0 0.0
      %2756 = vmatpush.msra.mxu0 0.0
      %2757 = vmatpush.msra.mxu0 0.0
      %2758 = vmatpush.msra.mxu0 0.0
      %2759 = vmatpush.msra.mxu0 0.0
      %2760 = vmatpush.msra.mxu0 0.0
      %2761 = vmatpush.msra.mxu0 0.0
      %2762 = vmatpush.msra.mxu0 0.0
      %2763 = vmatpush.msra.mxu0 0.0
      %2764 = vmatpush.msra.mxu0 %v2741
      %2765 = vmatpush.msra.mxu0 %v2739
      %2766 = vmatmul.f32.gmra.mxu0 %v2745
      %v2767 = vpop.f32.mrf.mxu0
      %v2768 = vadd.f32 0.0, %v2767
      %2769 = vmatmul.f32.gmra.mxu0 %v2748
      %v2770 = vpop.f32.mrf.mxu0
      %v2771 = vadd.f32 0.0, %v2770
      %2772 = vdwg.mxu0
      %2773 = vmatpush.msra.mxu0 0.0
      %2774 = vmatpush.msra.mxu0 0.0
      %2775 = vmatpush.msra.mxu0 0.0
      %2776 = vmatpush.msra.mxu0 0.0
      %2777 = vmatpush.msra.mxu0 0.0
      %2778 = vmatpush.msra.mxu0 0.0
      %2779 = vmatpush.msra.mxu0 0.0
      %2780 = vmatpush.msra.mxu0 0.0
      %2781 = vmatpush.msra.mxu0 0.0
      %2782 = vmatpush.msra.mxu0 0.0
      %2783 = vmatpush.msra.mxu0 0.0
      %2784 = vmatpush.msra.mxu0 0.0
      %2785 = vmatpush.msra.mxu0 0.0
      %2786 = vmatpush.msra.mxu0 0.0
      %2787 = vmatpush.msra.mxu0 %v2742
      %2788 = vmatpush.msra.mxu0 %v2740
      %2789 = vmatmul.f32.gmra.mxu0 %v2745
      %v2790 = vpop.f32.mrf.mxu0
      %v2791 = vadd.f32 0.0, %v2790
      %2792 = vmatmul.f32.gmra.mxu0 %v2748
      %v2793 = vpop.f32.mrf.mxu0
      %v2794 = vadd.f32 0.0, %v2793
      %2795 = vdwg.mxu0
      %v2796 = vadd.f32 %v2768, %v2771
      %v2797 = vrot.slane %v2796, 4
      %v2798 = vadd.f32 %v2796, %v2797
      %v2799 = vrot.slane %v2798, 2
      %v2800 = vadd.f32 %v2798, %v2799
      %v2801 = vrot.slane %v2800, 1
      %v2802 = vadd.f32 %v2800, %v2801
      %v2803 = vadd.f32 %v2791, %v2794
      %v2804 = vrot.slane %v2803, 4
      %v2805 = vadd.f32 %v2803, %v2804
      %v2806 = vrot.slane %v2805, 2
      %v2807 = vadd.f32 %v2805, %v2806
      %v2808 = vrot.slane %v2807, 1
      %v2809 = vadd.f32 %v2807, %v2808
      %v2810 = vld [vmem:[%s6] sm:$0x3]
      %v2812 = vperm.slane %v2810, 0
      %v2813 = vperm.slane %v2810, 1
      %v2816 = vadd.f32 %v2802, %v2812
      %v2817 = vadd.f32 %v2809, %v2813
      %v2818 = vperm.slane %v2816, 0
      %v2819 = vperm.slane %v2817, 0
      %v2820 = vadd.f32 %v2657, %v2818
      %v2821 = vadd.f32 %v2658, %v2819
      %v2822 = vadd.f32 %v2659, %v2818
      %v2823 = vadd.f32 %v2660, %v2819
      %v2824 = vld [vmem:[%s7] sm:$0x3]
      %v2826 = vperm.slane %v2824, 0
      %v2827 = vperm.slane %v2824, 1
      %v2830 = vmul.f32 %v2820, %v2826
      %v2831 = vmul.f32 %v2821, %v2827
      %v2832 = vmul.f32 %v2822, %v2826
      %v2833 = vmul.f32 %v2823, %v2827
      %v2834 = vld [vmem:[%s8] sm:$0x3]
      %v2836 = vperm.slane %v2834, 0
      %v2837 = vperm.slane %v2834, 1
      %v2840 = vadd.f32 %v2830, %v2836
      %v2841 = vadd.f32 %v2831, %v2837
      %v2842 = vadd.f32 %v2832, %v2836
      %v2843 = vadd.f32 %v2833, %v2837
      %v2844 = vsub.f32 0.0, %v2840
      %v2845 = vsub.f32 0.0, %v2841
      %v2846 = vsub.f32 0.0, %v2842
      %v2847 = vsub.f32 0.0, %v2843
      %v2848 = vmul.f32 %v2844, 1.442695
      %v2849 = vpow.pop %v2848
      %v2850 = vmul.f32 %v2845, 1.442695
      %v2851 = vpow.pop %v2850
      %v2852 = vmul.f32 %v2846, 1.442695
      %v2853 = vpow.pop %v2852
      %v2854 = vmul.f32 %v2847, 1.442695
      %v2855 = vpow.pop %v2854
      %v2856 = vadd.f32 %v2849, 1.0
      %v2857 = vadd.f32 %v2851, 1.0
      %v2858 = vadd.f32 %v2853, 1.0
      %v2859 = vadd.f32 %v2855, 1.0
      %v2860 = vrcp.pop %v2856
      %v2861 = vrcp.pop %v2857
      %v2862 = vrcp.pop %v2858
      %v2863 = vrcp.pop %v2859
      %v2864 = vmul.f32 %v2840, %v2860
      %v2865 = vmul.f32 %v2841, %v2861
      %v2866 = vmul.f32 %v2842, %v2862
      %v2867 = vmul.f32 %v2843, %v2863
      %v2868 = vpack.c.bf16 %v2865, %v2864
      %v2869 = vpack.c.bf16 %v2867, %v2866
      %2870 = vst [vmem:[%s352] sm:$0xff] %v2868
      %2871 = vst [vmem:[%s352 + $0x8] sm:$0xff] %v2869
      %p2872 = scmp.lt.s32.totalorder %s20, 1
      %s2873 = scalar_select %p2872, %s20, 1
      %s2874 = smul.addr %s2873, 4
      %s2875 = smul.addr %s2874, 4
      %s2876 = scalar_lea.vmem %s9, %s2875
      // Predicated region
      $region57: #{_lambda_.6} parent=55 // pred_check
        %p2877 = pneg %p237
      $region58: #{_lambda_.6} parent=55 // pred_check_branch
        %2879 = sbr.rel (%p2877) target = $region60
      $region59: #{_lambda_.6} parent=55 // pred_region
        _
      $region60: #{_lambda_.6} parent=55 // pred_fallthru
        _
    $region56: #{_lambda_.6} parent=5 // pred_fallthru
      _
    %p2880 = scmp.le.s32.totalorder 2, %s15
    // Predicated region
    $region61: #{_lambda_.6} parent=5 // pred_check
      %p2881 = pneg %p2880
    $region62: #{_lambda_.6} parent=5 // pred_check_branch
      %2883 = sbr.rel (%p2881) target = $region64
    $region63: #{_lambda_.6} parent=5 // pred_region
      %s2884 = ssub.s32 %s15, 2
      // Predicated region
      $region65: #{_lambda_.6} parent=63 // pred_check
        %p2885 = pneg %p243
      $region66: #{_lambda_.6} parent=63 // pred_check_branch
        %2887 = sbr.rel (%p2885) target = $region68
      $region67: #{_lambda_.6} parent=63 // pred_region
        %p2888 = scmp.lt.s32.totalorder %s21, 1
        %s2889 = scalar_select %p2888, %s21, 1
        %s2890 = smul.addr %s2889, 4
        %s2891 = smul.addr %s2890, 4
        %s2892 = scalar_lea.vmem %s9, %s2891
      $region68: #{_lambda_.6} parent=63 // pred_fallthru
        _
    $region64: #{_lambda_.6} parent=5 // pred_fallthru
      _
  $region6: #{_lambda_.6} parent=0 // loop_footer
    %s19 = sadd.s32 1, %s15
  $region7: #{_lambda_.6} parent=0 // loop_footer_branch
    %14 = sbr.rel target = $region3
  $region8: #{_lambda_.6} parent=0 // loop_exit
    _

</llo_original>
